<compile_context>
chip_gen: v5e
topology: v5e:2x2
jax: 0.10.0
libtpu: 0.0.40
codegen_flags: <defaults>
</compile_context>

<pallas_src>
import jax
import jax.numpy as jnp
from jax.experimental import pallas as pl
from jax.experimental.pallas import tpu as pltpu

KH, KW = 5, 5
PAD = 2
EPS = 1e-3          # matches BatchNorm2d(eps=0.001)
LANE = 128          # lane width
MAX_CT = 512        # max channel block (tunable)


def dwconv_bn_kernel(x_ref, w_ref, gamma_ref, beta_ref, o_ref, xpad_sc):
    # x_ref:     (N, H, W, CT)       input C-tile
    # w_ref:     (KH*KW, CT)         depthwise taps, (kh, kw)-major
    # gamma_ref: (1, 1, 1, CT)
    # beta_ref:  (1, 1, 1, CT)
    # o_ref:     (N, H, W, CT)
    # xpad_sc:   (N, H+4, W+4, CT)   VMEM scratch holding the zero-padded tile
    N, H, W, C = x_ref.shape
    Hp = H + 2 * PAD
    Wp = W + 2 * PAD

    # ---- build the padded input in VMEM: zero ONLY the halo strips ----
    # (done every grid step; never gated on program_id -> correct when the
    #  parallel grid axis is sharded across TensorCores.)
    xpad_sc[:, 0:PAD, :, :] = jnp.zeros((N, PAD, Wp, C), xpad_sc.dtype)            # top
    xpad_sc[:, PAD + H:Hp, :, :] = jnp.zeros((N, PAD, Wp, C), xpad_sc.dtype)        # bottom
    xpad_sc[:, PAD:PAD + H, 0:PAD, :] = jnp.zeros((N, H, PAD, C), xpad_sc.dtype)    # left
    xpad_sc[:, PAD:PAD + H, PAD + W:Wp, :] = jnp.zeros((N, H, PAD, C), xpad_sc.dtype)  # right
    xpad_sc[:, PAD:PAD + H, PAD:PAD + W, :] = x_ref[...]                            # interior

    w = w_ref[...]                                    # (25, CT), loaded once

    # ---- depthwise 5x5 conv: single running accumulator ----
    # Outer loop over kw: one sublane (W-dim) shifted view per kw (5 total).
    # Inner loop over kh: shifts along H (leading dim) are free.
    acc = None
    for kw in range(KW):
        xw = xpad_sc[:, :, kw:kw + W, :]              # (N, H+4, W, CT)
        for kh in range(KH):
            t = xw[:, kh:kh + H, :, :] * w[kh * KW + kw]
            acc = t if acc is None else acc + t       # (N, H, W, CT)

    # ---- batch-norm (training-mode batch stats, biased variance) ----
    # One-pass statistics: var = E[x^2] - E[x]^2 (per-channel, local to tile).
    cnt = float(N * H * W)
    s1 = jnp.sum(acc, axis=(0, 1, 2), keepdims=True)                 # (1,1,1,CT)
    s2 = jnp.sum(acc * acc, axis=(0, 1, 2), keepdims=True)           # (1,1,1,CT)
    mean = s1 * (1.0 / cnt)
    var = jnp.maximum(s2 * (1.0 / cnt) - mean * mean, 0.0)
    inv = jax.lax.rsqrt(var + EPS)

    # Fold gamma/mean into one per-channel scale + shift (epilogue = mul + add).
    scale = gamma_ref[...] * inv
    shift = beta_ref[...] - mean * scale
    o_ref[...] = (acc * scale + shift).astype(o_ref.dtype)


def _choose_ct(c_padded):
    """Largest channel block (multiple of 128, <= MAX_CT) dividing c_padded,
    preferring >=2 grid blocks so both v7x TensorCores get work."""
    best = None
    for cand in range(LANE, min(MAX_CT, c_padded) + 1, LANE):
        if c_padded % cand == 0 and c_padded // cand >= 2:
            best = cand
    if best is None:                      # only a single block is possible
        best = min(MAX_CT, c_padded)
        while c_padded % best != 0:
            best -= LANE
    return best


def depthwise_conv_bn_nhwc(x_nhwc, conv_weight, gamma, beta):
    """x_nhwc: (N, H, W, C) f32; conv_weight: (C, 1, 5, 5); gamma/beta: (C,)."""
    N, H, W, C = x_nhwc.shape
    assert conv_weight.shape == (C, 1, KH, KW)

    # Pad C up to a multiple of 128 lanes (independent lanes; sliced off after).
    C_p = ((C + LANE - 1) // LANE) * LANE
    pad_c = C_p - C
    CT = _choose_ct(C_p)

    x_p = x_nhwc.astype(jnp.float32)
    if pad_c:
        x_p = jnp.pad(x_p, ((0, 0), (0, 0), (0, 0), (0, pad_c)))

    # (C, 1, KH, KW) -> (KH*KW, C), (kh, kw)-major rows.
    w_flat = jnp.transpose(conv_weight[:, 0, :, :], (1, 2, 0)).reshape(KH * KW, C)
    w_flat = w_flat.astype(jnp.float32)
    gamma_f = gamma.astype(jnp.float32)
    beta_f = beta.astype(jnp.float32)
    if pad_c:
        w_flat = jnp.pad(w_flat, ((0, 0), (0, pad_c)))
        gamma_f = jnp.pad(gamma_f, ((0, pad_c),))
        beta_f = jnp.pad(beta_f, ((0, pad_c),))
    gamma_b = gamma_f.reshape(1, 1, 1, C_p)
    beta_b = beta_f.reshape(1, 1, 1, C_p)

    out = pl.pallas_call(
        dwconv_bn_kernel,
        out_shape=jax.ShapeDtypeStruct((N, H, W, C_p), jnp.float32),
        grid_spec=pltpu.PrefetchScalarGridSpec(
            num_scalar_prefetch=0,
            grid=(C_p // CT,),
            in_specs=[
                pl.BlockSpec((N, H, W, CT), lambda c: (0, 0, 0, c)),
                pl.BlockSpec((KH * KW, CT), lambda c: (0, c)),
                pl.BlockSpec((1, 1, 1, CT), lambda c: (0, 0, 0, c)),
                pl.BlockSpec((1, 1, 1, CT), lambda c: (0, 0, 0, c)),
            ],
            out_specs=pl.BlockSpec((N, H, W, CT), lambda c: (0, 0, 0, c)),
            scratch_shapes=[
                pltpu.VMEM((N, H + 2 * PAD, W + 2 * PAD, CT), jnp.float32),
            ],
        ),
        compiler_params=pltpu.CompilerParams(
            dimension_semantics=("parallel",),
            vmem_limit_bytes=64 * 1024 * 1024,
        ),
    )(x_p, w_flat, gamma_b, beta_b)

    return out[..., :C] if pad_c else out


def depthwise_conv_bn(x_nchw, conv_weight, gamma, beta):
    """NCHW wrapper matching the PyTorch module interface.
    For real deployments keep the surrounding graph in NHWC and call
    depthwise_conv_bn_nhwc directly to avoid these two layout passes."""
    x_nhwc = jnp.transpose(x_nchw, (0, 2, 3, 1))
    out_nhwc = depthwise_conv_bn_nhwc(x_nhwc, conv_weight, gamma, beta)
    return jnp.transpose(out_nhwc, (0, 3, 1, 2))


if __name__ == "__main__":
    # Small shapes consistent with the module's forward (original: 1x960x14x14).
    # C=256 exercises a multi-block channel grid with no channel padding.
    N, C, H, W = 2, 256, 14, 14

    key = jax.random.PRNGKey(0)
    kx, kw, kg, kb = jax.random.split(key, 4)
    x = jax.random.normal(kx, (N, C, H, W), dtype=jnp.float32)
    conv_weight = jax.random.normal(kw, (C, 1, KH, KW), dtype=jnp.float32) * 0.1
    gamma = 1.0 + 0.1 * jax.random.normal(kg, (C,), dtype=jnp.float32)
    beta = 0.1 * jax.random.normal(kb, (C,), dtype=jnp.float32)

    out = jax.jit(depthwise_conv_bn)(x, conv_weight, gamma, beta)
    out = jax.block_until_ready(out)
    assert out.shape == (N, C, H, W)

    # Pure-XLA reference (depthwise conv + train-mode BN) sanity check.
    def reference(x, w, g, b):
        y = jax.lax.conv_general_dilated(
            x, w, window_strides=(1, 1), padding=((PAD, PAD), (PAD, PAD)),
            dimension_numbers=("NCHW", "OIHW", "NCHW"),
            feature_group_count=x.shape[1])
        mean = jnp.mean(y, axis=(0, 2, 3), keepdims=True)
        var = jnp.mean((y - mean) ** 2, axis=(0, 2, 3), keepdims=True)
        return ((y - mean) * jax.lax.rsqrt(var + EPS) * g.reshape(1, -1, 1, 1)
                + b.reshape(1, -1, 1, 1))

    ref = jax.block_until_ready(reference(x, conv_weight, gamma, beta))
    max_err = float(jnp.max(jnp.abs(out - ref)))
    assert jnp.allclose(out, ref, atol=2e-3, rtol=2e-3), max_err
    print("KERNEL_OK")
</pallas_src>

<mosaic_0001>
module attributes {stable_mosaic.version = 11 : i64} {
  func.func @dwconv_bn_kernel(%arg0: i32, %arg1: memref<2x14x14x128xf32, #tpu.memory_space<vmem>>, %arg2: memref<25x128xf32, #tpu.memory_space<vmem>>, %arg3: memref<1x1x1x128xf32, #tpu.memory_space<vmem>>, %arg4: memref<1x1x1x128xf32, #tpu.memory_space<vmem>>, %arg5: memref<2x14x14x128xf32, #tpu.memory_space<vmem>>, %arg6: memref<2x18x18x128xf32, #tpu.memory_space<vmem>>) attributes {dimension_semantics = [#tpu.dimension_semantics<parallel>], iteration_bounds = array<i64: 2>, scalar_prefetch = 0 : i64, scratch_operands = 1 : i64, tpu.core_type = #tpu.core_type<tc>, window_params = [{transform_indices = @transform_0, window_bounds = array<i64: 2, 14, 14, 128>}, {transform_indices = @transform_1, window_bounds = array<i64: 25, 128>}, {transform_indices = @transform_2, window_bounds = array<i64: 1, 1, 1, 128>}, {transform_indices = @transform_3, window_bounds = array<i64: 1, 1, 1, 128>}, {transform_indices = @transform_4, window_bounds = array<i64: 2, 14, 14, 128>}]} {
    %cst = arith.constant 0.000000e+00 : f32
    %0 = vector.broadcast %cst : f32 to vector<2x2x18x128xf32>
    %c0 = arith.constant 0 : index
    %c0_0 = arith.constant 0 : index
    %c0_1 = arith.constant 0 : index
    %c0_2 = arith.constant 0 : index
    %1 = vector.load %arg6[%c0, %c0_0, %c0_1, %c0_2] : memref<2x18x18x128xf32, #tpu.memory_space<vmem>>, vector<2x2x18x128xf32>
    tpu.vector_store %arg6[%c0, %c0_0, %c0_1, %c0_2], %0 {strides = array<i32>} : memref<2x18x18x128xf32, #tpu.memory_space<vmem>>, vector<2x2x18x128xf32>,
    %cst_3 = arith.constant 0.000000e+00 : f32
    %2 = vector.broadcast %cst_3 : f32 to vector<2x2x18x128xf32>
    %c0_4 = arith.constant 0 : index
    %c16 = arith.constant 16 : index
    %c0_5 = arith.constant 0 : index
    %c0_6 = arith.constant 0 : index
    %3 = vector.load %arg6[%c0_4, %c16, %c0_5, %c0_6] : memref<2x18x18x128xf32, #tpu.memory_space<vmem>>, vector<2x2x18x128xf32>
    tpu.vector_store %arg6[%c0_4, %c16, %c0_5, %c0_6], %2 {strides = array<i32>} : memref<2x18x18x128xf32, #tpu.memory_space<vmem>>, vector<2x2x18x128xf32>,
    %cst_7 = arith.constant 0.000000e+00 : f32
    %4 = vector.broadcast %cst_7 : f32 to vector<2x14x2x128xf32>
    %c0_8 = arith.constant 0 : index
    %c2 = arith.constant 2 : index
    %c0_9 = arith.constant 0 : index
    %c0_10 = arith.constant 0 : index
    %5 = vector.load %arg6[%c0_8, %c2, %c0_9, %c0_10] : memref<2x18x18x128xf32, #tpu.memory_space<vmem>>, vector<2x14x2x128xf32>
    tpu.vector_store %arg6[%c0_8, %c2, %c0_9, %c0_10], %4 {strides = array<i32>} : memref<2x18x18x128xf32, #tpu.memory_space<vmem>>, vector<2x14x2x128xf32>,
    %cst_11 = arith.constant 0.000000e+00 : f32
    %6 = vector.broadcast %cst_11 : f32 to vector<2x14x2x128xf32>
    %c0_12 = arith.constant 0 : index
    %c2_13 = arith.constant 2 : index
    %c16_14 = arith.constant 16 : index
    %c0_15 = arith.constant 0 : index
    %7 = vector.load %arg6[%c0_12, %c2_13, %c16_14, %c0_15] : memref<2x18x18x128xf32, #tpu.memory_space<vmem>>, vector<2x14x2x128xf32>
    tpu.vector_store %arg6[%c0_12, %c2_13, %c16_14, %c0_15], %6 {strides = array<i32>} : memref<2x18x18x128xf32, #tpu.memory_space<vmem>>, vector<2x14x2x128xf32>,
    %c0_16 = arith.constant 0 : index
    %c0_17 = arith.constant 0 : index
    %c0_18 = arith.constant 0 : index
    %c0_19 = arith.constant 0 : index
    %8 = vector.load %arg1[%c0_16, %c0_17, %c0_18, %c0_19] : memref<2x14x14x128xf32, #tpu.memory_space<vmem>>, vector<2x14x14x128xf32>
    %c0_20 = arith.constant 0 : index
    %c2_21 = arith.constant 2 : index
    %c2_22 = arith.constant 2 : index
    %c0_23 = arith.constant 0 : index
    %9 = vector.load %arg6[%c0_20, %c2_21, %c2_22, %c0_23] : memref<2x18x18x128xf32, #tpu.memory_space<vmem>>, vector<2x14x14x128xf32>
    tpu.vector_store %arg6[%c0_20, %c2_21, %c2_22, %c0_23], %8 {strides = array<i32>} : memref<2x18x18x128xf32, #tpu.memory_space<vmem>>, vector<2x14x14x128xf32>,
    %c0_24 = arith.constant 0 : index
    %c0_25 = arith.constant 0 : index
    %10 = vector.load %arg2[%c0_24, %c0_25] : memref<25x128xf32, #tpu.memory_space<vmem>>, vector<25x128xf32>
    %c0_26 = arith.constant 0 : index
    %c0_27 = arith.constant 0 : index
    %c0_28 = arith.constant 0 : index
    %c0_29 = arith.constant 0 : index
    %11 = vector.load %arg6[%c0_26, %c0_27, %c0_28, %c0_29] : memref<2x18x18x128xf32, #tpu.memory_space<vmem>>, vector<2x18x14x128xf32>
    %12 = vector.extract_strided_slice %11 {offsets = [0, 0, 0, 0], sizes = [2, 14, 14, 128], strides = [1, 1, 1, 1]} : vector<2x18x14x128xf32> to vector<2x14x14x128xf32>
    %13 = vector.extract_strided_slice %10 {offsets = [0, 0], sizes = [1, 128], strides = [1, 1]} : vector<25x128xf32> to vector<1x128xf32>
    %14 = vector.shape_cast %13 : vector<1x128xf32> to vector<128xf32>
    %15 = vector.shape_cast %14 : vector<128xf32> to vector<1x1x1x128xf32>
    %16 = vector.broadcast %15 : vector<1x1x1x128xf32> to vector<2x14x14x128xf32>
    %17 = arith.mulf %12, %16 : vector<2x14x14x128xf32>
    %18 = vector.extract_strided_slice %11 {offsets = [0, 1, 0, 0], sizes = [2, 14, 14, 128], strides = [1, 1, 1, 1]} : vector<2x18x14x128xf32> to vector<2x14x14x128xf32>
    %19 = vector.extract_strided_slice %10 {offsets = [5, 0], sizes = [1, 128], strides = [1, 1]} : vector<25x128xf32> to vector<1x128xf32>
    %20 = vector.shape_cast %19 : vector<1x128xf32> to vector<128xf32>
    %21 = vector.shape_cast %20 : vector<128xf32> to vector<1x1x1x128xf32>
    %22 = vector.broadcast %21 : vector<1x1x1x128xf32> to vector<2x14x14x128xf32>
    %23 = arith.mulf %18, %22 : vector<2x14x14x128xf32>
    %24 = arith.addf %17, %23 : vector<2x14x14x128xf32>
    %25 = vector.extract_strided_slice %11 {offsets = [0, 2, 0, 0], sizes = [2, 14, 14, 128], strides = [1, 1, 1, 1]} : vector<2x18x14x128xf32> to vector<2x14x14x128xf32>
    %26 = vector.extract_strided_slice %10 {offsets = [10, 0], sizes = [1, 128], strides = [1, 1]} : vector<25x128xf32> to vector<1x128xf32>
    %27 = vector.shape_cast %26 : vector<1x128xf32> to vector<128xf32>
    %28 = vector.shape_cast %27 : vector<128xf32> to vector<1x1x1x128xf32>
    %29 = vector.broadcast %28 : vector<1x1x1x128xf32> to vector<2x14x14x128xf32>
    %30 = arith.mulf %25, %29 : vector<2x14x14x128xf32>
    %31 = arith.addf %24, %30 : vector<2x14x14x128xf32>
    %32 = vector.extract_strided_slice %11 {offsets = [0, 3, 0, 0], sizes = [2, 14, 14, 128], strides = [1, 1, 1, 1]} : vector<2x18x14x128xf32> to vector<2x14x14x128xf32>
    %33 = vector.extract_strided_slice %10 {offsets = [15, 0], sizes = [1, 128], strides = [1, 1]} : vector<25x128xf32> to vector<1x128xf32>
    %34 = vector.shape_cast %33 : vector<1x128xf32> to vector<128xf32>
    %35 = vector.shape_cast %34 : vector<128xf32> to vector<1x1x1x128xf32>
    %36 = vector.broadcast %35 : vector<1x1x1x128xf32> to vector<2x14x14x128xf32>
    %37 = arith.mulf %32, %36 : vector<2x14x14x128xf32>
    %38 = arith.addf %31, %37 : vector<2x14x14x128xf32>
    %39 = vector.extract_strided_slice %11 {offsets = [0, 4, 0, 0], sizes = [2, 14, 14, 128], strides = [1, 1, 1, 1]} : vector<2x18x14x128xf32> to vector<2x14x14x128xf32>
    %40 = vector.extract_strided_slice %10 {offsets = [20, 0], sizes = [1, 128], strides = [1, 1]} : vector<25x128xf32> to vector<1x128xf32>
    %41 = vector.shape_cast %40 : vector<1x128xf32> to vector<128xf32>
    %42 = vector.shape_cast %41 : vector<128xf32> to vector<1x1x1x128xf32>
    %43 = vector.broadcast %42 : vector<1x1x1x128xf32> to vector<2x14x14x128xf32>
    %44 = arith.mulf %39, %43 : vector<2x14x14x128xf32>
    %45 = arith.addf %38, %44 : vector<2x14x14x128xf32>
    %c0_30 = arith.constant 0 : index
    %c0_31 = arith.constant 0 : index
    %c1 = arith.constant 1 : index
    %c0_32 = arith.constant 0 : index
    %46 = vector.load %arg6[%c0_30, %c0_31, %c1, %c0_32] : memref<2x18x18x128xf32, #tpu.memory_space<vmem>>, vector<2x18x14x128xf32>
    %47 = vector.extract_strided_slice %46 {offsets = [0, 0, 0, 0], sizes = [2, 14, 14, 128], strides = [1, 1, 1, 1]} : vector<2x18x14x128xf32> to vector<2x14x14x128xf32>
    %48 = vector.extract_strided_slice %10 {offsets = [1, 0], sizes = [1, 128], strides = [1, 1]} : vector<25x128xf32> to vector<1x128xf32>
    %49 = vector.shape_cast %48 : vector<1x128xf32> to vector<128xf32>
    %50 = vector.shape_cast %49 : vector<128xf32> to vector<1x1x1x128xf32>
    %51 = vector.broadcast %50 : vector<1x1x1x128xf32> to vector<2x14x14x128xf32>
    %52 = arith.mulf %47, %51 : vector<2x14x14x128xf32>
    %53 = arith.addf %45, %52 : vector<2x14x14x128xf32>
    %54 = vector.extract_strided_slice %46 {offsets = [0, 1, 0, 0], sizes = [2, 14, 14, 128], strides = [1, 1, 1, 1]} : vector<2x18x14x128xf32> to vector<2x14x14x128xf32>
    %55 = vector.extract_strided_slice %10 {offsets = [6, 0], sizes = [1, 128], strides = [1, 1]} : vector<25x128xf32> to vector<1x128xf32>
    %56 = vector.shape_cast %55 : vector<1x128xf32> to vector<128xf32>
    %57 = vector.shape_cast %56 : vector<128xf32> to vector<1x1x1x128xf32>
    %58 = vector.broadcast %57 : vector<1x1x1x128xf32> to vector<2x14x14x128xf32>
    %59 = arith.mulf %54, %58 : vector<2x14x14x128xf32>
    %60 = arith.addf %53, %59 : vector<2x14x14x128xf32>
    %61 = vector.extract_strided_slice %46 {offsets = [0, 2, 0, 0], sizes = [2, 14, 14, 128], strides = [1, 1, 1, 1]} : vector<2x18x14x128xf32> to vector<2x14x14x128xf32>
    %62 = vector.extract_strided_slice %10 {offsets = [11, 0], sizes = [1, 128], strides = [1, 1]} : vector<25x128xf32> to vector<1x128xf32>
    %63 = vector.shape_cast %62 : vector<1x128xf32> to vector<128xf32>
    %64 = vector.shape_cast %63 : vector<128xf32> to vector<1x1x1x128xf32>
    %65 = vector.broadcast %64 : vector<1x1x1x128xf32> to vector<2x14x14x128xf32>
    %66 = arith.mulf %61, %65 : vector<2x14x14x128xf32>
    %67 = arith.addf %60, %66 : vector<2x14x14x128xf32>
    %68 = vector.extract_strided_slice %46 {offsets = [0, 3, 0, 0], sizes = [2, 14, 14, 128], strides = [1, 1, 1, 1]} : vector<2x18x14x128xf32> to vector<2x14x14x128xf32>
    %69 = vector.extract_strided_slice %10 {offsets = [16, 0], sizes = [1, 128], strides = [1, 1]} : vector<25x128xf32> to vector<1x128xf32>
    %70 = vector.shape_cast %69 : vector<1x128xf32> to vector<128xf32>
    %71 = vector.shape_cast %70 : vector<128xf32> to vector<1x1x1x128xf32>
    %72 = vector.broadcast %71 : vector<1x1x1x128xf32> to vector<2x14x14x128xf32>
    %73 = arith.mulf %68, %72 : vector<2x14x14x128xf32>
    %74 = arith.addf %67, %73 : vector<2x14x14x128xf32>
    %75 = vector.extract_strided_slice %46 {offsets = [0, 4, 0, 0], sizes = [2, 14, 14, 128], strides = [1, 1, 1, 1]} : vector<2x18x14x128xf32> to vector<2x14x14x128xf32>
    %76 = vector.extract_strided_slice %10 {offsets = [21, 0], sizes = [1, 128], strides = [1, 1]} : vector<25x128xf32> to vector<1x128xf32>
    %77 = vector.shape_cast %76 : vector<1x128xf32> to vector<128xf32>
    %78 = vector.shape_cast %77 : vector<128xf32> to vector<1x1x1x128xf32>
    %79 = vector.broadcast %78 : vector<1x1x1x128xf32> to vector<2x14x14x128xf32>
    %80 = arith.mulf %75, %79 : vector<2x14x14x128xf32>
    %81 = arith.addf %74, %80 : vector<2x14x14x128xf32>
    %c0_33 = arith.constant 0 : index
    %c0_34 = arith.constant 0 : index
    %c2_35 = arith.constant 2 : index
    %c0_36 = arith.constant 0 : index
    %82 = vector.load %arg6[%c0_33, %c0_34, %c2_35, %c0_36] : memref<2x18x18x128xf32, #tpu.memory_space<vmem>>, vector<2x18x14x128xf32>
    %83 = vector.extract_strided_slice %82 {offsets = [0, 0, 0, 0], sizes = [2, 14, 14, 128], strides = [1, 1, 1, 1]} : vector<2x18x14x128xf32> to vector<2x14x14x128xf32>
    %84 = vector.extract_strided_slice %10 {offsets = [2, 0], sizes = [1, 128], strides = [1, 1]} : vector<25x128xf32> to vector<1x128xf32>
    %85 = vector.shape_cast %84 : vector<1x128xf32> to vector<128xf32>
    %86 = vector.shape_cast %85 : vector<128xf32> to vector<1x1x1x128xf32>
    %87 = vector.broadcast %86 : vector<1x1x1x128xf32> to vector<2x14x14x128xf32>
    %88 = arith.mulf %83, %87 : vector<2x14x14x128xf32>
    %89 = arith.addf %81, %88 : vector<2x14x14x128xf32>
    %90 = vector.extract_strided_slice %82 {offsets = [0, 1, 0, 0], sizes = [2, 14, 14, 128], strides = [1, 1, 1, 1]} : vector<2x18x14x128xf32> to vector<2x14x14x128xf32>
    %91 = vector.extract_strided_slice %10 {offsets = [7, 0], sizes = [1, 128], strides = [1, 1]} : vector<25x128xf32> to vector<1x128xf32>
    %92 = vector.shape_cast %91 : vector<1x128xf32> to vector<128xf32>
    %93 = vector.shape_cast %92 : vector<128xf32> to vector<1x1x1x128xf32>
    %94 = vector.broadcast %93 : vector<1x1x1x128xf32> to vector<2x14x14x128xf32>
    %95 = arith.mulf %90, %94 : vector<2x14x14x128xf32>
    %96 = arith.addf %89, %95 : vector<2x14x14x128xf32>
    %97 = vector.extract_strided_slice %82 {offsets = [0, 2, 0, 0], sizes = [2, 14, 14, 128], strides = [1, 1, 1, 1]} : vector<2x18x14x128xf32> to vector<2x14x14x128xf32>
    %98 = vector.extract_strided_slice %10 {offsets = [12, 0], sizes = [1, 128], strides = [1, 1]} : vector<25x128xf32> to vector<1x128xf32>
    %99 = vector.shape_cast %98 : vector<1x128xf32> to vector<128xf32>
    %100 = vector.shape_cast %99 : vector<128xf32> to vector<1x1x1x128xf32>
    %101 = vector.broadcast %100 : vector<1x1x1x128xf32> to vector<2x14x14x128xf32>
    %102 = arith.mulf %97, %101 : vector<2x14x14x128xf32>
    %103 = arith.addf %96, %102 : vector<2x14x14x128xf32>
    %104 = vector.extract_strided_slice %82 {offsets = [0, 3, 0, 0], sizes = [2, 14, 14, 128], strides = [1, 1, 1, 1]} : vector<2x18x14x128xf32> to vector<2x14x14x128xf32>
    %105 = vector.extract_strided_slice %10 {offsets = [17, 0], sizes = [1, 128], strides = [1, 1]} : vector<25x128xf32> to vector<1x128xf32>
    %106 = vector.shape_cast %105 : vector<1x128xf32> to vector<128xf32>
    %107 = vector.shape_cast %106 : vector<128xf32> to vector<1x1x1x128xf32>
    %108 = vector.broadcast %107 : vector<1x1x1x128xf32> to vector<2x14x14x128xf32>
    %109 = arith.mulf %104, %108 : vector<2x14x14x128xf32>
    %110 = arith.addf %103, %109 : vector<2x14x14x128xf32>
    %111 = vector.extract_strided_slice %82 {offsets = [0, 4, 0, 0], sizes = [2, 14, 14, 128], strides = [1, 1, 1, 1]} : vector<2x18x14x128xf32> to vector<2x14x14x128xf32>
    %112 = vector.extract_strided_slice %10 {offsets = [22, 0], sizes = [1, 128], strides = [1, 1]} : vector<25x128xf32> to vector<1x128xf32>
    %113 = vector.shape_cast %112 : vector<1x128xf32> to vector<128xf32>
    %114 = vector.shape_cast %113 : vector<128xf32> to vector<1x1x1x128xf32>
    %115 = vector.broadcast %114 : vector<1x1x1x128xf32> to vector<2x14x14x128xf32>
    %116 = arith.mulf %111, %115 : vector<2x14x14x128xf32>
    %117 = arith.addf %110, %116 : vector<2x14x14x128xf32>
    %c0_37 = arith.constant 0 : index
    %c0_38 = arith.constant 0 : index
    %c3 = arith.constant 3 : index
    %c0_39 = arith.constant 0 : index
    %118 = vector.load %arg6[%c0_37, %c0_38, %c3, %c0_39] : memref<2x18x18x128xf32, #tpu.memory_space<vmem>>, vector<2x18x14x128xf32>
    %119 = vector.extract_strided_slice %118 {offsets = [0, 0, 0, 0], sizes = [2, 14, 14, 128], strides = [1, 1, 1, 1]} : vector<2x18x14x128xf32> to vector<2x14x14x128xf32>
    %120 = vector.extract_strided_slice %10 {offsets = [3, 0], sizes = [1, 128], strides = [1, 1]} : vector<25x128xf32> to vector<1x128xf32>
    %121 = vector.shape_cast %120 : vector<1x128xf32> to vector<128xf32>
    %122 = vector.shape_cast %121 : vector<128xf32> to vector<1x1x1x128xf32>
    %123 = vector.broadcast %122 : vector<1x1x1x128xf32> to vector<2x14x14x128xf32>
    %124 = arith.mulf %119, %123 : vector<2x14x14x128xf32>
    %125 = arith.addf %117, %124 : vector<2x14x14x128xf32>
    %126 = vector.extract_strided_slice %118 {offsets = [0, 1, 0, 0], sizes = [2, 14, 14, 128], strides = [1, 1, 1, 1]} : vector<2x18x14x128xf32> to vector<2x14x14x128xf32>
    %127 = vector.extract_strided_slice %10 {offsets = [8, 0], sizes = [1, 128], strides = [1, 1]} : vector<25x128xf32> to vector<1x128xf32>
    %128 = vector.shape_cast %127 : vector<1x128xf32> to vector<128xf32>
    %129 = vector.shape_cast %128 : vector<128xf32> to vector<1x1x1x128xf32>
    %130 = vector.broadcast %129 : vector<1x1x1x128xf32> to vector<2x14x14x128xf32>
    %131 = arith.mulf %126, %130 : vector<2x14x14x128xf32>
    %132 = arith.addf %125, %131 : vector<2x14x14x128xf32>
    %133 = vector.extract_strided_slice %118 {offsets = [0, 2, 0, 0], sizes = [2, 14, 14, 128], strides = [1, 1, 1, 1]} : vector<2x18x14x128xf32> to vector<2x14x14x128xf32>
    %134 = vector.extract_strided_slice %10 {offsets = [13, 0], sizes = [1, 128], strides = [1, 1]} : vector<25x128xf32> to vector<1x128xf32>
    %135 = vector.shape_cast %134 : vector<1x128xf32> to vector<128xf32>
    %136 = vector.shape_cast %135 : vector<128xf32> to vector<1x1x1x128xf32>
    %137 = vector.broadcast %136 : vector<1x1x1x128xf32> to vector<2x14x14x128xf32>
    %138 = arith.mulf %133, %137 : vector<2x14x14x128xf32>
    %139 = arith.addf %132, %138 : vector<2x14x14x128xf32>
    %140 = vector.extract_strided_slice %118 {offsets = [0, 3, 0, 0], sizes = [2, 14, 14, 128], strides = [1, 1, 1, 1]} : vector<2x18x14x128xf32> to vector<2x14x14x128xf32>
    %141 = vector.extract_strided_slice %10 {offsets = [18, 0], sizes = [1, 128], strides = [1, 1]} : vector<25x128xf32> to vector<1x128xf32>
    %142 = vector.shape_cast %141 : vector<1x128xf32> to vector<128xf32>
    %143 = vector.shape_cast %142 : vector<128xf32> to vector<1x1x1x128xf32>
    %144 = vector.broadcast %143 : vector<1x1x1x128xf32> to vector<2x14x14x128xf32>
    %145 = arith.mulf %140, %144 : vector<2x14x14x128xf32>
    %146 = arith.addf %139, %145 : vector<2x14x14x128xf32>
    %147 = vector.extract_strided_slice %118 {offsets = [0, 4, 0, 0], sizes = [2, 14, 14, 128], strides = [1, 1, 1, 1]} : vector<2x18x14x128xf32> to vector<2x14x14x128xf32>
    %148 = vector.extract_strided_slice %10 {offsets = [23, 0], sizes = [1, 128], strides = [1, 1]} : vector<25x128xf32> to vector<1x128xf32>
    %149 = vector.shape_cast %148 : vector<1x128xf32> to vector<128xf32>
    %150 = vector.shape_cast %149 : vector<128xf32> to vector<1x1x1x128xf32>
    %151 = vector.broadcast %150 : vector<1x1x1x128xf32> to vector<2x14x14x128xf32>
    %152 = arith.mulf %147, %151 : vector<2x14x14x128xf32>
    %153 = arith.addf %146, %152 : vector<2x14x14x128xf32>
    %c0_40 = arith.constant 0 : index
    %c0_41 = arith.constant 0 : index
    %c4 = arith.constant 4 : index
    %c0_42 = arith.constant 0 : index
    %154 = vector.load %arg6[%c0_40, %c0_41, %c4, %c0_42] : memref<2x18x18x128xf32, #tpu.memory_space<vmem>>, vector<2x18x14x128xf32>
    %155 = vector.extract_strided_slice %154 {offsets = [0, 0, 0, 0], sizes = [2, 14, 14, 128], strides = [1, 1, 1, 1]} : vector<2x18x14x128xf32> to vector<2x14x14x128xf32>
    %156 = vector.extract_strided_slice %10 {offsets = [4, 0], sizes = [1, 128], strides = [1, 1]} : vector<25x128xf32> to vector<1x128xf32>
    %157 = vector.shape_cast %156 : vector<1x128xf32> to vector<128xf32>
    %158 = vector.shape_cast %157 : vector<128xf32> to vector<1x1x1x128xf32>
    %159 = vector.broadcast %158 : vector<1x1x1x128xf32> to vector<2x14x14x128xf32>
    %160 = arith.mulf %155, %159 : vector<2x14x14x128xf32>
    %161 = arith.addf %153, %160 : vector<2x14x14x128xf32>
    %162 = vector.extract_strided_slice %154 {offsets = [0, 1, 0, 0], sizes = [2, 14, 14, 128], strides = [1, 1, 1, 1]} : vector<2x18x14x128xf32> to vector<2x14x14x128xf32>
    %163 = vector.extract_strided_slice %10 {offsets = [9, 0], sizes = [1, 128], strides = [1, 1]} : vector<25x128xf32> to vector<1x128xf32>
    %164 = vector.shape_cast %163 : vector<1x128xf32> to vector<128xf32>
    %165 = vector.shape_cast %164 : vector<128xf32> to vector<1x1x1x128xf32>
    %166 = vector.broadcast %165 : vector<1x1x1x128xf32> to vector<2x14x14x128xf32>
    %167 = arith.mulf %162, %166 : vector<2x14x14x128xf32>
    %168 = arith.addf %161, %167 : vector<2x14x14x128xf32>
    %169 = vector.extract_strided_slice %154 {offsets = [0, 2, 0, 0], sizes = [2, 14, 14, 128], strides = [1, 1, 1, 1]} : vector<2x18x14x128xf32> to vector<2x14x14x128xf32>
    %170 = vector.extract_strided_slice %10 {offsets = [14, 0], sizes = [1, 128], strides = [1, 1]} : vector<25x128xf32> to vector<1x128xf32>
    %171 = vector.shape_cast %170 : vector<1x128xf32> to vector<128xf32>
    %172 = vector.shape_cast %171 : vector<128xf32> to vector<1x1x1x128xf32>
    %173 = vector.broadcast %172 : vector<1x1x1x128xf32> to vector<2x14x14x128xf32>
    %174 = arith.mulf %169, %173 : vector<2x14x14x128xf32>
    %175 = arith.addf %168, %174 : vector<2x14x14x128xf32>
    %176 = vector.extract_strided_slice %154 {offsets = [0, 3, 0, 0], sizes = [2, 14, 14, 128], strides = [1, 1, 1, 1]} : vector<2x18x14x128xf32> to vector<2x14x14x128xf32>
    %177 = vector.extract_strided_slice %10 {offsets = [19, 0], sizes = [1, 128], strides = [1, 1]} : vector<25x128xf32> to vector<1x128xf32>
    %178 = vector.shape_cast %177 : vector<1x128xf32> to vector<128xf32>
    %179 = vector.shape_cast %178 : vector<128xf32> to vector<1x1x1x128xf32>
    %180 = vector.broadcast %179 : vector<1x1x1x128xf32> to vector<2x14x14x128xf32>
    %181 = arith.mulf %176, %180 : vector<2x14x14x128xf32>
    %182 = arith.addf %175, %181 : vector<2x14x14x128xf32>
    %183 = vector.extract_strided_slice %154 {offsets = [0, 4, 0, 0], sizes = [2, 14, 14, 128], strides = [1, 1, 1, 1]} : vector<2x18x14x128xf32> to vector<2x14x14x128xf32>
    %184 = vector.extract_strided_slice %10 {offsets = [24, 0], sizes = [1, 128], strides = [1, 1]} : vector<25x128xf32> to vector<1x128xf32>
    %185 = vector.shape_cast %184 : vector<1x128xf32> to vector<128xf32>
    %186 = vector.shape_cast %185 : vector<128xf32> to vector<1x1x1x128xf32>
    %187 = vector.broadcast %186 : vector<1x1x1x128xf32> to vector<2x14x14x128xf32>
    %188 = arith.mulf %183, %187 : vector<2x14x14x128xf32>
    %189 = arith.addf %182, %188 : vector<2x14x14x128xf32>
    %cst_43 = arith.constant dense<0.000000e+00> : vector<128xf32>
    %190 = vector.multi_reduction <add>, %189, %cst_43 [0, 1, 2] : vector<2x14x14x128xf32> to vector<128xf32>
    %191 = vector.shape_cast %190 : vector<128xf32> to vector<1x1x1x128xf32>
    %192 = arith.mulf %189, %189 : vector<2x14x14x128xf32>
    %cst_44 = arith.constant dense<0.000000e+00> : vector<128xf32>
    %193 = vector.multi_reduction <add>, %192, %cst_44 [0, 1, 2] : vector<2x14x14x128xf32> to vector<128xf32>
    %194 = vector.shape_cast %193 : vector<128xf32> to vector<1x1x1x128xf32>
    %cst_45 = arith.constant 0.00255102036 : f32
    %195 = vector.broadcast %cst_45 : f32 to vector<1x1x1x128xf32>
    %196 = arith.mulf %191, %195 : vector<1x1x1x128xf32>
    %cst_46 = arith.constant 0.00255102036 : f32
    %197 = vector.broadcast %cst_46 : f32 to vector<1x1x1x128xf32>
    %198 = arith.mulf %194, %197 : vector<1x1x1x128xf32>
    %199 = arith.mulf %196, %196 : vector<1x1x1x128xf32>
    %200 = arith.subf %198, %199 : vector<1x1x1x128xf32>
    %cst_47 = arith.constant 0.000000e+00 : f32
    %201 = vector.broadcast %cst_47 : f32 to vector<1x1x1x128xf32>
    %202 = arith.maximumf %200, %201 : vector<1x1x1x128xf32>
    %cst_48 = arith.constant 1.000000e-03 : f32
    %203 = vector.broadcast %cst_48 : f32 to vector<1x1x1x128xf32>
    %204 = arith.addf %202, %203 : vector<1x1x1x128xf32>
    %205 = math.rsqrt %204 : vector<1x1x1x128xf32>
    %c0_49 = arith.constant 0 : index
    %c0_50 = arith.constant 0 : index
    %c0_51 = arith.constant 0 : index
    %c0_52 = arith.constant 0 : index
    %206 = vector.load %arg3[%c0_49, %c0_50, %c0_51, %c0_52] : memref<1x1x1x128xf32, #tpu.memory_space<vmem>>, vector<1x1x1x128xf32>
    %207 = arith.mulf %206, %205 : vector<1x1x1x128xf32>
    %c0_53 = arith.constant 0 : index
    %c0_54 = arith.constant 0 : index
    %c0_55 = arith.constant 0 : index
    %c0_56 = arith.constant 0 : index
    %208 = vector.load %arg4[%c0_53, %c0_54, %c0_55, %c0_56] : memref<1x1x1x128xf32, #tpu.memory_space<vmem>>, vector<1x1x1x128xf32>
    %209 = arith.mulf %196, %207 : vector<1x1x1x128xf32>
    %210 = arith.subf %208, %209 : vector<1x1x1x128xf32>
    %211 = vector.broadcast %207 : vector<1x1x1x128xf32> to vector<2x14x14x128xf32>
    %212 = arith.mulf %189, %211 : vector<2x14x14x128xf32>
    %213 = vector.broadcast %210 : vector<1x1x1x128xf32> to vector<2x14x14x128xf32>
    %214 = arith.addf %212, %213 : vector<2x14x14x128xf32>
    %c0_57 = arith.constant 0 : index
    %c0_58 = arith.constant 0 : index
    %c0_59 = arith.constant 0 : index
    %c0_60 = arith.constant 0 : index
    %215 = vector.load %arg5[%c0_57, %c0_58, %c0_59, %c0_60] : memref<2x14x14x128xf32, #tpu.memory_space<vmem>>, vector<2x14x14x128xf32>
    tpu.vector_store %arg5[%c0_57, %c0_58, %c0_59, %c0_60], %214 {strides = array<i32>} : memref<2x14x14x128xf32, #tpu.memory_space<vmem>>, vector<2x14x14x128xf32>,
    return
  }
  func.func @transform_0(%arg0: i32) -> (i32, i32, i32, i32) {
    %c0_i32 = arith.constant 0 : i32
    %c0_i32_0 = arith.constant 0 : i32
    %c0_i32_1 = arith.constant 0 : i32
    %c0_i32_2 = arith.constant 0 : i32
    return %c0_i32, %c0_i32_0, %c0_i32_1, %arg0 : i32, i32, i32, i32
  }
  func.func @transform_1(%arg0: i32) -> (i32, i32) {
    %c0_i32 = arith.constant 0 : i32
    %c0_i32_0 = arith.constant 0 : i32
    return %c0_i32, %arg0 : i32, i32
  }
  func.func @transform_2(%arg0: i32) -> (i32, i32, i32, i32) {
    %c0_i32 = arith.constant 0 : i32
    %c0_i32_0 = arith.constant 0 : i32
    %c0_i32_1 = arith.constant 0 : i32
    %c0_i32_2 = arith.constant 0 : i32
    return %c0_i32, %c0_i32_0, %c0_i32_1, %arg0 : i32, i32, i32, i32
  }
  func.func @transform_3(%arg0: i32) -> (i32, i32, i32, i32) {
    %c0_i32 = arith.constant 0 : i32
    %c0_i32_0 = arith.constant 0 : i32
    %c0_i32_1 = arith.constant 0 : i32
    %c0_i32_2 = arith.constant 0 : i32
    return %c0_i32, %c0_i32_0, %c0_i32_1, %arg0 : i32, i32, i32, i32
  }
  func.func @transform_4(%arg0: i32) -> (i32, i32, i32, i32) {
    %c0_i32 = arith.constant 0 : i32
    %c0_i32_0 = arith.constant 0 : i32
    %c0_i32_1 = arith.constant 0 : i32
    %c0_i32_2 = arith.constant 0 : i32
    return %c0_i32, %c0_i32_0, %c0_i32_1, %arg0 : i32, i32, i32, i32
  }
}

</mosaic_0001>

<llo_original>
// kernel: depthwise_conv_bn.1
$region0: #{depthwise_conv_bn.1}
  #allocation0 [shape = 'u32[]', space=smem, size = 0x4, offset = 0x4, fixed_abs, tag = 'smem constant byte address 0x4 - core index']
  #allocation1 [shape = 'u32[72,128]{1,0:T(1,128)}', space=vmem, size = 0x9000, scoped, tag = 'internal scratch']
  #allocation2 [shape = 'f32[2,18,18,128]{3,2,1,0:T(8,128)}', space=vmem, size = 0x6c000, scoped, tag = 'scratch operand']
  %s0 = inlined_call_operand.vmem [shape: f32[2,14,14,256], index: 0, kind: input, shape index: {}]
  %s1 = inlined_call_operand.vmem [shape: f32[25,256], index: 1, kind: input, shape index: {}]
  %s2 = inlined_call_operand.vmem [shape: f32[1,1,1,256], index: 2, kind: input, shape index: {}]
  %s3 = inlined_call_operand.vmem [shape: f32[1,1,1,256], index: 3, kind: input, shape index: {}]
  %s4 = inlined_call_operand.vmem [shape: f32[2,14,14,256], index: 4, kind: output, shape index: {}]
  %s5 = sld [smem:[#allocation0]]
  $region159: #{depthwise_conv_bn.1} parent=0
    _
  %s7 = ssub.s32 1, %s5
  %s8 = scalar_select 0, %s7, %s5
  $region1: #{depthwise_conv_bn.1} parent=0
    #allocation3 [shape = 'u8[458752]{0}', space=vmem, size = 0x70000, scoped, tag = 'input window, operand 0']
    #allocation4 [shape = 'u8[32768]{0}', space=vmem, size = 0x8000, scoped, tag = 'input window, operand 1']
    #allocation5 [shape = 'u8[458752]{0}', space=vmem, size = 0x70000, scoped, tag = 'output window, operand 0']
    loop: start=0, step=1, limit=4
    $region2: #{depthwise_conv_bn.1} parent=1 // loop_pre_header
      _
    $region3: #{depthwise_conv_bn.1} parent=1 // loop_header
      %s10 = sphi 0, %s14
      %p11 = scmp.ge.s32.totalorder %s10, 4
      %s20 = sphi 0, %s22
      %s23 = sphi 0, %s20
      %s24 = sphi 0, %s23
      %s40 = sphi 0, %s24
      %s46 = sphi 0, %s48
      %s49 = sphi 0, %s46
      %s50 = sphi 0, %s49
      %s66 = sphi 0, %s50
      %s72 = sphi 0, %s74
      %s75 = sphi 0, %s72
      %s76 = sphi 0, %s75
      %s92 = sphi 0, %s76
      %s98 = sphi 0, %s100
      %s101 = sphi 0, %s98
      %s102 = sphi 0, %s101
      %s118 = sphi 0, %s102
      %s124 = sphi 0, %s126
      %s127 = sphi 0, %s124
      %s128 = sphi 0, %s127
      %s144 = sphi 0, %s128
    $region4: #{depthwise_conv_bn.1} parent=1 // loop_header_branch
      %13 = sbr.rel (%p11) target = $region8
    $region5: #{depthwise_conv_bn.1} parent=1 // loop_body
      %s15 = ssub.s32 %s10, 1
      %s16 = ssub.s32 %s10, 2
      %s17 = sadd.s32 %s10, 1
      %s18 = ssub.s32 %s10, %s17
      %p19 = scmp.eq.s32.totalorder %s18, 0
      %s21 = sadd.s32 %s20, 1
      %s22 = scalar_select %p19, %s20, %s21
      %p25 = pneg %p19
      %p26 = scmp.eq.s32.totalorder %s10, 1
      %p27 = por %p25, %p26
      %p28 = scmp.ne.s32.totalorder %s20, %s23
      %p29 = scmp.eq.s32.totalorder %s10, 0
      %p30 = por %p28, %p29
      %p31 = scmp.ne.s32.totalorder %s20, %s23
      %p32 = scmp.eq.s32.totalorder %s15, 1
      %p33 = por %p31, %p32
      %p34 = scmp.ne.s32.totalorder %s23, %s24
      %p35 = scmp.eq.s32.totalorder %s15, 0
      %p36 = por %p34, %p35
      %p37 = scmp.ne.s32.totalorder %s23, %s24
      %p38 = scmp.eq.s32.totalorder %s16, 1
      %p39 = por %p37, %p38
      %p41 = scmp.ne.s32.totalorder %s24, %s40
      %p42 = scmp.eq.s32.totalorder %s16, 0
      %p43 = por %p41, %p42
      %s44 = ssub.s32 %s10, %s17
      %p45 = scmp.eq.s32.totalorder %s44, 0
      %s47 = sadd.s32 %s46, 1
      %s48 = scalar_select %p45, %s46, %s47
      %p51 = pneg %p45
      %p52 = scmp.eq.s32.totalorder %s10, 1
      %p53 = por %p51, %p52
      %p54 = scmp.ne.s32.totalorder %s46, %s49
      %p55 = scmp.eq.s32.totalorder %s10, 0
      %p56 = por %p54, %p55
      %p57 = scmp.ne.s32.totalorder %s46, %s49
      %p58 = scmp.eq.s32.totalorder %s15, 1
      %p59 = por %p57, %p58
      %p60 = scmp.ne.s32.totalorder %s49, %s50
      %p61 = scmp.eq.s32.totalorder %s15, 0
      %p62 = por %p60, %p61
      %p63 = scmp.ne.s32.totalorder %s49, %s50
      %p64 = scmp.eq.s32.totalorder %s16, 1
      %p65 = por %p63, %p64
      %p67 = scmp.ne.s32.totalorder %s50, %s66
      %p68 = scmp.eq.s32.totalorder %s16, 0
      %p69 = por %p67, %p68
      %s70 = ssub.s32 %s10, %s17
      %p71 = scmp.eq.s32.totalorder %s70, 0
      %s73 = sadd.s32 %s72, 1
      %s74 = scalar_select %p71, %s72, %s73
      %p77 = pneg %p71
      %p78 = scmp.eq.s32.totalorder %s10, 1
      %p79 = por %p77, %p78
      %p80 = scmp.ne.s32.totalorder %s72, %s75
      %p81 = scmp.eq.s32.totalorder %s10, 0
      %p82 = por %p80, %p81
      %p83 = scmp.ne.s32.totalorder %s72, %s75
      %p84 = scmp.eq.s32.totalorder %s15, 1
      %p85 = por %p83, %p84
      %p86 = scmp.ne.s32.totalorder %s75, %s76
      %p87 = scmp.eq.s32.totalorder %s15, 0
      %p88 = por %p86, %p87
      %p89 = scmp.ne.s32.totalorder %s75, %s76
      %p90 = scmp.eq.s32.totalorder %s16, 1
      %p91 = por %p89, %p90
      %p93 = scmp.ne.s32.totalorder %s76, %s92
      %p94 = scmp.eq.s32.totalorder %s16, 0
      %p95 = por %p93, %p94
      %s96 = ssub.s32 %s10, %s17
      %p97 = scmp.eq.s32.totalorder %s96, 0
      %s99 = sadd.s32 %s98, 1
      %s100 = scalar_select %p97, %s98, %s99
      %p103 = pneg %p97
      %p104 = scmp.eq.s32.totalorder %s10, 1
      %p105 = por %p103, %p104
      %p106 = scmp.ne.s32.totalorder %s98, %s101
      %p107 = scmp.eq.s32.totalorder %s10, 0
      %p108 = por %p106, %p107
      %p109 = scmp.ne.s32.totalorder %s98, %s101
      %p110 = scmp.eq.s32.totalorder %s15, 1
      %p111 = por %p109, %p110
      %p112 = scmp.ne.s32.totalorder %s101, %s102
      %p113 = scmp.eq.s32.totalorder %s15, 0
      %p114 = por %p112, %p113
      %p115 = scmp.ne.s32.totalorder %s101, %s102
      %p116 = scmp.eq.s32.totalorder %s16, 1
      %p117 = por %p115, %p116
      %p119 = scmp.ne.s32.totalorder %s102, %s118
      %p120 = scmp.eq.s32.totalorder %s16, 0
      %p121 = por %p119, %p120
      %s122 = ssub.s32 %s10, %s17
      %p123 = scmp.eq.s32.totalorder %s122, 0
      %s125 = sadd.s32 %s124, 1
      %s126 = scalar_select %p123, %s124, %s125
      %p129 = pneg %p123
      %p130 = scmp.eq.s32.totalorder %s10, 1
      %p131 = por %p129, %p130
      %p132 = scmp.ne.s32.totalorder %s124, %s127
      %p133 = scmp.eq.s32.totalorder %s10, 0
      %p134 = por %p132, %p133
      %p135 = scmp.ne.s32.totalorder %s124, %s127
      %p136 = scmp.eq.s32.totalorder %s15, 1
      %p137 = por %p135, %p136
      %p138 = scmp.ne.s32.totalorder %s127, %s128
      %p139 = scmp.eq.s32.totalorder %s15, 0
      %p140 = por %p138, %p139
      %p141 = scmp.ne.s32.totalorder %s127, %s128
      %p142 = scmp.eq.s32.totalorder %s16, 1
      %p143 = por %p141, %p142
      %p145 = scmp.ne.s32.totalorder %s128, %s144
      %p146 = scmp.eq.s32.totalorder %s16, 0
      %p147 = por %p145, %p146
      %p148 = scmp.le.s32.totalorder 1, %s10
      %p149 = scmp.lt.s32.totalorder %s10, 3
      %p150 = pnand %p148, %p149
      %p151 = pneg %p150
      // Predicated region
      $region9: #{depthwise_conv_bn.1} parent=5 // pred_check
        _
      $region10: #{depthwise_conv_bn.1} parent=5 // pred_check_branch
        %153 = sbr.rel (%p150) target = $region12
      $region11: #{depthwise_conv_bn.1} parent=5 // pred_region
        %s154 = ssub.s32 %s10, 1
      $region12: #{depthwise_conv_bn.1} parent=5 // pred_fallthru
        _
      %p155 = scmp.lt.s32.totalorder %s10, 2
      // Predicated region
      $region13: #{depthwise_conv_bn.1} parent=5 // pred_check
        %p156 = pneg %p155
      $region14: #{depthwise_conv_bn.1} parent=5 // pred_check_branch
        %158 = sbr.rel (%p156) target = $region16
      $region15: #{depthwise_conv_bn.1} parent=5 // pred_region
        // Predicated region
        $region17: #{depthwise_conv_bn.1} parent=15 // pred_check
          %p159 = pneg %p30
        $region18: #{depthwise_conv_bn.1} parent=15 // pred_check_branch
          %161 = sbr.rel (%p159) target = $region20
        $region19: #{depthwise_conv_bn.1} parent=15 // pred_region
          %s162 = sand.u32 %s20, 1
          %s163 = sand.u32 %s20, 1
          %s164 = smul.addr %s163, 448
          %s165 = scalar_lea.vmem [#allocation3], %s164
          %s166 = smul.addr %s10, 8
          %s167 = scalar_lea.vmem %s0, %s166
          // Predicated region
          $region21: #{depthwise_conv_bn.1} parent=19 // pred_check
            _
          $region22: #{depthwise_conv_bn.1} parent=19 // pred_check_branch
            %169 = sbr.rel (0) target = $region24
          $region23: #{depthwise_conv_bn.1} parent=19 // pred_region
            // Predicated region
            $region25: #{depthwise_conv_bn.1} parent=23 // pred_check
              _
            $region26: #{depthwise_conv_bn.1} parent=23 // pred_check_branch
              %171 = sbr.rel (0) target = $region28
            $region27: #{depthwise_conv_bn.1} parent=23 // pred_region
              // Predicated region
              $region40: #{depthwise_conv_bn.1} parent=27 // pred_check
                _
              $region41: #{depthwise_conv_bn.1} parent=27 // pred_check_branch
                %297 = sbr.rel (0) target = $region43
              $region42: #{depthwise_conv_bn.1} parent=27 // pred_region
                loop: start=0, step=1, limit=1
                $region44: #{depthwise_conv_bn.1} parent=42 // loop_pre_header
                  _
                $region45: #{depthwise_conv_bn.1} parent=42 // loop_header
                  %s299 = sphi 0, %s303
                  %p300 = scmp.ge.s32.totalorder %s299, 1
                  %s304 = sphi %s167, %s167
                  %s305 = sphi %s165, %s165
                $region46: #{depthwise_conv_bn.1} parent=42 // loop_header_branch
                  %302 = sbr.rel (%p300) target = $region50
                $region47: #{depthwise_conv_bn.1} parent=42 // loop_body
                  %v306 = vld [vmem:[%s304] sm:$0xff]
                  %307 = vst [vmem:[%s305] sm:$0xff] %v306
                  %v308 = vld [vmem:[%s304 + $0x10] sm:$0xff]
                  %309 = vst [vmem:[%s305 + $0x8] sm:$0xff] %v308
                  %v310 = vld [vmem:[%s304 + $0x20] sm:$0xff]
                  %311 = vst [vmem:[%s305 + $0x10] sm:$0xff] %v310
                  %v312 = vld [vmem:[%s304 + $0x30] sm:$0xff]
                  %313 = vst [vmem:[%s305 + $0x18] sm:$0xff] %v312
                  %v314 = vld [vmem:[%s304 + $0x40] sm:$0xff]
                  %315 = vst [vmem:[%s305 + $0x20] sm:$0xff] %v314
                  %v316 = vld [vmem:[%s304 + $0x50] sm:$0xff]
                  %317 = vst [vmem:[%s305 + $0x28] sm:$0xff] %v316
                  %v318 = vld [vmem:[%s304 + $0x60] sm:$0xff]
                  %319 = vst [vmem:[%s305 + $0x30] sm:$0xff] %v318
                  %v320 = vld [vmem:[%s304 + $0x70] sm:$0xff]
                  %321 = vst [vmem:[%s305 + $0x38] sm:$0xff] %v320
                  %v322 = vld [vmem:[%s304 + $0x80] sm:$0xff]
                  %323 = vst [vmem:[%s305 + $0x40] sm:$0xff] %v322
                  %v324 = vld [vmem:[%s304 + $0x90] sm:$0xff]
                  %325 = vst [vmem:[%s305 + $0x48] sm:$0xff] %v324
                  %v326 = vld [vmem:[%s304 + $0xa0] sm:$0xff]
                  %327 = vst [vmem:[%s305 + $0x50] sm:$0xff] %v326
                  %v328 = vld [vmem:[%s304 + $0xb0] sm:$0xff]
                  %329 = vst [vmem:[%s305 + $0x58] sm:$0xff] %v328
                  %v330 = vld [vmem:[%s304 + $0xc0] sm:$0xff]
                  %331 = vst [vmem:[%s305 + $0x60] sm:$0xff] %v330
                  %v332 = vld [vmem:[%s304 + $0xd0] sm:$0xff]
                  %333 = vst [vmem:[%s305 + $0x68] sm:$0xff] %v332
                  %v334 = vld [vmem:[%s304 + $0xe0] sm:$0xff]
                  %335 = vst [vmem:[%s305 + $0x70] sm:$0xff] %v334
                  %v336 = vld [vmem:[%s304 + $0xf0] sm:$0xff]
                  %337 = vst [vmem:[%s305 + $0x78] sm:$0xff] %v336
                  %v338 = vld [vmem:[%s304 + $0x100] sm:$0xff]
                  %339 = vst [vmem:[%s305 + $0x80] sm:$0xff] %v338
                  %v340 = vld [vmem:[%s304 + $0x110] sm:$0xff]
                  %341 = vst [vmem:[%s305 + $0x88] sm:$0xff] %v340
                  %v342 = vld [vmem:[%s304 + $0x120] sm:$0xff]
                  %343 = vst [vmem:[%s305 + $0x90] sm:$0xff] %v342
                  %v344 = vld [vmem:[%s304 + $0x130] sm:$0xff]
                  %345 = vst [vmem:[%s305 + $0x98] sm:$0xff] %v344
                  %v346 = vld [vmem:[%s304 + $0x140] sm:$0xff]
                  %347 = vst [vmem:[%s305 + $0xa0] sm:$0xff] %v346
                  %v348 = vld [vmem:[%s304 + $0x150] sm:$0xff]
                  %349 = vst [vmem:[%s305 + $0xa8] sm:$0xff] %v348
                  %v350 = vld [vmem:[%s304 + $0x160] sm:$0xff]
                  %351 = vst [vmem:[%s305 + $0xb0] sm:$0xff] %v350
                  %v352 = vld [vmem:[%s304 + $0x170] sm:$0xff]
                  %353 = vst [vmem:[%s305 + $0xb8] sm:$0xff] %v352
                  %v354 = vld [vmem:[%s304 + $0x180] sm:$0xff]
                  %355 = vst [vmem:[%s305 + $0xc0] sm:$0xff] %v354
                  %v356 = vld [vmem:[%s304 + $0x190] sm:$0xff]
                  %357 = vst [vmem:[%s305 + $0xc8] sm:$0xff] %v356
                  %v358 = vld [vmem:[%s304 + $0x1a0] sm:$0xff]
                  %359 = vst [vmem:[%s305 + $0xd0] sm:$0xff] %v358
                  %v360 = vld [vmem:[%s304 + $0x1b0] sm:$0xff]
                  %361 = vst [vmem:[%s305 + $0xd8] sm:$0xff] %v360
                  %v362 = vld [vmem:[%s304 + $0x1c0] sm:$0xff]
                  %363 = vst [vmem:[%s305 + $0xe0] sm:$0xff] %v362
                  %v364 = vld [vmem:[%s304 + $0x1d0] sm:$0xff]
                  %365 = vst [vmem:[%s305 + $0xe8] sm:$0xff] %v364
                  %v366 = vld [vmem:[%s304 + $0x1e0] sm:$0xff]
                  %367 = vst [vmem:[%s305 + $0xf0] sm:$0xff] %v366
                  %v368 = vld [vmem:[%s304 + $0x1f0] sm:$0xff]
                  %369 = vst [vmem:[%s305 + $0xf8] sm:$0xff] %v368
                  %v370 = vld [vmem:[%s304 + $0x200] sm:$0xff]
                  %371 = vst [vmem:[%s305 + $0x100] sm:$0xff] %v370
                  %v372 = vld [vmem:[%s304 + $0x210] sm:$0xff]
                  %373 = vst [vmem:[%s305 + $0x108] sm:$0xff] %v372
                  %v374 = vld [vmem:[%s304 + $0x220] sm:$0xff]
                  %375 = vst [vmem:[%s305 + $0x110] sm:$0xff] %v374
                  %v376 = vld [vmem:[%s304 + $0x230] sm:$0xff]
                  %377 = vst [vmem:[%s305 + $0x118] sm:$0xff] %v376
                  %v378 = vld [vmem:[%s304 + $0x240] sm:$0xff]
                  %379 = vst [vmem:[%s305 + $0x120] sm:$0xff] %v378
                  %v380 = vld [vmem:[%s304 + $0x250] sm:$0xff]
                  %381 = vst [vmem:[%s305 + $0x128] sm:$0xff] %v380
                  %v382 = vld [vmem:[%s304 + $0x260] sm:$0xff]
                  %383 = vst [vmem:[%s305 + $0x130] sm:$0xff] %v382
                  %v384 = vld [vmem:[%s304 + $0x270] sm:$0xff]
                  %385 = vst [vmem:[%s305 + $0x138] sm:$0xff] %v384
                  %v386 = vld [vmem:[%s304 + $0x280] sm:$0xff]
                  %387 = vst [vmem:[%s305 + $0x140] sm:$0xff] %v386
                  %v388 = vld [vmem:[%s304 + $0x290] sm:$0xff]
                  %389 = vst [vmem:[%s305 + $0x148] sm:$0xff] %v388
                  %v390 = vld [vmem:[%s304 + $0x2a0] sm:$0xff]
                  %391 = vst [vmem:[%s305 + $0x150] sm:$0xff] %v390
                  %v392 = vld [vmem:[%s304 + $0x2b0] sm:$0xff]
                  %393 = vst [vmem:[%s305 + $0x158] sm:$0xff] %v392
                  %v394 = vld [vmem:[%s304 + $0x2c0] sm:$0xff]
                  %395 = vst [vmem:[%s305 + $0x160] sm:$0xff] %v394
                  %v396 = vld [vmem:[%s304 + $0x2d0] sm:$0xff]
                  %397 = vst [vmem:[%s305 + $0x168] sm:$0xff] %v396
                  %v398 = vld [vmem:[%s304 + $0x2e0] sm:$0xff]
                  %399 = vst [vmem:[%s305 + $0x170] sm:$0xff] %v398
                  %v400 = vld [vmem:[%s304 + $0x2f0] sm:$0xff]
                  %401 = vst [vmem:[%s305 + $0x178] sm:$0xff] %v400
                  %v402 = vld [vmem:[%s304 + $0x300] sm:$0xff]
                  %403 = vst [vmem:[%s305 + $0x180] sm:$0xff] %v402
                  %v404 = vld [vmem:[%s304 + $0x310] sm:$0xff]
                  %405 = vst [vmem:[%s305 + $0x188] sm:$0xff] %v404
                  %v406 = vld [vmem:[%s304 + $0x320] sm:$0xff]
                  %407 = vst [vmem:[%s305 + $0x190] sm:$0xff] %v406
                  %v408 = vld [vmem:[%s304 + $0x330] sm:$0xff]
                  %409 = vst [vmem:[%s305 + $0x198] sm:$0xff] %v408
                  %v410 = vld [vmem:[%s304 + $0x340] sm:$0xff]
                  %411 = vst [vmem:[%s305 + $0x1a0] sm:$0xff] %v410
                  %v412 = vld [vmem:[%s304 + $0x350] sm:$0xff]
                  %413 = vst [vmem:[%s305 + $0x1a8] sm:$0xff] %v412
                  %v414 = vld [vmem:[%s304 + $0x360] sm:$0xff]
                  %415 = vst [vmem:[%s305 + $0x1b0] sm:$0xff] %v414
                  %v416 = vld [vmem:[%s304 + $0x370] sm:$0xff]
                  %417 = vst [vmem:[%s305 + $0x1b8] sm:$0xff] %v416
                $region48: #{depthwise_conv_bn.1} parent=42 // loop_footer
                  %s303 = sadd.s32 1, %s299
                $region49: #{depthwise_conv_bn.1} parent=42 // loop_footer_branch
                  %298 = sbr.rel target = $region45
                $region50: #{depthwise_conv_bn.1} parent=42 // loop_exit
                  _
              $region43: #{depthwise_conv_bn.1} parent=27 // pred_fallthru
                _
              // Predicated region
              $region51: #{depthwise_conv_bn.1} parent=27 // pred_check
                _
              $region52: #{depthwise_conv_bn.1} parent=27 // pred_check_branch
                %419 = sbr.rel target = $region54
              $region53: #{depthwise_conv_bn.1} parent=27 // pred_region
                _
              $region54: #{depthwise_conv_bn.1} parent=27 // pred_fallthru
                _
            $region28: #{depthwise_conv_bn.1} parent=23 // pred_fallthru
              _
            // Predicated region
            $region29: #{depthwise_conv_bn.1} parent=23 // pred_check
              _
            $region30: #{depthwise_conv_bn.1} parent=23 // pred_check_branch
              %173 = sbr.rel target = $region32
            $region31: #{depthwise_conv_bn.1} parent=23 // pred_region
              %s175 = ssub.s32 256, 1
              loop: start=0, step=1, limit=1
              $region33: #{depthwise_conv_bn.1} parent=31 // loop_pre_header
                _
              $region34: #{depthwise_conv_bn.1} parent=31 // loop_header
                %s177 = sphi 0, %s181
                %p178 = scmp.ge.s32.totalorder %s177, 1
                %s182 = sphi %s167, %s167
                %s183 = sphi %s165, %s165
              $region35: #{depthwise_conv_bn.1} parent=31 // loop_header_branch
                %180 = sbr.rel (%p178) target = $region39
              $region36: #{depthwise_conv_bn.1} parent=31 // loop_body
                %v184 = vld [vmem:[%s182] sm:%s175]
                %185 = vst [vmem:[%s183] sm:%s175] %v184
                %v186 = vld [vmem:[%s182 + $0x10] sm:%s175]
                %187 = vst [vmem:[%s183 + $0x8] sm:%s175] %v186
                %v188 = vld [vmem:[%s182 + $0x20] sm:%s175]
                %189 = vst [vmem:[%s183 + $0x10] sm:%s175] %v188
                %v190 = vld [vmem:[%s182 + $0x30] sm:%s175]
                %191 = vst [vmem:[%s183 + $0x18] sm:%s175] %v190
                %v192 = vld [vmem:[%s182 + $0x40] sm:%s175]
                %193 = vst [vmem:[%s183 + $0x20] sm:%s175] %v192
                %v194 = vld [vmem:[%s182 + $0x50] sm:%s175]
                %195 = vst [vmem:[%s183 + $0x28] sm:%s175] %v194
                %v196 = vld [vmem:[%s182 + $0x60] sm:%s175]
                %197 = vst [vmem:[%s183 + $0x30] sm:%s175] %v196
                %v198 = vld [vmem:[%s182 + $0x70] sm:%s175]
                %199 = vst [vmem:[%s183 + $0x38] sm:%s175] %v198
                %v200 = vld [vmem:[%s182 + $0x80] sm:%s175]
                %201 = vst [vmem:[%s183 + $0x40] sm:%s175] %v200
                %v202 = vld [vmem:[%s182 + $0x90] sm:%s175]
                %203 = vst [vmem:[%s183 + $0x48] sm:%s175] %v202
                %v204 = vld [vmem:[%s182 + $0xa0] sm:%s175]
                %205 = vst [vmem:[%s183 + $0x50] sm:%s175] %v204
                %v206 = vld [vmem:[%s182 + $0xb0] sm:%s175]
                %207 = vst [vmem:[%s183 + $0x58] sm:%s175] %v206
                %v208 = vld [vmem:[%s182 + $0xc0] sm:%s175]
                %209 = vst [vmem:[%s183 + $0x60] sm:%s175] %v208
                %v210 = vld [vmem:[%s182 + $0xd0] sm:%s175]
                %211 = vst [vmem:[%s183 + $0x68] sm:%s175] %v210
                %v212 = vld [vmem:[%s182 + $0xe0] sm:%s175]
                %213 = vst [vmem:[%s183 + $0x70] sm:%s175] %v212
                %v214 = vld [vmem:[%s182 + $0xf0] sm:%s175]
                %215 = vst [vmem:[%s183 + $0x78] sm:%s175] %v214
                %v216 = vld [vmem:[%s182 + $0x100] sm:%s175]
                %217 = vst [vmem:[%s183 + $0x80] sm:%s175] %v216
                %v218 = vld [vmem:[%s182 + $0x110] sm:%s175]
                %219 = vst [vmem:[%s183 + $0x88] sm:%s175] %v218
                %v220 = vld [vmem:[%s182 + $0x120] sm:%s175]
                %221 = vst [vmem:[%s183 + $0x90] sm:%s175] %v220
                %v222 = vld [vmem:[%s182 + $0x130] sm:%s175]
                %223 = vst [vmem:[%s183 + $0x98] sm:%s175] %v222
                %v224 = vld [vmem:[%s182 + $0x140] sm:%s175]
                %225 = vst [vmem:[%s183 + $0xa0] sm:%s175] %v224
                %v226 = vld [vmem:[%s182 + $0x150] sm:%s175]
                %227 = vst [vmem:[%s183 + $0xa8] sm:%s175] %v226
                %v228 = vld [vmem:[%s182 + $0x160] sm:%s175]
                %229 = vst [vmem:[%s183 + $0xb0] sm:%s175] %v228
                %v230 = vld [vmem:[%s182 + $0x170] sm:%s175]
                %231 = vst [vmem:[%s183 + $0xb8] sm:%s175] %v230
                %v232 = vld [vmem:[%s182 + $0x180] sm:%s175]
                %233 = vst [vmem:[%s183 + $0xc0] sm:%s175] %v232
                %v234 = vld [vmem:[%s182 + $0x190] sm:%s175]
                %235 = vst [vmem:[%s183 + $0xc8] sm:%s175] %v234
                %v236 = vld [vmem:[%s182 + $0x1a0] sm:%s175]
                %237 = vst [vmem:[%s183 + $0xd0] sm:%s175] %v236
                %v238 = vld [vmem:[%s182 + $0x1b0] sm:%s175]
                %239 = vst [vmem:[%s183 + $0xd8] sm:%s175] %v238
                %v240 = vld [vmem:[%s182 + $0x1c0] sm:%s175]
                %241 = vst [vmem:[%s183 + $0xe0] sm:%s175] %v240
                %v242 = vld [vmem:[%s182 + $0x1d0] sm:%s175]
                %243 = vst [vmem:[%s183 + $0xe8] sm:%s175] %v242
                %v244 = vld [vmem:[%s182 + $0x1e0] sm:%s175]
                %245 = vst [vmem:[%s183 + $0xf0] sm:%s175] %v244
                %v246 = vld [vmem:[%s182 + $0x1f0] sm:%s175]
                %247 = vst [vmem:[%s183 + $0xf8] sm:%s175] %v246
                %v248 = vld [vmem:[%s182 + $0x200] sm:%s175]
                %249 = vst [vmem:[%s183 + $0x100] sm:%s175] %v248
                %v250 = vld [vmem:[%s182 + $0x210] sm:%s175]
                %251 = vst [vmem:[%s183 + $0x108] sm:%s175] %v250
                %v252 = vld [vmem:[%s182 + $0x220] sm:%s175]
                %253 = vst [vmem:[%s183 + $0x110] sm:%s175] %v252
                %v254 = vld [vmem:[%s182 + $0x230] sm:%s175]
                %255 = vst [vmem:[%s183 + $0x118] sm:%s175] %v254
                %v256 = vld [vmem:[%s182 + $0x240] sm:%s175]
                %257 = vst [vmem:[%s183 + $0x120] sm:%s175] %v256
                %v258 = vld [vmem:[%s182 + $0x250] sm:%s175]
                %259 = vst [vmem:[%s183 + $0x128] sm:%s175] %v258
                %v260 = vld [vmem:[%s182 + $0x260] sm:%s175]
                %261 = vst [vmem:[%s183 + $0x130] sm:%s175] %v260
                %v262 = vld [vmem:[%s182 + $0x270] sm:%s175]
                %263 = vst [vmem:[%s183 + $0x138] sm:%s175] %v262
                %v264 = vld [vmem:[%s182 + $0x280] sm:%s175]
                %265 = vst [vmem:[%s183 + $0x140] sm:%s175] %v264
                %v266 = vld [vmem:[%s182 + $0x290] sm:%s175]
                %267 = vst [vmem:[%s183 + $0x148] sm:%s175] %v266
                %v268 = vld [vmem:[%s182 + $0x2a0] sm:%s175]
                %269 = vst [vmem:[%s183 + $0x150] sm:%s175] %v268
                %v270 = vld [vmem:[%s182 + $0x2b0] sm:%s175]
                %271 = vst [vmem:[%s183 + $0x158] sm:%s175] %v270
                %v272 = vld [vmem:[%s182 + $0x2c0] sm:%s175]
                %273 = vst [vmem:[%s183 + $0x160] sm:%s175] %v272
                %v274 = vld [vmem:[%s182 + $0x2d0] sm:%s175]
                %275 = vst [vmem:[%s183 + $0x168] sm:%s175] %v274
                %v276 = vld [vmem:[%s182 + $0x2e0] sm:%s175]
                %277 = vst [vmem:[%s183 + $0x170] sm:%s175] %v276
                %v278 = vld [vmem:[%s182 + $0x2f0] sm:%s175]
                %279 = vst [vmem:[%s183 + $0x178] sm:%s175] %v278
                %v280 = vld [vmem:[%s182 + $0x300] sm:%s175]
                %281 = vst [vmem:[%s183 + $0x180] sm:%s175] %v280
                %v282 = vld [vmem:[%s182 + $0x310] sm:%s175]
                %283 = vst [vmem:[%s183 + $0x188] sm:%s175] %v282
                %v284 = vld [vmem:[%s182 + $0x320] sm:%s175]
                %285 = vst [vmem:[%s183 + $0x190] sm:%s175] %v284
                %v286 = vld [vmem:[%s182 + $0x330] sm:%s175]
                %287 = vst [vmem:[%s183 + $0x198] sm:%s175] %v286
                %v288 = vld [vmem:[%s182 + $0x340] sm:%s175]
                %289 = vst [vmem:[%s183 + $0x1a0] sm:%s175] %v288
                %v290 = vld [vmem:[%s182 + $0x350] sm:%s175]
                %291 = vst [vmem:[%s183 + $0x1a8] sm:%s175] %v290
                %v292 = vld [vmem:[%s182 + $0x360] sm:%s175]
                %293 = vst [vmem:[%s183 + $0x1b0] sm:%s175] %v292
                %v294 = vld [vmem:[%s182 + $0x370] sm:%s175]
                %295 = vst [vmem:[%s183 + $0x1b8] sm:%s175] %v294
              $region37: #{depthwise_conv_bn.1} parent=31 // loop_footer
                %s181 = sadd.s32 1, %s177
              $region38: #{depthwise_conv_bn.1} parent=31 // loop_footer_branch
                %176 = sbr.rel target = $region34
              $region39: #{depthwise_conv_bn.1} parent=31 // loop_exit
                _
            $region32: #{depthwise_conv_bn.1} parent=23 // pred_fallthru
              _
          $region24: #{depthwise_conv_bn.1} parent=19 // pred_fallthru
            _
          %420 = vnop
        $region20: #{depthwise_conv_bn.1} parent=15 // pred_fallthru
          _
        // Predicated region
        $region55: #{depthwise_conv_bn.1} parent=15 // pred_check
          %p421 = pneg %p56
        $region56: #{depthwise_conv_bn.1} parent=15 // pred_check_branch
          %423 = sbr.rel (%p421) target = $region58
        $region57: #{depthwise_conv_bn.1} parent=15 // pred_region
          %s424 = sand.u32 %s46, 1
          %s425 = sand.u32 %s46, 1
          %s426 = smul.addr %s425, 32
          %s427 = scalar_lea.vmem [#allocation4], %s426
          %s428 = smul.addr %s10, 8
          %s429 = scalar_lea.vmem %s1, %s428
          // Predicated region
          $region59: #{depthwise_conv_bn.1} parent=57 // pred_check
            _
          $region60: #{depthwise_conv_bn.1} parent=57 // pred_check_branch
            %431 = sbr.rel (0) target = $region62
          $region61: #{depthwise_conv_bn.1} parent=57 // pred_region
            // Predicated region
            $region63: #{depthwise_conv_bn.1} parent=61 // pred_check
              _
            $region64: #{depthwise_conv_bn.1} parent=61 // pred_check_branch
              %433 = sbr.rel (0) target = $region66
            $region65: #{depthwise_conv_bn.1} parent=61 // pred_region
              // Predicated region
              $region78: #{depthwise_conv_bn.1} parent=65 // pred_check
                _
              $region79: #{depthwise_conv_bn.1} parent=65 // pred_check_branch
                %455 = sbr.rel (0) target = $region81
              $region80: #{depthwise_conv_bn.1} parent=65 // pred_region
                loop: start=0, step=1, limit=1
                $region82: #{depthwise_conv_bn.1} parent=80 // loop_pre_header
                  _
                $region83: #{depthwise_conv_bn.1} parent=80 // loop_header
                  %s457 = sphi 0, %s461
                  %p458 = scmp.ge.s32.totalorder %s457, 1
                  %s462 = sphi %s429, %s429
                  %s463 = sphi %s427, %s427
                $region84: #{depthwise_conv_bn.1} parent=80 // loop_header_branch
                  %460 = sbr.rel (%p458) target = $region88
                $region85: #{depthwise_conv_bn.1} parent=80 // loop_body
                  %v464 = vld [vmem:[%s462] sm:$0xff]
                  %465 = vst [vmem:[%s463] sm:$0xff] %v464
                  %v466 = vld [vmem:[%s462 + $0x10] sm:$0xff]
                  %467 = vst [vmem:[%s463 + $0x8] sm:$0xff] %v466
                  %v468 = vld [vmem:[%s462 + $0x20] sm:$0xff]
                  %469 = vst [vmem:[%s463 + $0x10] sm:$0xff] %v468
                  %v470 = vld [vmem:[%s462 + $0x30] sm:$0xff]
                  %471 = vst [vmem:[%s463 + $0x18] sm:$0xff] %v470
                $region86: #{depthwise_conv_bn.1} parent=80 // loop_footer
                  %s461 = sadd.s32 1, %s457
                $region87: #{depthwise_conv_bn.1} parent=80 // loop_footer_branch
                  %456 = sbr.rel target = $region83
                $region88: #{depthwise_conv_bn.1} parent=80 // loop_exit
                  _
              $region81: #{depthwise_conv_bn.1} parent=65 // pred_fallthru
                _
              // Predicated region
              $region89: #{depthwise_conv_bn.1} parent=65 // pred_check
                _
              $region90: #{depthwise_conv_bn.1} parent=65 // pred_check_branch
                %473 = sbr.rel target = $region92
              $region91: #{depthwise_conv_bn.1} parent=65 // pred_region
                _
              $region92: #{depthwise_conv_bn.1} parent=65 // pred_fallthru
                _
            $region66: #{depthwise_conv_bn.1} parent=61 // pred_fallthru
              _
            // Predicated region
            $region67: #{depthwise_conv_bn.1} parent=61 // pred_check
              _
            $region68: #{depthwise_conv_bn.1} parent=61 // pred_check_branch
              %435 = sbr.rel target = $region70
            $region69: #{depthwise_conv_bn.1} parent=61 // pred_region
              %s437 = ssub.s32 256, 1
              loop: start=0, step=1, limit=1
              $region71: #{depthwise_conv_bn.1} parent=69 // loop_pre_header
                _
              $region72: #{depthwise_conv_bn.1} parent=69 // loop_header
                %s439 = sphi 0, %s443
                %p440 = scmp.ge.s32.totalorder %s439, 1
                %s444 = sphi %s429, %s429
                %s445 = sphi %s427, %s427
              $region73: #{depthwise_conv_bn.1} parent=69 // loop_header_branch
                %442 = sbr.rel (%p440) target = $region77
              $region74: #{depthwise_conv_bn.1} parent=69 // loop_body
                %v446 = vld [vmem:[%s444] sm:%s437]
                %447 = vst [vmem:[%s445] sm:%s437] %v446
                %v448 = vld [vmem:[%s444 + $0x10] sm:%s437]
                %449 = vst [vmem:[%s445 + $0x8] sm:%s437] %v448
                %v450 = vld [vmem:[%s444 + $0x20] sm:%s437]
                %451 = vst [vmem:[%s445 + $0x10] sm:%s437] %v450
                %v452 = vld [vmem:[%s444 + $0x30] sm:%s437]
                %453 = vst [vmem:[%s445 + $0x18] sm:%s437] %v452
              $region75: #{depthwise_conv_bn.1} parent=69 // loop_footer
                %s443 = sadd.s32 1, %s439
              $region76: #{depthwise_conv_bn.1} parent=69 // loop_footer_branch
                %438 = sbr.rel target = $region72
              $region77: #{depthwise_conv_bn.1} parent=69 // loop_exit
                _
            $region70: #{depthwise_conv_bn.1} parent=61 // pred_fallthru
              _
          $region62: #{depthwise_conv_bn.1} parent=57 // pred_fallthru
            _
          %474 = vnop
        $region58: #{depthwise_conv_bn.1} parent=15 // pred_fallthru
          _
        // Predicated region
        $region93: #{depthwise_conv_bn.1} parent=15 // pred_check
          %p475 = pneg %p82
        $region94: #{depthwise_conv_bn.1} parent=15 // pred_check_branch
          %477 = sbr.rel (%p475) target = $region96
        $region95: #{depthwise_conv_bn.1} parent=15 // pred_region
          %p478 = scmp.lt.s32.totalorder %s10, 1
          %s479 = scalar_select %p478, %s10, 1
          %s480 = scalar_lea.vmem %s2, %s479
        $region96: #{depthwise_conv_bn.1} parent=15 // pred_fallthru
          _
        // Predicated region
        $region97: #{depthwise_conv_bn.1} parent=15 // pred_check
          %p481 = pneg %p108
        $region98: #{depthwise_conv_bn.1} parent=15 // pred_check_branch
          %483 = sbr.rel (%p481) target = $region100
        $region99: #{depthwise_conv_bn.1} parent=15 // pred_region
          %p484 = scmp.lt.s32.totalorder %s10, 1
          %s485 = scalar_select %p484, %s10, 1
          %s486 = scalar_lea.vmem %s3, %s485
        $region100: #{depthwise_conv_bn.1} parent=15 // pred_fallthru
          _
      $region16: #{depthwise_conv_bn.1} parent=5 // pred_fallthru
        _
      %p487 = scmp.le.s32.totalorder 1, %s10
      %p488 = scmp.lt.s32.totalorder %s10, 3
      %p489 = pnand %p487, %p488
      %p490 = pneg %p489
      // Predicated region
      $region101: #{depthwise_conv_bn.1} parent=5 // pred_check
        _
      $region102: #{depthwise_conv_bn.1} parent=5 // pred_check_branch
        %492 = sbr.rel (%p489) target = $region104
      $region103: #{depthwise_conv_bn.1} parent=5 // pred_region
        %s493 = ssub.s32 %s10, 1
        %s494 = sand.u32 %s23, 1
        %s495 = sand.u32 %s23, 1
        %s496 = smul.addr %s495, 448
        %s497 = scalar_lea.vmem [#allocation3], %s496
        // Predicated region
        $region105: #{depthwise_conv_bn.1} parent=103 // pred_check
          %p498 = pneg %p36
        $region106: #{depthwise_conv_bn.1} parent=103 // pred_check_branch
          %500 = sbr.rel (%p498) target = $region108
        $region107: #{depthwise_conv_bn.1} parent=103 // pred_region
          _
        $region108: #{depthwise_conv_bn.1} parent=103 // pred_fallthru
          _
        %s501 = sand.u32 %s49, 1
        %s502 = sand.u32 %s49, 1
        %s503 = smul.addr %s502, 32
        %s504 = scalar_lea.vmem [#allocation4], %s503
        // Predicated region
        $region109: #{depthwise_conv_bn.1} parent=103 // pred_check
          %p505 = pneg %p62
        $region110: #{depthwise_conv_bn.1} parent=103 // pred_check_branch
          %507 = sbr.rel (%p505) target = $region112
        $region111: #{depthwise_conv_bn.1} parent=103 // pred_region
          _
        $region112: #{depthwise_conv_bn.1} parent=103 // pred_fallthru
          _
        %s508 = sand.u32 %s23, 1
        %s509 = sand.u32 %s23, 1
        %s510 = smul.addr %s509, 448
        %s511 = scalar_lea.vmem [#allocation3], %s510
        %p512 = pneg %p36
        %p513 = pneg %p33
        %s514 = sand.u32 %s49, 1
        %s515 = sand.u32 %s49, 1
        %s516 = smul.addr %s515, 32
        %s517 = scalar_lea.vmem [#allocation4], %s516
        %p518 = pneg %p62
        %p519 = pneg %p59
        %p520 = scmp.lt.s32.totalorder %s15, 1
        %s521 = scalar_select %p520, %s15, 1
        %s522 = scalar_lea.vmem %s2, %s521
        %p523 = pneg %p88
        %p524 = pneg %p85
        %p525 = scmp.lt.s32.totalorder %s15, 1
        %s526 = scalar_select %p525, %s15, 1
        %s527 = scalar_lea.vmem %s3, %s526
        %p528 = pneg %p114
        %p529 = pneg %p111
        %p530 = pneg %p140
        %p531 = pneg %p137
        %s532 = sand.u32 %s127, 1
        %s533 = sand.u32 %s127, 1
        %s534 = smul.addr %s533, 448
        %s535 = scalar_lea.vmem [#allocation5], %s534
        %p536 = scmp.lt.s32.totalorder %s15, 1
        %s537 = scalar_select %p536, %s15, 1
        %s538 = scalar_lea.vmem %s2, %s537
        %p539 = scmp.lt.s32.totalorder %s15, 1
        %s540 = scalar_select %p539, %s15, 1
        %s541 = scalar_lea.vmem %s3, %s540
        %542 = vst [vmem:[#allocation2] sm:$0xff] 0.0
        %543 = vst [vmem:[#allocation2 + $0x8] sm:$0xff] 0.0
        %544 = vst [vmem:[#allocation2 + $0x10] sm:$0x3] 0.0
        %545 = vst [vmem:[#allocation2 + $0x18] sm:$0xff] 0.0
        %546 = vst [vmem:[#allocation2 + $0x20] sm:$0xff] 0.0
        %547 = vst [vmem:[#allocation2 + $0x28] sm:$0x3] 0.0
        %548 = vst [vmem:[#allocation2 + $0x1b0] sm:$0xff] 0.0
        %549 = vst [vmem:[#allocation2 + $0x1b8] sm:$0xff] 0.0
        %550 = vst [vmem:[#allocation2 + $0x1c0] sm:$0x3] 0.0
        %551 = vst [vmem:[#allocation2 + $0x1c8] sm:$0xff] 0.0
        %552 = vst [vmem:[#allocation2 + $0x1d0] sm:$0xff] 0.0
        %553 = vst [vmem:[#allocation2 + $0x1d8] sm:$0x3] 0.0
        %s554 = scalar_lea.vmem [#allocation2], 384
        %555 = vst [vmem:[%s554] sm:$0xff] 0.0
        %556 = vst [vmem:[%s554 + $0x8] sm:$0xff] 0.0
        %557 = vst [vmem:[%s554 + $0x10] sm:$0x3] 0.0
        %558 = vst [vmem:[%s554 + $0x18] sm:$0xff] 0.0
        %559 = vst [vmem:[%s554 + $0x20] sm:$0xff] 0.0
        %560 = vst [vmem:[%s554 + $0x28] sm:$0x3] 0.0
        %561 = vst [vmem:[%s554 + $0x1b0] sm:$0xff] 0.0
        %562 = vst [vmem:[%s554 + $0x1b8] sm:$0xff] 0.0
        %563 = vst [vmem:[%s554 + $0x1c0] sm:$0x3] 0.0
        %564 = vst [vmem:[%s554 + $0x1c8] sm:$0xff] 0.0
        %565 = vst [vmem:[%s554 + $0x1d0] sm:$0xff] 0.0
        %566 = vst [vmem:[%s554 + $0x1d8] sm:$0x3] 0.0
        %s567 = scalar_lea.vmem [#allocation2], 48
        %568 = vst [vmem:[%s567] sm:$0x3] 0.0
        %569 = vst [vmem:[%s567 + $0x18] sm:$0x3] 0.0
        %570 = vst [vmem:[%s567 + $0x30] sm:$0x3] 0.0
        %571 = vst [vmem:[%s567 + $0x48] sm:$0x3] 0.0
        %572 = vst [vmem:[%s567 + $0x60] sm:$0x3] 0.0
        %573 = vst [vmem:[%s567 + $0x78] sm:$0x3] 0.0
        %574 = vst [vmem:[%s567 + $0x90] sm:$0x3] 0.0
        %575 = vst [vmem:[%s567 + $0xa8] sm:$0x3] 0.0
        %576 = vst [vmem:[%s567 + $0xc0] sm:$0x3] 0.0
        %577 = vst [vmem:[%s567 + $0xd8] sm:$0x3] 0.0
        %578 = vst [vmem:[%s567 + $0xf0] sm:$0x3] 0.0
        %579 = vst [vmem:[%s567 + $0x108] sm:$0x3] 0.0
        %580 = vst [vmem:[%s567 + $0x120] sm:$0x3] 0.0
        %581 = vst [vmem:[%s567 + $0x138] sm:$0x3] 0.0
        %582 = vst [vmem:[%s567 + $0x1b0] sm:$0x3] 0.0
        %583 = vst [vmem:[%s567 + $0x1c8] sm:$0x3] 0.0
        %584 = vst [vmem:[%s567 + $0x1e0] sm:$0x3] 0.0
        %585 = vst [vmem:[%s567 + $0x1f8] sm:$0x3] 0.0
        %586 = vst [vmem:[%s567 + $0x210] sm:$0x3] 0.0
        %587 = vst [vmem:[%s567 + $0x228] sm:$0x3] 0.0
        %588 = vst [vmem:[%s567 + $0x240] sm:$0x3] 0.0
        %589 = vst [vmem:[%s567 + $0x258] sm:$0x3] 0.0
        %590 = vst [vmem:[%s567 + $0x270] sm:$0x3] 0.0
        %591 = vst [vmem:[%s567 + $0x288] sm:$0x3] 0.0
        %592 = vst [vmem:[%s567 + $0x2a0] sm:$0x3] 0.0
        %593 = vst [vmem:[%s567 + $0x2b8] sm:$0x3] 0.0
        %594 = vst [vmem:[%s567 + $0x2d0] sm:$0x3] 0.0
        %595 = vst [vmem:[%s567 + $0x2e8] sm:$0x3] 0.0
        %596 = vst [vmem:[%s567 + $0x10] sm:$0x3] 0.0
        %597 = vst [vmem:[%s567 + $0x28] sm:$0x3] 0.0
        %598 = vst [vmem:[%s567 + $0x40] sm:$0x3] 0.0
        %599 = vst [vmem:[%s567 + $0x58] sm:$0x3] 0.0
        %600 = vst [vmem:[%s567 + $0x70] sm:$0x3] 0.0
        %601 = vst [vmem:[%s567 + $0x88] sm:$0x3] 0.0
        %602 = vst [vmem:[%s567 + $0xa0] sm:$0x3] 0.0
        %603 = vst [vmem:[%s567 + $0xb8] sm:$0x3] 0.0
        %604 = vst [vmem:[%s567 + $0xd0] sm:$0x3] 0.0
        %605 = vst [vmem:[%s567 + $0xe8] sm:$0x3] 0.0
        %606 = vst [vmem:[%s567 + $0x100] sm:$0x3] 0.0
        %607 = vst [vmem:[%s567 + $0x118] sm:$0x3] 0.0
        %608 = vst [vmem:[%s567 + $0x130] sm:$0x3] 0.0
        %609 = vst [vmem:[%s567 + $0x148] sm:$0x3] 0.0
        %610 = vst [vmem:[%s567 + $0x1c0] sm:$0x3] 0.0
        %611 = vst [vmem:[%s567 + $0x1d8] sm:$0x3] 0.0
        %612 = vst [vmem:[%s567 + $0x1f0] sm:$0x3] 0.0
        %613 = vst [vmem:[%s567 + $0x208] sm:$0x3] 0.0
        %614 = vst [vmem:[%s567 + $0x220] sm:$0x3] 0.0
        %615 = vst [vmem:[%s567 + $0x238] sm:$0x3] 0.0
        %616 = vst [vmem:[%s567 + $0x250] sm:$0x3] 0.0
        %617 = vst [vmem:[%s567 + $0x268] sm:$0x3] 0.0
        %618 = vst [vmem:[%s567 + $0x280] sm:$0x3] 0.0
        %619 = vst [vmem:[%s567 + $0x298] sm:$0x3] 0.0
        %620 = vst [vmem:[%s567 + $0x2b0] sm:$0x3] 0.0
        %621 = vst [vmem:[%s567 + $0x2c8] sm:$0x3] 0.0
        %622 = vst [vmem:[%s567 + $0x2e0] sm:$0x3] 0.0
        %623 = vst [vmem:[%s567 + $0x2f8] sm:$0x3] 0.0
        %v624 = vld [vmem:[%s497] sm:$0xff]
        %v625 = vld [vmem:[%s497 + $0x8] sm:$0x3f]
        %v626 = vld [vmem:[%s497 + $0x10] sm:$0xff]
        %v627 = vld [vmem:[%s497 + $0x18] sm:$0x3f]
        %v628 = vld [vmem:[%s497 + $0x20] sm:$0xff]
        %v629 = vld [vmem:[%s497 + $0x28] sm:$0x3f]
        %v630 = vld [vmem:[%s497 + $0x30] sm:$0xff]
        %v631 = vld [vmem:[%s497 + $0x38] sm:$0x3f]
        %v632 = vld [vmem:[%s497 + $0x40] sm:$0xff]
        %v633 = vld [vmem:[%s497 + $0x48] sm:$0x3f]
        %v634 = vld [vmem:[%s497 + $0x50] sm:$0xff]
        %v635 = vld [vmem:[%s497 + $0x58] sm:$0x3f]
        %v636 = vld [vmem:[%s497 + $0x60] sm:$0xff]
        %v637 = vld [vmem:[%s497 + $0x68] sm:$0x3f]
        %v638 = vld [vmem:[%s497 + $0x70] sm:$0xff]
        %v639 = vld [vmem:[%s497 + $0x78] sm:$0x3f]
        %v640 = vld [vmem:[%s497 + $0x80] sm:$0xff]
        %v641 = vld [vmem:[%s497 + $0x88] sm:$0x3f]
        %v642 = vld [vmem:[%s497 + $0x90] sm:$0xff]
        %v643 = vld [vmem:[%s497 + $0x98] sm:$0x3f]
        %v644 = vld [vmem:[%s497 + $0xa0] sm:$0xff]
        %v645 = vld [vmem:[%s497 + $0xa8] sm:$0x3f]
        %v646 = vld [vmem:[%s497 + $0xb0] sm:$0xff]
        %v647 = vld [vmem:[%s497 + $0xb8] sm:$0x3f]
        %v648 = vld [vmem:[%s497 + $0xc0] sm:$0xff]
        %v649 = vld [vmem:[%s497 + $0xc8] sm:$0x3f]
        %v650 = vld [vmem:[%s497 + $0xd0] sm:$0xff]
        %v651 = vld [vmem:[%s497 + $0xd8] sm:$0x3f]
        %v652 = vld [vmem:[%s497 + $0xe0] sm:$0xff]
        %v653 = vld [vmem:[%s497 + $0xe8] sm:$0x3f]
        %v654 = vld [vmem:[%s497 + $0xf0] sm:$0xff]
        %v655 = vld [vmem:[%s497 + $0xf8] sm:$0x3f]
        %v656 = vld [vmem:[%s497 + $0x100] sm:$0xff]
        %v657 = vld [vmem:[%s497 + $0x108] sm:$0x3f]
        %v658 = vld [vmem:[%s497 + $0x110] sm:$0xff]
        %v659 = vld [vmem:[%s497 + $0x118] sm:$0x3f]
        %v660 = vld [vmem:[%s497 + $0x120] sm:$0xff]
        %v661 = vld [vmem:[%s497 + $0x128] sm:$0x3f]
        %v662 = vld [vmem:[%s497 + $0x130] sm:$0xff]
        %v663 = vld [vmem:[%s497 + $0x138] sm:$0x3f]
        %v664 = vld [vmem:[%s497 + $0x140] sm:$0xff]
        %v665 = vld [vmem:[%s497 + $0x148] sm:$0x3f]
        %v666 = vld [vmem:[%s497 + $0x150] sm:$0xff]
        %v667 = vld [vmem:[%s497 + $0x158] sm:$0x3f]
        %v668 = vld [vmem:[%s497 + $0x160] sm:$0xff]
        %v669 = vld [vmem:[%s497 + $0x168] sm:$0x3f]
        %v670 = vld [vmem:[%s497 + $0x170] sm:$0xff]
        %v671 = vld [vmem:[%s497 + $0x178] sm:$0x3f]
        %v672 = vld [vmem:[%s497 + $0x180] sm:$0xff]
        %v673 = vld [vmem:[%s497 + $0x188] sm:$0x3f]
        %v674 = vld [vmem:[%s497 + $0x190] sm:$0xff]
        %v675 = vld [vmem:[%s497 + $0x198] sm:$0x3f]
        %v676 = vld [vmem:[%s497 + $0x1a0] sm:$0xff]
        %v677 = vld [vmem:[%s497 + $0x1a8] sm:$0x3f]
        %v678 = vld [vmem:[%s497 + $0x1b0] sm:$0xff]
        %v679 = vld [vmem:[%s497 + $0x1b8] sm:$0x3f]
        %680 = vst [vmem:[%s567 + $0x2] sm:$0xff] %v624
        %681 = vst [vmem:[%s567 + $0xa] sm:$0x3f] %v625
        %682 = vst [vmem:[%s567 + $0x1a] sm:$0xff] %v626
        %683 = vst [vmem:[%s567 + $0x22] sm:$0x3f] %v627
        %684 = vst [vmem:[%s567 + $0x32] sm:$0xff] %v628
        %685 = vst [vmem:[%s567 + $0x3a] sm:$0x3f] %v629
        %686 = vst [vmem:[%s567 + $0x4a] sm:$0xff] %v630
        %687 = vst [vmem:[%s567 + $0x52] sm:$0x3f] %v631
        %688 = vst [vmem:[%s567 + $0x62] sm:$0xff] %v632
        %689 = vst [vmem:[%s567 + $0x6a] sm:$0x3f] %v633
        %690 = vst [vmem:[%s567 + $0x7a] sm:$0xff] %v634
        %691 = vst [vmem:[%s567 + $0x82] sm:$0x3f] %v635
        %692 = vst [vmem:[%s567 + $0x92] sm:$0xff] %v636
        %693 = vst [vmem:[%s567 + $0x9a] sm:$0x3f] %v637
        %694 = vst [vmem:[%s567 + $0xaa] sm:$0xff] %v638
        %695 = vst [vmem:[%s567 + $0xb2] sm:$0x3f] %v639
        %696 = vst [vmem:[%s567 + $0xc2] sm:$0xff] %v640
        %697 = vst [vmem:[%s567 + $0xca] sm:$0x3f] %v641
        %698 = vst [vmem:[%s567 + $0xda] sm:$0xff] %v642
        %699 = vst [vmem:[%s567 + $0xe2] sm:$0x3f] %v643
        %700 = vst [vmem:[%s567 + $0xf2] sm:$0xff] %v644
        %701 = vst [vmem:[%s567 + $0xfa] sm:$0x3f] %v645
        %702 = vst [vmem:[%s567 + $0x10a] sm:$0xff] %v646
        %703 = vst [vmem:[%s567 + $0x112] sm:$0x3f] %v647
        %704 = vst [vmem:[%s567 + $0x122] sm:$0xff] %v648
        %705 = vst [vmem:[%s567 + $0x12a] sm:$0x3f] %v649
        %706 = vst [vmem:[%s567 + $0x13a] sm:$0xff] %v650
        %707 = vst [vmem:[%s567 + $0x142] sm:$0x3f] %v651
        %708 = vst [vmem:[%s567 + $0x1b2] sm:$0xff] %v652
        %709 = vst [vmem:[%s567 + $0x1ba] sm:$0x3f] %v653
        %710 = vst [vmem:[%s567 + $0x1ca] sm:$0xff] %v654
        %711 = vst [vmem:[%s567 + $0x1d2] sm:$0x3f] %v655
        %712 = vst [vmem:[%s567 + $0x1e2] sm:$0xff] %v656
        %713 = vst [vmem:[%s567 + $0x1ea] sm:$0x3f] %v657
        %714 = vst [vmem:[%s567 + $0x1fa] sm:$0xff] %v658
        %715 = vst [vmem:[%s567 + $0x202] sm:$0x3f] %v659
        %716 = vst [vmem:[%s567 + $0x212] sm:$0xff] %v660
        %717 = vst [vmem:[%s567 + $0x21a] sm:$0x3f] %v661
        %718 = vst [vmem:[%s567 + $0x22a] sm:$0xff] %v662
        %719 = vst [vmem:[%s567 + $0x232] sm:$0x3f] %v663
        %720 = vst [vmem:[%s567 + $0x242] sm:$0xff] %v664
        %721 = vst [vmem:[%s567 + $0x24a] sm:$0x3f] %v665
        %722 = vst [vmem:[%s567 + $0x25a] sm:$0xff] %v666
        %723 = vst [vmem:[%s567 + $0x262] sm:$0x3f] %v667
        %724 = vst [vmem:[%s567 + $0x272] sm:$0xff] %v668
        %725 = vst [vmem:[%s567 + $0x27a] sm:$0x3f] %v669
        %726 = vst [vmem:[%s567 + $0x28a] sm:$0xff] %v670
        %727 = vst [vmem:[%s567 + $0x292] sm:$0x3f] %v671
        %728 = vst [vmem:[%s567 + $0x2a2] sm:$0xff] %v672
        %729 = vst [vmem:[%s567 + $0x2aa] sm:$0x3f] %v673
        %730 = vst [vmem:[%s567 + $0x2ba] sm:$0xff] %v674
        %731 = vst [vmem:[%s567 + $0x2c2] sm:$0x3f] %v675
        %732 = vst [vmem:[%s567 + $0x2d2] sm:$0xff] %v676
        %733 = vst [vmem:[%s567 + $0x2da] sm:$0x3f] %v677
        %734 = vst [vmem:[%s567 + $0x2ea] sm:$0xff] %v678
        %735 = vst [vmem:[%s567 + $0x2f2] sm:$0x3f] %v679
        %v736 = vld [vmem:[%s504] sm:$0xff]
        %v737 = vld [vmem:[%s504 + $0x8] sm:$0xff]
        %v738 = vld [vmem:[%s504 + $0x10] sm:$0xff]
        %v739 = vld [vmem:[%s504 + $0x18] sm:$0x1]
        %v740 = vld [vmem:[#allocation2] sm:$0xff]
        %v741 = vld [vmem:[#allocation2 + $0x8] sm:$0x3f]
        %v742 = vld [vmem:[#allocation2 + $0x18] sm:$0xff]
        %v743 = vld [vmem:[#allocation2 + $0x20] sm:$0x3f]
        %v744 = vld [vmem:[#allocation2 + $0x30] sm:$0xff]
        %v745 = vld [vmem:[#allocation2 + $0x38] sm:$0x3f]
        %v746 = vld [vmem:[#allocation2 + $0x48] sm:$0xff]
        %v747 = vld [vmem:[#allocation2 + $0x50] sm:$0x3f]
        %v748 = vld [vmem:[#allocation2 + $0x60] sm:$0xff]
        %v749 = vld [vmem:[#allocation2 + $0x68] sm:$0x3f]
        %v750 = vld [vmem:[#allocation2 + $0x78] sm:$0xff]
        %v751 = vld [vmem:[#allocation2 + $0x80] sm:$0x3f]
        %v752 = vld [vmem:[#allocation2 + $0x90] sm:$0xff]
        %v753 = vld [vmem:[#allocation2 + $0x98] sm:$0x3f]
        %v754 = vld [vmem:[#allocation2 + $0xa8] sm:$0xff]
        %v755 = vld [vmem:[#allocation2 + $0xb0] sm:$0x3f]
        %v756 = vld [vmem:[#allocation2 + $0xc0] sm:$0xff]
        %v757 = vld [vmem:[#allocation2 + $0xc8] sm:$0x3f]
        %v758 = vld [vmem:[#allocation2 + $0xd8] sm:$0xff]
        %v759 = vld [vmem:[#allocation2 + $0xe0] sm:$0x3f]
        %v760 = vld [vmem:[#allocation2 + $0xf0] sm:$0xff]
        %v761 = vld [vmem:[#allocation2 + $0xf8] sm:$0x3f]
        %v762 = vld [vmem:[#allocation2 + $0x108] sm:$0xff]
        %v763 = vld [vmem:[#allocation2 + $0x110] sm:$0x3f]
        %v764 = vld [vmem:[#allocation2 + $0x120] sm:$0xff]
        %v765 = vld [vmem:[#allocation2 + $0x128] sm:$0x3f]
        %v766 = vld [vmem:[#allocation2 + $0x138] sm:$0xff]
        %v767 = vld [vmem:[#allocation2 + $0x140] sm:$0x3f]
        %v768 = vld [vmem:[#allocation2 + $0x150] sm:$0xff]
        %v769 = vld [vmem:[#allocation2 + $0x158] sm:$0x3f]
        %v770 = vld [vmem:[#allocation2 + $0x168] sm:$0xff]
        %v771 = vld [vmem:[#allocation2 + $0x170] sm:$0x3f]
        %v772 = vld [vmem:[#allocation2 + $0x180] sm:$0xff]
        %v773 = vld [vmem:[#allocation2 + $0x188] sm:$0x3f]
        %v774 = vld [vmem:[#allocation2 + $0x198] sm:$0xff]
        %v775 = vld [vmem:[#allocation2 + $0x1a0] sm:$0x3f]
        %v776 = vld [vmem:[#allocation2 + $0x1b0] sm:$0xff]
        %v777 = vld [vmem:[#allocation2 + $0x1b8] sm:$0x3f]
        %v778 = vld [vmem:[#allocation2 + $0x1c8] sm:$0xff]
        %v779 = vld [vmem:[#allocation2 + $0x1d0] sm:$0x3f]
        %v780 = vld [vmem:[#allocation2 + $0x1e0] sm:$0xff]
        %v781 = vld [vmem:[#allocation2 + $0x1e8] sm:$0x3f]
        %v782 = vld [vmem:[#allocation2 + $0x1f8] sm:$0xff]
        %v783 = vld [vmem:[#allocation2 + $0x200] sm:$0x3f]
        %v784 = vld [vmem:[#allocation2 + $0x210] sm:$0xff]
        %v785 = vld [vmem:[#allocation2 + $0x218] sm:$0x3f]
        %v786 = vld [vmem:[#allocation2 + $0x228] sm:$0xff]
        %v787 = vld [vmem:[#allocation2 + $0x230] sm:$0x3f]
        %v788 = vld [vmem:[#allocation2 + $0x240] sm:$0xff]
        %v789 = vld [vmem:[#allocation2 + $0x248] sm:$0x3f]
        %v790 = vld [vmem:[#allocation2 + $0x258] sm:$0xff]
        %v791 = vld [vmem:[#allocation2 + $0x260] sm:$0x3f]
        %v792 = vld [vmem:[#allocation2 + $0x270] sm:$0xff]
        %v793 = vld [vmem:[#allocation2 + $0x278] sm:$0x3f]
        %v794 = vld [vmem:[#allocation2 + $0x288] sm:$0xff]
        %v795 = vld [vmem:[#allocation2 + $0x290] sm:$0x3f]
        %v796 = vld [vmem:[#allocation2 + $0x2a0] sm:$0xff]
        %v797 = vld [vmem:[#allocation2 + $0x2a8] sm:$0x3f]
        %v798 = vld [vmem:[#allocation2 + $0x2b8] sm:$0xff]
        %v799 = vld [vmem:[#allocation2 + $0x2c0] sm:$0x3f]
        %v800 = vld [vmem:[#allocation2 + $0x2d0] sm:$0xff]
        %v801 = vld [vmem:[#allocation2 + $0x2d8] sm:$0x3f]
        %v802 = vld [vmem:[#allocation2 + $0x2e8] sm:$0xff]
        %v803 = vld [vmem:[#allocation2 + $0x2f0] sm:$0x3f]
        %v804 = vld [vmem:[#allocation2 + $0x300] sm:$0xff]
        %v805 = vld [vmem:[#allocation2 + $0x308] sm:$0x3f]
        %v806 = vld [vmem:[#allocation2 + $0x318] sm:$0xff]
        %v807 = vld [vmem:[#allocation2 + $0x320] sm:$0x3f]
        %v808 = vld [vmem:[#allocation2 + $0x330] sm:$0xff]
        %v809 = vld [vmem:[#allocation2 + $0x338] sm:$0x3f]
        %v810 = vld [vmem:[#allocation2 + $0x348] sm:$0xff]
        %v811 = vld [vmem:[#allocation2 + $0x350] sm:$0x3f]
        %v812 = vperm.slane %v736, 0
        %v813 = vmul.f32 %v740, %v812
        %v814 = vmul.f32 %v741, %v812
        %v815 = vmul.f32 %v742, %v812
        %v816 = vmul.f32 %v743, %v812
        %v817 = vmul.f32 %v744, %v812
        %v818 = vmul.f32 %v745, %v812
        %v819 = vmul.f32 %v746, %v812
        %v820 = vmul.f32 %v747, %v812
        %v821 = vmul.f32 %v748, %v812
        %v822 = vmul.f32 %v749, %v812
        %v823 = vmul.f32 %v750, %v812
        %v824 = vmul.f32 %v751, %v812
        %v825 = vmul.f32 %v752, %v812
        %v826 = vmul.f32 %v753, %v812
        %v827 = vmul.f32 %v754, %v812
        %v828 = vmul.f32 %v755, %v812
        %v829 = vmul.f32 %v756, %v812
        %v830 = vmul.f32 %v757, %v812
        %v831 = vmul.f32 %v758, %v812
        %v832 = vmul.f32 %v759, %v812
        %v833 = vmul.f32 %v760, %v812
        %v834 = vmul.f32 %v761, %v812
        %v835 = vmul.f32 %v762, %v812
        %v836 = vmul.f32 %v763, %v812
        %v837 = vmul.f32 %v764, %v812
        %v838 = vmul.f32 %v765, %v812
        %v839 = vmul.f32 %v766, %v812
        %v840 = vmul.f32 %v767, %v812
        %v841 = vmul.f32 %v776, %v812
        %v842 = vmul.f32 %v777, %v812
        %v843 = vmul.f32 %v778, %v812
        %v844 = vmul.f32 %v779, %v812
        %v845 = vmul.f32 %v780, %v812
        %v846 = vmul.f32 %v781, %v812
        %v847 = vmul.f32 %v782, %v812
        %v848 = vmul.f32 %v783, %v812
        %v849 = vmul.f32 %v784, %v812
        %v850 = vmul.f32 %v785, %v812
        %v851 = vmul.f32 %v786, %v812
        %v852 = vmul.f32 %v787, %v812
        %v853 = vmul.f32 %v788, %v812
        %v854 = vmul.f32 %v789, %v812
        %v855 = vmul.f32 %v790, %v812
        %v856 = vmul.f32 %v791, %v812
        %v857 = vmul.f32 %v792, %v812
        %v858 = vmul.f32 %v793, %v812
        %v859 = vmul.f32 %v794, %v812
        %v860 = vmul.f32 %v795, %v812
        %v861 = vmul.f32 %v796, %v812
        %v862 = vmul.f32 %v797, %v812
        %v863 = vmul.f32 %v798, %v812
        %v864 = vmul.f32 %v799, %v812
        %v865 = vmul.f32 %v800, %v812
        %v866 = vmul.f32 %v801, %v812
        %v867 = vmul.f32 %v802, %v812
        %v868 = vmul.f32 %v803, %v812
        %v869 = vperm.slane %v736, 5
        %v870 = vmul.f32 %v742, %v869
        %v871 = vmul.f32 %v743, %v869
        %v872 = vmul.f32 %v744, %v869
        %v873 = vmul.f32 %v745, %v869
        %v874 = vmul.f32 %v746, %v869
        %v875 = vmul.f32 %v747, %v869
        %v876 = vmul.f32 %v748, %v869
        %v877 = vmul.f32 %v749, %v869
        %v878 = vmul.f32 %v750, %v869
        %v879 = vmul.f32 %v751, %v869
        %v880 = vmul.f32 %v752, %v869
        %v881 = vmul.f32 %v753, %v869
        %v882 = vmul.f32 %v754, %v869
        %v883 = vmul.f32 %v755, %v869
        %v884 = vmul.f32 %v756, %v869
        %v885 = vmul.f32 %v757, %v869
        %v886 = vmul.f32 %v758, %v869
        %v887 = vmul.f32 %v759, %v869
        %v888 = vmul.f32 %v760, %v869
        %v889 = vmul.f32 %v761, %v869
        %v890 = vmul.f32 %v762, %v869
        %v891 = vmul.f32 %v763, %v869
        %v892 = vmul.f32 %v764, %v869
        %v893 = vmul.f32 %v765, %v869
        %v894 = vmul.f32 %v766, %v869
        %v895 = vmul.f32 %v767, %v869
        %v896 = vmul.f32 %v768, %v869
        %v897 = vmul.f32 %v769, %v869
        %v898 = vmul.f32 %v778, %v869
        %v899 = vmul.f32 %v779, %v869
        %v900 = vmul.f32 %v780, %v869
        %v901 = vmul.f32 %v781, %v869
        %v902 = vmul.f32 %v782, %v869
        %v903 = vmul.f32 %v783, %v869
        %v904 = vmul.f32 %v784, %v869
        %v905 = vmul.f32 %v785, %v869
        %v906 = vmul.f32 %v786, %v869
        %v907 = vmul.f32 %v787, %v869
        %v908 = vmul.f32 %v788, %v869
        %v909 = vmul.f32 %v789, %v869
        %v910 = vmul.f32 %v790, %v869
        %v911 = vmul.f32 %v791, %v869
        %v912 = vmul.f32 %v792, %v869
        %v913 = vmul.f32 %v793, %v869
        %v914 = vmul.f32 %v794, %v869
        %v915 = vmul.f32 %v795, %v869
        %v916 = vmul.f32 %v796, %v869
        %v917 = vmul.f32 %v797, %v869
        %v918 = vmul.f32 %v798, %v869
        %v919 = vmul.f32 %v799, %v869
        %v920 = vmul.f32 %v800, %v869
        %v921 = vmul.f32 %v801, %v869
        %v922 = vmul.f32 %v802, %v869
        %v923 = vmul.f32 %v803, %v869
        %v924 = vmul.f32 %v804, %v869
        %v925 = vmul.f32 %v805, %v869
        %v926 = vadd.f32 %v813, %v870
        %v927 = vadd.f32 %v814, %v871
        %v928 = vadd.f32 %v815, %v872
        %v929 = vadd.f32 %v816, %v873
        %v930 = vadd.f32 %v817, %v874
        %v931 = vadd.f32 %v818, %v875
        %v932 = vadd.f32 %v819, %v876
        %v933 = vadd.f32 %v820, %v877
        %v934 = vadd.f32 %v821, %v878
        %v935 = vadd.f32 %v822, %v879
        %v936 = vadd.f32 %v823, %v880
        %v937 = vadd.f32 %v824, %v881
        %v938 = vadd.f32 %v825, %v882
        %v939 = vadd.f32 %v826, %v883
        %v940 = vadd.f32 %v827, %v884
        %v941 = vadd.f32 %v828, %v885
        %v942 = vadd.f32 %v829, %v886
        %v943 = vadd.f32 %v830, %v887
        %v944 = vadd.f32 %v831, %v888
        %v945 = vadd.f32 %v832, %v889
        %v946 = vadd.f32 %v833, %v890
        %v947 = vadd.f32 %v834, %v891
        %v948 = vadd.f32 %v835, %v892
        %v949 = vadd.f32 %v836, %v893
        %v950 = vadd.f32 %v837, %v894
        %v951 = vadd.f32 %v838, %v895
        %v952 = vadd.f32 %v839, %v896
        %v953 = vadd.f32 %v840, %v897
        %v954 = vadd.f32 %v841, %v898
        %v955 = vadd.f32 %v842, %v899
        %v956 = vadd.f32 %v843, %v900
        %v957 = vadd.f32 %v844, %v901
        %v958 = vadd.f32 %v845, %v902
        %v959 = vadd.f32 %v846, %v903
        %v960 = vadd.f32 %v847, %v904
        %v961 = vadd.f32 %v848, %v905
        %v962 = vadd.f32 %v849, %v906
        %v963 = vadd.f32 %v850, %v907
        %v964 = vadd.f32 %v851, %v908
        %v965 = vadd.f32 %v852, %v909
        %v966 = vadd.f32 %v853, %v910
        %v967 = vadd.f32 %v854, %v911
        %v968 = vadd.f32 %v855, %v912
        %v969 = vadd.f32 %v856, %v913
        %v970 = vadd.f32 %v857, %v914
        %v971 = vadd.f32 %v858, %v915
        %v972 = vadd.f32 %v859, %v916
        %v973 = vadd.f32 %v860, %v917
        %v974 = vadd.f32 %v861, %v918
        %v975 = vadd.f32 %v862, %v919
        %v976 = vadd.f32 %v863, %v920
        %v977 = vadd.f32 %v864, %v921
        %v978 = vadd.f32 %v865, %v922
        %v979 = vadd.f32 %v866, %v923
        %v980 = vadd.f32 %v867, %v924
        %v981 = vadd.f32 %v868, %v925
        %v982 = vperm.slane %v737, 2
        %v983 = vmul.f32 %v744, %v982
        %v984 = vmul.f32 %v745, %v982
        %v985 = vmul.f32 %v746, %v982
        %v986 = vmul.f32 %v747, %v982
        %v987 = vmul.f32 %v748, %v982
        %v988 = vmul.f32 %v749, %v982
        %v989 = vmul.f32 %v750, %v982
        %v990 = vmul.f32 %v751, %v982
        %v991 = vmul.f32 %v752, %v982
        %v992 = vmul.f32 %v753, %v982
        %v993 = vmul.f32 %v754, %v982
        %v994 = vmul.f32 %v755, %v982
        %v995 = vmul.f32 %v756, %v982
        %v996 = vmul.f32 %v757, %v982
        %v997 = vmul.f32 %v758, %v982
        %v998 = vmul.f32 %v759, %v982
        %v999 = vmul.f32 %v760, %v982
        %v1000 = vmul.f32 %v761, %v982
        %v1001 = vmul.f32 %v762, %v982
        %v1002 = vmul.f32 %v763, %v982
        %v1003 = vmul.f32 %v764, %v982
        %v1004 = vmul.f32 %v765, %v982
        %v1005 = vmul.f32 %v766, %v982
        %v1006 = vmul.f32 %v767, %v982
        %v1007 = vmul.f32 %v768, %v982
        %v1008 = vmul.f32 %v769, %v982
        %v1009 = vmul.f32 %v770, %v982
        %v1010 = vmul.f32 %v771, %v982
        %v1011 = vmul.f32 %v780, %v982
        %v1012 = vmul.f32 %v781, %v982
        %v1013 = vmul.f32 %v782, %v982
        %v1014 = vmul.f32 %v783, %v982
        %v1015 = vmul.f32 %v784, %v982
        %v1016 = vmul.f32 %v785, %v982
        %v1017 = vmul.f32 %v786, %v982
        %v1018 = vmul.f32 %v787, %v982
        %v1019 = vmul.f32 %v788, %v982
        %v1020 = vmul.f32 %v789, %v982
        %v1021 = vmul.f32 %v790, %v982
        %v1022 = vmul.f32 %v791, %v982
        %v1023 = vmul.f32 %v792, %v982
        %v1024 = vmul.f32 %v793, %v982
        %v1025 = vmul.f32 %v794, %v982
        %v1026 = vmul.f32 %v795, %v982
        %v1027 = vmul.f32 %v796, %v982
        %v1028 = vmul.f32 %v797, %v982
        %v1029 = vmul.f32 %v798, %v982
        %v1030 = vmul.f32 %v799, %v982
        %v1031 = vmul.f32 %v800, %v982
        %v1032 = vmul.f32 %v801, %v982
        %v1033 = vmul.f32 %v802, %v982
        %v1034 = vmul.f32 %v803, %v982
        %v1035 = vmul.f32 %v804, %v982
        %v1036 = vmul.f32 %v805, %v982
        %v1037 = vmul.f32 %v806, %v982
        %v1038 = vmul.f32 %v807, %v982
        %v1039 = vadd.f32 %v926, %v983
        %v1040 = vadd.f32 %v927, %v984
        %v1041 = vadd.f32 %v928, %v985
        %v1042 = vadd.f32 %v929, %v986
        %v1043 = vadd.f32 %v930, %v987
        %v1044 = vadd.f32 %v931, %v988
        %v1045 = vadd.f32 %v932, %v989
        %v1046 = vadd.f32 %v933, %v990
        %v1047 = vadd.f32 %v934, %v991
        %v1048 = vadd.f32 %v935, %v992
        %v1049 = vadd.f32 %v936, %v993
        %v1050 = vadd.f32 %v937, %v994
        %v1051 = vadd.f32 %v938, %v995
        %v1052 = vadd.f32 %v939, %v996
        %v1053 = vadd.f32 %v940, %v997
        %v1054 = vadd.f32 %v941, %v998
        %v1055 = vadd.f32 %v942, %v999
        %v1056 = vadd.f32 %v943, %v1000
        %v1057 = vadd.f32 %v944, %v1001
        %v1058 = vadd.f32 %v945, %v1002
        %v1059 = vadd.f32 %v946, %v1003
        %v1060 = vadd.f32 %v947, %v1004
        %v1061 = vadd.f32 %v948, %v1005
        %v1062 = vadd.f32 %v949, %v1006
        %v1063 = vadd.f32 %v950, %v1007
        %v1064 = vadd.f32 %v951, %v1008
        %v1065 = vadd.f32 %v952, %v1009
        %v1066 = vadd.f32 %v953, %v1010
        %v1067 = vadd.f32 %v954, %v1011
        %v1068 = vadd.f32 %v955, %v1012
        %v1069 = vadd.f32 %v956, %v1013
        %v1070 = vadd.f32 %v957, %v1014
        %v1071 = vadd.f32 %v958, %v1015
        %v1072 = vadd.f32 %v959, %v1016
        %v1073 = vadd.f32 %v960, %v1017
        %v1074 = vadd.f32 %v961, %v1018
        %v1075 = vadd.f32 %v962, %v1019
        %v1076 = vadd.f32 %v963, %v1020
        %v1077 = vadd.f32 %v964, %v1021
        %v1078 = vadd.f32 %v965, %v1022
        %v1079 = vadd.f32 %v966, %v1023
        %v1080 = vadd.f32 %v967, %v1024
        %v1081 = vadd.f32 %v968, %v1025
        %v1082 = vadd.f32 %v969, %v1026
        %v1083 = vadd.f32 %v970, %v1027
        %v1084 = vadd.f32 %v971, %v1028
        %v1085 = vadd.f32 %v972, %v1029
        %v1086 = vadd.f32 %v973, %v1030
        %v1087 = vadd.f32 %v974, %v1031
        %v1088 = vadd.f32 %v975, %v1032
        %v1089 = vadd.f32 %v976, %v1033
        %v1090 = vadd.f32 %v977, %v1034
        %v1091 = vadd.f32 %v978, %v1035
        %v1092 = vadd.f32 %v979, %v1036
        %v1093 = vadd.f32 %v980, %v1037
        %v1094 = vadd.f32 %v981, %v1038
        %v1095 = vperm.slane %v737, 7
        %v1096 = vmul.f32 %v746, %v1095
        %v1097 = vmul.f32 %v747, %v1095
        %v1098 = vmul.f32 %v748, %v1095
        %v1099 = vmul.f32 %v749, %v1095
        %v1100 = vmul.f32 %v750, %v1095
        %v1101 = vmul.f32 %v751, %v1095
        %v1102 = vmul.f32 %v752, %v1095
        %v1103 = vmul.f32 %v753, %v1095
        %v1104 = vmul.f32 %v754, %v1095
        %v1105 = vmul.f32 %v755, %v1095
        %v1106 = vmul.f32 %v756, %v1095
        %v1107 = vmul.f32 %v757, %v1095
        %v1108 = vmul.f32 %v758, %v1095
        %v1109 = vmul.f32 %v759, %v1095
        %v1110 = vmul.f32 %v760, %v1095
        %v1111 = vmul.f32 %v761, %v1095
        %v1112 = vmul.f32 %v762, %v1095
        %v1113 = vmul.f32 %v763, %v1095
        %v1114 = vmul.f32 %v764, %v1095
        %v1115 = vmul.f32 %v765, %v1095
        %v1116 = vmul.f32 %v766, %v1095
        %v1117 = vmul.f32 %v767, %v1095
        %v1118 = vmul.f32 %v768, %v1095
        %v1119 = vmul.f32 %v769, %v1095
        %v1120 = vmul.f32 %v770, %v1095
        %v1121 = vmul.f32 %v771, %v1095
        %v1122 = vmul.f32 %v772, %v1095
        %v1123 = vmul.f32 %v773, %v1095
        %v1124 = vmul.f32 %v782, %v1095
        %v1125 = vmul.f32 %v783, %v1095
        %v1126 = vmul.f32 %v784, %v1095
        %v1127 = vmul.f32 %v785, %v1095
        %v1128 = vmul.f32 %v786, %v1095
        %v1129 = vmul.f32 %v787, %v1095
        %v1130 = vmul.f32 %v788, %v1095
        %v1131 = vmul.f32 %v789, %v1095
        %v1132 = vmul.f32 %v790, %v1095
        %v1133 = vmul.f32 %v791, %v1095
        %v1134 = vmul.f32 %v792, %v1095
        %v1135 = vmul.f32 %v793, %v1095
        %v1136 = vmul.f32 %v794, %v1095
        %v1137 = vmul.f32 %v795, %v1095
        %v1138 = vmul.f32 %v796, %v1095
        %v1139 = vmul.f32 %v797, %v1095
        %v1140 = vmul.f32 %v798, %v1095
        %v1141 = vmul.f32 %v799, %v1095
        %v1142 = vmul.f32 %v800, %v1095
        %v1143 = vmul.f32 %v801, %v1095
        %v1144 = vmul.f32 %v802, %v1095
        %v1145 = vmul.f32 %v803, %v1095
        %v1146 = vmul.f32 %v804, %v1095
        %v1147 = vmul.f32 %v805, %v1095
        %v1148 = vmul.f32 %v806, %v1095
        %v1149 = vmul.f32 %v807, %v1095
        %v1150 = vmul.f32 %v808, %v1095
        %v1151 = vmul.f32 %v809, %v1095
        %v1152 = vadd.f32 %v1039, %v1096
        %v1153 = vadd.f32 %v1040, %v1097
        %v1154 = vadd.f32 %v1041, %v1098
        %v1155 = vadd.f32 %v1042, %v1099
        %v1156 = vadd.f32 %v1043, %v1100
        %v1157 = vadd.f32 %v1044, %v1101
        %v1158 = vadd.f32 %v1045, %v1102
        %v1159 = vadd.f32 %v1046, %v1103
        %v1160 = vadd.f32 %v1047, %v1104
        %v1161 = vadd.f32 %v1048, %v1105
        %v1162 = vadd.f32 %v1049, %v1106
        %v1163 = vadd.f32 %v1050, %v1107
        %v1164 = vadd.f32 %v1051, %v1108
        %v1165 = vadd.f32 %v1052, %v1109
        %v1166 = vadd.f32 %v1053, %v1110
        %v1167 = vadd.f32 %v1054, %v1111
        %v1168 = vadd.f32 %v1055, %v1112
        %v1169 = vadd.f32 %v1056, %v1113
        %v1170 = vadd.f32 %v1057, %v1114
        %v1171 = vadd.f32 %v1058, %v1115
        %v1172 = vadd.f32 %v1059, %v1116
        %v1173 = vadd.f32 %v1060, %v1117
        %v1174 = vadd.f32 %v1061, %v1118
        %v1175 = vadd.f32 %v1062, %v1119
        %v1176 = vadd.f32 %v1063, %v1120
        %v1177 = vadd.f32 %v1064, %v1121
        %v1178 = vadd.f32 %v1065, %v1122
        %v1179 = vadd.f32 %v1066, %v1123
        %v1180 = vadd.f32 %v1067, %v1124
        %v1181 = vadd.f32 %v1068, %v1125
        %v1182 = vadd.f32 %v1069, %v1126
        %v1183 = vadd.f32 %v1070, %v1127
        %v1184 = vadd.f32 %v1071, %v1128
        %v1185 = vadd.f32 %v1072, %v1129
        %v1186 = vadd.f32 %v1073, %v1130
        %v1187 = vadd.f32 %v1074, %v1131
        %v1188 = vadd.f32 %v1075, %v1132
        %v1189 = vadd.f32 %v1076, %v1133
        %v1190 = vadd.f32 %v1077, %v1134
        %v1191 = vadd.f32 %v1078, %v1135
        %v1192 = vadd.f32 %v1079, %v1136
        %v1193 = vadd.f32 %v1080, %v1137
        %v1194 = vadd.f32 %v1081, %v1138
        %v1195 = vadd.f32 %v1082, %v1139
        %v1196 = vadd.f32 %v1083, %v1140
        %v1197 = vadd.f32 %v1084, %v1141
        %v1198 = vadd.f32 %v1085, %v1142
        %v1199 = vadd.f32 %v1086, %v1143
        %v1200 = vadd.f32 %v1087, %v1144
        %v1201 = vadd.f32 %v1088, %v1145
        %v1202 = vadd.f32 %v1089, %v1146
        %v1203 = vadd.f32 %v1090, %v1147
        %v1204 = vadd.f32 %v1091, %v1148
        %v1205 = vadd.f32 %v1092, %v1149
        %v1206 = vadd.f32 %v1093, %v1150
        %v1207 = vadd.f32 %v1094, %v1151
        %v1208 = vperm.slane %v738, 4
        %v1209 = vmul.f32 %v748, %v1208
        %v1210 = vmul.f32 %v749, %v1208
        %v1211 = vmul.f32 %v750, %v1208
        %v1212 = vmul.f32 %v751, %v1208
        %v1213 = vmul.f32 %v752, %v1208
        %v1214 = vmul.f32 %v753, %v1208
        %v1215 = vmul.f32 %v754, %v1208
        %v1216 = vmul.f32 %v755, %v1208
        %v1217 = vmul.f32 %v756, %v1208
        %v1218 = vmul.f32 %v757, %v1208
        %v1219 = vmul.f32 %v758, %v1208
        %v1220 = vmul.f32 %v759, %v1208
        %v1221 = vmul.f32 %v760, %v1208
        %v1222 = vmul.f32 %v761, %v1208
        %v1223 = vmul.f32 %v762, %v1208
        %v1224 = vmul.f32 %v763, %v1208
        %v1225 = vmul.f32 %v764, %v1208
        %v1226 = vmul.f32 %v765, %v1208
        %v1227 = vmul.f32 %v766, %v1208
        %v1228 = vmul.f32 %v767, %v1208
        %v1229 = vmul.f32 %v768, %v1208
        %v1230 = vmul.f32 %v769, %v1208
        %v1231 = vmul.f32 %v770, %v1208
        %v1232 = vmul.f32 %v771, %v1208
        %v1233 = vmul.f32 %v772, %v1208
        %v1234 = vmul.f32 %v773, %v1208
        %v1235 = vmul.f32 %v774, %v1208
        %v1236 = vmul.f32 %v775, %v1208
        %v1237 = vmul.f32 %v784, %v1208
        %v1238 = vmul.f32 %v785, %v1208
        %v1239 = vmul.f32 %v786, %v1208
        %v1240 = vmul.f32 %v787, %v1208
        %v1241 = vmul.f32 %v788, %v1208
        %v1242 = vmul.f32 %v789, %v1208
        %v1243 = vmul.f32 %v790, %v1208
        %v1244 = vmul.f32 %v791, %v1208
        %v1245 = vmul.f32 %v792, %v1208
        %v1246 = vmul.f32 %v793, %v1208
        %v1247 = vmul.f32 %v794, %v1208
        %v1248 = vmul.f32 %v795, %v1208
        %v1249 = vmul.f32 %v796, %v1208
        %v1250 = vmul.f32 %v797, %v1208
        %v1251 = vmul.f32 %v798, %v1208
        %v1252 = vmul.f32 %v799, %v1208
        %v1253 = vmul.f32 %v800, %v1208
        %v1254 = vmul.f32 %v801, %v1208
        %v1255 = vmul.f32 %v802, %v1208
        %v1256 = vmul.f32 %v803, %v1208
        %v1257 = vmul.f32 %v804, %v1208
        %v1258 = vmul.f32 %v805, %v1208
        %v1259 = vmul.f32 %v806, %v1208
        %v1260 = vmul.f32 %v807, %v1208
        %v1261 = vmul.f32 %v808, %v1208
        %v1262 = vmul.f32 %v809, %v1208
        %v1263 = vmul.f32 %v810, %v1208
        %v1264 = vmul.f32 %v811, %v1208
        %v1265 = vadd.f32 %v1152, %v1209
        %v1266 = vadd.f32 %v1153, %v1210
        %v1267 = vadd.f32 %v1154, %v1211
        %v1268 = vadd.f32 %v1155, %v1212
        %v1269 = vadd.f32 %v1156, %v1213
        %v1270 = vadd.f32 %v1157, %v1214
        %v1271 = vadd.f32 %v1158, %v1215
        %v1272 = vadd.f32 %v1159, %v1216
        %v1273 = vadd.f32 %v1160, %v1217
        %v1274 = vadd.f32 %v1161, %v1218
        %v1275 = vadd.f32 %v1162, %v1219
        %v1276 = vadd.f32 %v1163, %v1220
        %v1277 = vadd.f32 %v1164, %v1221
        %v1278 = vadd.f32 %v1165, %v1222
        %v1279 = vadd.f32 %v1166, %v1223
        %v1280 = vadd.f32 %v1167, %v1224
        %v1281 = vadd.f32 %v1168, %v1225
        %v1282 = vadd.f32 %v1169, %v1226
        %v1283 = vadd.f32 %v1170, %v1227
        %v1284 = vadd.f32 %v1171, %v1228
        %v1285 = vadd.f32 %v1172, %v1229
        %v1286 = vadd.f32 %v1173, %v1230
        %v1287 = vadd.f32 %v1174, %v1231
        %v1288 = vadd.f32 %v1175, %v1232
        %v1289 = vadd.f32 %v1176, %v1233
        %v1290 = vadd.f32 %v1177, %v1234
        %v1291 = vadd.f32 %v1178, %v1235
        %v1292 = vadd.f32 %v1179, %v1236
        %v1293 = vadd.f32 %v1180, %v1237
        %v1294 = vadd.f32 %v1181, %v1238
        %v1295 = vadd.f32 %v1182, %v1239
        %v1296 = vadd.f32 %v1183, %v1240
        %v1297 = vadd.f32 %v1184, %v1241
        %v1298 = vadd.f32 %v1185, %v1242
        %v1299 = vadd.f32 %v1186, %v1243
        %v1300 = vadd.f32 %v1187, %v1244
        %v1301 = vadd.f32 %v1188, %v1245
        %v1302 = vadd.f32 %v1189, %v1246
        %v1303 = vadd.f32 %v1190, %v1247
        %v1304 = vadd.f32 %v1191, %v1248
        %v1305 = vadd.f32 %v1192, %v1249
        %v1306 = vadd.f32 %v1193, %v1250
        %v1307 = vadd.f32 %v1194, %v1251
        %v1308 = vadd.f32 %v1195, %v1252
        %v1309 = vadd.f32 %v1196, %v1253
        %v1310 = vadd.f32 %v1197, %v1254
        %v1311 = vadd.f32 %v1198, %v1255
        %v1312 = vadd.f32 %v1199, %v1256
        %v1313 = vadd.f32 %v1200, %v1257
        %v1314 = vadd.f32 %v1201, %v1258
        %v1315 = vadd.f32 %v1202, %v1259
        %v1316 = vadd.f32 %v1203, %v1260
        %v1317 = vadd.f32 %v1204, %v1261
        %v1318 = vadd.f32 %v1205, %v1262
        %v1319 = vadd.f32 %v1206, %v1263
        %v1320 = vadd.f32 %v1207, %v1264
        %v1321 = vld [vmem:[#allocation2 + $0x1] sm:$0xff]
        %v1322 = vld [vmem:[#allocation2 + $0x9] sm:$0x3f]
        %v1323 = vld [vmem:[#allocation2 + $0x19] sm:$0xff]
        %v1324 = vld [vmem:[#allocation2 + $0x21] sm:$0x3f]
        %v1325 = vld [vmem:[#allocation2 + $0x31] sm:$0xff]
        %v1326 = vld [vmem:[#allocation2 + $0x39] sm:$0x3f]
        %v1327 = vld [vmem:[#allocation2 + $0x49] sm:$0xff]
        %v1328 = vld [vmem:[#allocation2 + $0x51] sm:$0x3f]
        %v1329 = vld [vmem:[#allocation2 + $0x61] sm:$0xff]
        %v1330 = vld [vmem:[#allocation2 + $0x69] sm:$0x3f]
        %v1331 = vld [vmem:[#allocation2 + $0x79] sm:$0xff]
        %v1332 = vld [vmem:[#allocation2 + $0x81] sm:$0x3f]
        %v1333 = vld [vmem:[#allocation2 + $0x91] sm:$0xff]
        %v1334 = vld [vmem:[#allocation2 + $0x99] sm:$0x3f]
        %v1335 = vld [vmem:[#allocation2 + $0xa9] sm:$0xff]
        %v1336 = vld [vmem:[#allocation2 + $0xb1] sm:$0x3f]
        %v1337 = vld [vmem:[#allocation2 + $0xc1] sm:$0xff]
        %v1338 = vld [vmem:[#allocation2 + $0xc9] sm:$0x3f]
        %v1339 = vld [vmem:[#allocation2 + $0xd9] sm:$0xff]
        %v1340 = vld [vmem:[#allocation2 + $0xe1] sm:$0x3f]
        %v1341 = vld [vmem:[#allocation2 + $0xf1] sm:$0xff]
        %v1342 = vld [vmem:[#allocation2 + $0xf9] sm:$0x3f]
        %v1343 = vld [vmem:[#allocation2 + $0x109] sm:$0xff]
        %v1344 = vld [vmem:[#allocation2 + $0x111] sm:$0x3f]
        %v1345 = vld [vmem:[#allocation2 + $0x121] sm:$0xff]
        %v1346 = vld [vmem:[#allocation2 + $0x129] sm:$0x3f]
        %v1347 = vld [vmem:[#allocation2 + $0x139] sm:$0xff]
        %v1348 = vld [vmem:[#allocation2 + $0x141] sm:$0x3f]
        %v1349 = vld [vmem:[#allocation2 + $0x151] sm:$0xff]
        %v1350 = vld [vmem:[#allocation2 + $0x159] sm:$0x3f]
        %v1351 = vld [vmem:[#allocation2 + $0x169] sm:$0xff]
        %v1352 = vld [vmem:[#allocation2 + $0x171] sm:$0x3f]
        %v1353 = vld [vmem:[#allocation2 + $0x181] sm:$0xff]
        %v1354 = vld [vmem:[#allocation2 + $0x189] sm:$0x3f]
        %v1355 = vld [vmem:[#allocation2 + $0x199] sm:$0xff]
        %v1356 = vld [vmem:[#allocation2 + $0x1a1] sm:$0x3f]
        %v1357 = vld [vmem:[#allocation2 + $0x1b1] sm:$0xff]
        %v1358 = vld [vmem:[#allocation2 + $0x1b9] sm:$0x3f]
        %v1359 = vld [vmem:[#allocation2 + $0x1c9] sm:$0xff]
        %v1360 = vld [vmem:[#allocation2 + $0x1d1] sm:$0x3f]
        %v1361 = vld [vmem:[#allocation2 + $0x1e1] sm:$0xff]
        %v1362 = vld [vmem:[#allocation2 + $0x1e9] sm:$0x3f]
        %v1363 = vld [vmem:[#allocation2 + $0x1f9] sm:$0xff]
        %v1364 = vld [vmem:[#allocation2 + $0x201] sm:$0x3f]
        %v1365 = vld [vmem:[#allocation2 + $0x211] sm:$0xff]
        %v1366 = vld [vmem:[#allocation2 + $0x219] sm:$0x3f]
        %v1367 = vld [vmem:[#allocation2 + $0x229] sm:$0xff]
        %v1368 = vld [vmem:[#allocation2 + $0x231] sm:$0x3f]
        %v1369 = vld [vmem:[#allocation2 + $0x241] sm:$0xff]
        %v1370 = vld [vmem:[#allocation2 + $0x249] sm:$0x3f]
        %v1371 = vld [vmem:[#allocation2 + $0x259] sm:$0xff]
        %v1372 = vld [vmem:[#allocation2 + $0x261] sm:$0x3f]
        %v1373 = vld [vmem:[#allocation2 + $0x271] sm:$0xff]
        %v1374 = vld [vmem:[#allocation2 + $0x279] sm:$0x3f]
        %v1375 = vld [vmem:[#allocation2 + $0x289] sm:$0xff]
        %v1376 = vld [vmem:[#allocation2 + $0x291] sm:$0x3f]
        %v1377 = vld [vmem:[#allocation2 + $0x2a1] sm:$0xff]
        %v1378 = vld [vmem:[#allocation2 + $0x2a9] sm:$0x3f]
        %v1379 = vld [vmem:[#allocation2 + $0x2b9] sm:$0xff]
        %v1380 = vld [vmem:[#allocation2 + $0x2c1] sm:$0x3f]
        %v1381 = vld [vmem:[#allocation2 + $0x2d1] sm:$0xff]
        %v1382 = vld [vmem:[#allocation2 + $0x2d9] sm:$0x3f]
        %v1383 = vld [vmem:[#allocation2 + $0x2e9] sm:$0xff]
        %v1384 = vld [vmem:[#allocation2 + $0x2f1] sm:$0x3f]
        %v1385 = vld [vmem:[#allocation2 + $0x301] sm:$0xff]
        %v1386 = vld [vmem:[#allocation2 + $0x309] sm:$0x3f]
        %v1387 = vld [vmem:[#allocation2 + $0x319] sm:$0xff]
        %v1388 = vld [vmem:[#allocation2 + $0x321] sm:$0x3f]
        %v1389 = vld [vmem:[#allocation2 + $0x331] sm:$0xff]
        %v1390 = vld [vmem:[#allocation2 + $0x339] sm:$0x3f]
        %v1391 = vld [vmem:[#allocation2 + $0x349] sm:$0xff]
        %v1392 = vld [vmem:[#allocation2 + $0x351] sm:$0x3f]
        %v1393 = vperm.slane %v736, 1
        %v1394 = vmul.f32 %v1321, %v1393
        %v1395 = vmul.f32 %v1322, %v1393
        %v1396 = vmul.f32 %v1323, %v1393
        %v1397 = vmul.f32 %v1324, %v1393
        %v1398 = vmul.f32 %v1325, %v1393
        %v1399 = vmul.f32 %v1326, %v1393
        %v1400 = vmul.f32 %v1327, %v1393
        %v1401 = vmul.f32 %v1328, %v1393
        %v1402 = vmul.f32 %v1329, %v1393
        %v1403 = vmul.f32 %v1330, %v1393
        %v1404 = vmul.f32 %v1331, %v1393
        %v1405 = vmul.f32 %v1332, %v1393
        %v1406 = vmul.f32 %v1333, %v1393
        %v1407 = vmul.f32 %v1334, %v1393
        %v1408 = vmul.f32 %v1335, %v1393
        %v1409 = vmul.f32 %v1336, %v1393
        %v1410 = vmul.f32 %v1337, %v1393
        %v1411 = vmul.f32 %v1338, %v1393
        %v1412 = vmul.f32 %v1339, %v1393
        %v1413 = vmul.f32 %v1340, %v1393
        %v1414 = vmul.f32 %v1341, %v1393
        %v1415 = vmul.f32 %v1342, %v1393
        %v1416 = vmul.f32 %v1343, %v1393
        %v1417 = vmul.f32 %v1344, %v1393
        %v1418 = vmul.f32 %v1345, %v1393
        %v1419 = vmul.f32 %v1346, %v1393
        %v1420 = vmul.f32 %v1347, %v1393
        %v1421 = vmul.f32 %v1348, %v1393
        %v1422 = vmul.f32 %v1357, %v1393
        %v1423 = vmul.f32 %v1358, %v1393
        %v1424 = vmul.f32 %v1359, %v1393
        %v1425 = vmul.f32 %v1360, %v1393
        %v1426 = vmul.f32 %v1361, %v1393
        %v1427 = vmul.f32 %v1362, %v1393
        %v1428 = vmul.f32 %v1363, %v1393
        %v1429 = vmul.f32 %v1364, %v1393
        %v1430 = vmul.f32 %v1365, %v1393
        %v1431 = vmul.f32 %v1366, %v1393
        %v1432 = vmul.f32 %v1367, %v1393
        %v1433 = vmul.f32 %v1368, %v1393
        %v1434 = vmul.f32 %v1369, %v1393
        %v1435 = vmul.f32 %v1370, %v1393
        %v1436 = vmul.f32 %v1371, %v1393
        %v1437 = vmul.f32 %v1372, %v1393
        %v1438 = vmul.f32 %v1373, %v1393
        %v1439 = vmul.f32 %v1374, %v1393
        %v1440 = vmul.f32 %v1375, %v1393
        %v1441 = vmul.f32 %v1376, %v1393
        %v1442 = vmul.f32 %v1377, %v1393
        %v1443 = vmul.f32 %v1378, %v1393
        %v1444 = vmul.f32 %v1379, %v1393
        %v1445 = vmul.f32 %v1380, %v1393
        %v1446 = vmul.f32 %v1381, %v1393
        %v1447 = vmul.f32 %v1382, %v1393
        %v1448 = vmul.f32 %v1383, %v1393
        %v1449 = vmul.f32 %v1384, %v1393
        %v1450 = vadd.f32 %v1265, %v1394
        %v1451 = vadd.f32 %v1266, %v1395
        %v1452 = vadd.f32 %v1267, %v1396
        %v1453 = vadd.f32 %v1268, %v1397
        %v1454 = vadd.f32 %v1269, %v1398
        %v1455 = vadd.f32 %v1270, %v1399
        %v1456 = vadd.f32 %v1271, %v1400
        %v1457 = vadd.f32 %v1272, %v1401
        %v1458 = vadd.f32 %v1273, %v1402
        %v1459 = vadd.f32 %v1274, %v1403
        %v1460 = vadd.f32 %v1275, %v1404
        %v1461 = vadd.f32 %v1276, %v1405
        %v1462 = vadd.f32 %v1277, %v1406
        %v1463 = vadd.f32 %v1278, %v1407
        %v1464 = vadd.f32 %v1279, %v1408
        %v1465 = vadd.f32 %v1280, %v1409
        %v1466 = vadd.f32 %v1281, %v1410
        %v1467 = vadd.f32 %v1282, %v1411
        %v1468 = vadd.f32 %v1283, %v1412
        %v1469 = vadd.f32 %v1284, %v1413
        %v1470 = vadd.f32 %v1285, %v1414
        %v1471 = vadd.f32 %v1286, %v1415
        %v1472 = vadd.f32 %v1287, %v1416
        %v1473 = vadd.f32 %v1288, %v1417
        %v1474 = vadd.f32 %v1289, %v1418
        %v1475 = vadd.f32 %v1290, %v1419
        %v1476 = vadd.f32 %v1291, %v1420
        %v1477 = vadd.f32 %v1292, %v1421
        %v1478 = vadd.f32 %v1293, %v1422
        %v1479 = vadd.f32 %v1294, %v1423
        %v1480 = vadd.f32 %v1295, %v1424
        %v1481 = vadd.f32 %v1296, %v1425
        %v1482 = vadd.f32 %v1297, %v1426
        %v1483 = vadd.f32 %v1298, %v1427
        %v1484 = vadd.f32 %v1299, %v1428
        %v1485 = vadd.f32 %v1300, %v1429
        %v1486 = vadd.f32 %v1301, %v1430
        %v1487 = vadd.f32 %v1302, %v1431
        %v1488 = vadd.f32 %v1303, %v1432
        %v1489 = vadd.f32 %v1304, %v1433
        %v1490 = vadd.f32 %v1305, %v1434
        %v1491 = vadd.f32 %v1306, %v1435
        %v1492 = vadd.f32 %v1307, %v1436
        %v1493 = vadd.f32 %v1308, %v1437
        %v1494 = vadd.f32 %v1309, %v1438
        %v1495 = vadd.f32 %v1310, %v1439
        %v1496 = vadd.f32 %v1311, %v1440
        %v1497 = vadd.f32 %v1312, %v1441
        %v1498 = vadd.f32 %v1313, %v1442
        %v1499 = vadd.f32 %v1314, %v1443
        %v1500 = vadd.f32 %v1315, %v1444
        %v1501 = vadd.f32 %v1316, %v1445
        %v1502 = vadd.f32 %v1317, %v1446
        %v1503 = vadd.f32 %v1318, %v1447
        %v1504 = vadd.f32 %v1319, %v1448
        %v1505 = vadd.f32 %v1320, %v1449
        %v1506 = vperm.slane %v736, 6
        %v1507 = vmul.f32 %v1323, %v1506
        %v1508 = vmul.f32 %v1324, %v1506
        %v1509 = vmul.f32 %v1325, %v1506
        %v1510 = vmul.f32 %v1326, %v1506
        %v1511 = vmul.f32 %v1327, %v1506
        %v1512 = vmul.f32 %v1328, %v1506
        %v1513 = vmul.f32 %v1329, %v1506
        %v1514 = vmul.f32 %v1330, %v1506
        %v1515 = vmul.f32 %v1331, %v1506
        %v1516 = vmul.f32 %v1332, %v1506
        %v1517 = vmul.f32 %v1333, %v1506
        %v1518 = vmul.f32 %v1334, %v1506
        %v1519 = vmul.f32 %v1335, %v1506
        %v1520 = vmul.f32 %v1336, %v1506
        %v1521 = vmul.f32 %v1337, %v1506
        %v1522 = vmul.f32 %v1338, %v1506
        %v1523 = vmul.f32 %v1339, %v1506
        %v1524 = vmul.f32 %v1340, %v1506
        %v1525 = vmul.f32 %v1341, %v1506
        %v1526 = vmul.f32 %v1342, %v1506
        %v1527 = vmul.f32 %v1343, %v1506
        %v1528 = vmul.f32 %v1344, %v1506
        %v1529 = vmul.f32 %v1345, %v1506
        %v1530 = vmul.f32 %v1346, %v1506
        %v1531 = vmul.f32 %v1347, %v1506
        %v1532 = vmul.f32 %v1348, %v1506
        %v1533 = vmul.f32 %v1349, %v1506
        %v1534 = vmul.f32 %v1350, %v1506
        %v1535 = vmul.f32 %v1359, %v1506
        %v1536 = vmul.f32 %v1360, %v1506
        %v1537 = vmul.f32 %v1361, %v1506
        %v1538 = vmul.f32 %v1362, %v1506
        %v1539 = vmul.f32 %v1363, %v1506
        %v1540 = vmul.f32 %v1364, %v1506
        %v1541 = vmul.f32 %v1365, %v1506
        %v1542 = vmul.f32 %v1366, %v1506
        %v1543 = vmul.f32 %v1367, %v1506
        %v1544 = vmul.f32 %v1368, %v1506
        %v1545 = vmul.f32 %v1369, %v1506
        %v1546 = vmul.f32 %v1370, %v1506
        %v1547 = vmul.f32 %v1371, %v1506
        %v1548 = vmul.f32 %v1372, %v1506
        %v1549 = vmul.f32 %v1373, %v1506
        %v1550 = vmul.f32 %v1374, %v1506
        %v1551 = vmul.f32 %v1375, %v1506
        %v1552 = vmul.f32 %v1376, %v1506
        %v1553 = vmul.f32 %v1377, %v1506
        %v1554 = vmul.f32 %v1378, %v1506
        %v1555 = vmul.f32 %v1379, %v1506
        %v1556 = vmul.f32 %v1380, %v1506
        %v1557 = vmul.f32 %v1381, %v1506
        %v1558 = vmul.f32 %v1382, %v1506
        %v1559 = vmul.f32 %v1383, %v1506
        %v1560 = vmul.f32 %v1384, %v1506
        %v1561 = vmul.f32 %v1385, %v1506
        %v1562 = vmul.f32 %v1386, %v1506
        %v1563 = vadd.f32 %v1450, %v1507
        %v1564 = vadd.f32 %v1451, %v1508
        %v1565 = vadd.f32 %v1452, %v1509
        %v1566 = vadd.f32 %v1453, %v1510
        %v1567 = vadd.f32 %v1454, %v1511
        %v1568 = vadd.f32 %v1455, %v1512
        %v1569 = vadd.f32 %v1456, %v1513
        %v1570 = vadd.f32 %v1457, %v1514
        %v1571 = vadd.f32 %v1458, %v1515
        %v1572 = vadd.f32 %v1459, %v1516
        %v1573 = vadd.f32 %v1460, %v1517
        %v1574 = vadd.f32 %v1461, %v1518
        %v1575 = vadd.f32 %v1462, %v1519
        %v1576 = vadd.f32 %v1463, %v1520
        %v1577 = vadd.f32 %v1464, %v1521
        %v1578 = vadd.f32 %v1465, %v1522
        %v1579 = vadd.f32 %v1466, %v1523
        %v1580 = vadd.f32 %v1467, %v1524
        %v1581 = vadd.f32 %v1468, %v1525
        %v1582 = vadd.f32 %v1469, %v1526
        %v1583 = vadd.f32 %v1470, %v1527
        %v1584 = vadd.f32 %v1471, %v1528
        %v1585 = vadd.f32 %v1472, %v1529
        %v1586 = vadd.f32 %v1473, %v1530
        %v1587 = vadd.f32 %v1474, %v1531
        %v1588 = vadd.f32 %v1475, %v1532
        %v1589 = vadd.f32 %v1476, %v1533
        %v1590 = vadd.f32 %v1477, %v1534
        %v1591 = vadd.f32 %v1478, %v1535
        %v1592 = vadd.f32 %v1479, %v1536
        %v1593 = vadd.f32 %v1480, %v1537
        %v1594 = vadd.f32 %v1481, %v1538
        %v1595 = vadd.f32 %v1482, %v1539
        %v1596 = vadd.f32 %v1483, %v1540
        %v1597 = vadd.f32 %v1484, %v1541
        %v1598 = vadd.f32 %v1485, %v1542
        %v1599 = vadd.f32 %v1486, %v1543
        %v1600 = vadd.f32 %v1487, %v1544
        %v1601 = vadd.f32 %v1488, %v1545
        %v1602 = vadd.f32 %v1489, %v1546
        %v1603 = vadd.f32 %v1490, %v1547
        %v1604 = vadd.f32 %v1491, %v1548
        %v1605 = vadd.f32 %v1492, %v1549
        %v1606 = vadd.f32 %v1493, %v1550
        %v1607 = vadd.f32 %v1494, %v1551
        %v1608 = vadd.f32 %v1495, %v1552
        %v1609 = vadd.f32 %v1496, %v1553
        %v1610 = vadd.f32 %v1497, %v1554
        %v1611 = vadd.f32 %v1498, %v1555
        %v1612 = vadd.f32 %v1499, %v1556
        %v1613 = vadd.f32 %v1500, %v1557
        %v1614 = vadd.f32 %v1501, %v1558
        %v1615 = vadd.f32 %v1502, %v1559
        %v1616 = vadd.f32 %v1503, %v1560
        %v1617 = vadd.f32 %v1504, %v1561
        %v1618 = vadd.f32 %v1505, %v1562
        %v1619 = vperm.slane %v737, 3
        %v1620 = vmul.f32 %v1325, %v1619
        %v1621 = vmul.f32 %v1326, %v1619
        %v1622 = vmul.f32 %v1327, %v1619
        %v1623 = vmul.f32 %v1328, %v1619
        %v1624 = vmul.f32 %v1329, %v1619
        %v1625 = vmul.f32 %v1330, %v1619
        %v1626 = vmul.f32 %v1331, %v1619
        %v1627 = vmul.f32 %v1332, %v1619
        %v1628 = vmul.f32 %v1333, %v1619
        %v1629 = vmul.f32 %v1334, %v1619
        %v1630 = vmul.f32 %v1335, %v1619
        %v1631 = vmul.f32 %v1336, %v1619
        %v1632 = vmul.f32 %v1337, %v1619
        %v1633 = vmul.f32 %v1338, %v1619
        %v1634 = vmul.f32 %v1339, %v1619
        %v1635 = vmul.f32 %v1340, %v1619
        %v1636 = vmul.f32 %v1341, %v1619
        %v1637 = vmul.f32 %v1342, %v1619
        %v1638 = vmul.f32 %v1343, %v1619
        %v1639 = vmul.f32 %v1344, %v1619
        %v1640 = vmul.f32 %v1345, %v1619
        %v1641 = vmul.f32 %v1346, %v1619
        %v1642 = vmul.f32 %v1347, %v1619
        %v1643 = vmul.f32 %v1348, %v1619
        %v1644 = vmul.f32 %v1349, %v1619
        %v1645 = vmul.f32 %v1350, %v1619
        %v1646 = vmul.f32 %v1351, %v1619
        %v1647 = vmul.f32 %v1352, %v1619
        %v1648 = vmul.f32 %v1361, %v1619
        %v1649 = vmul.f32 %v1362, %v1619
        %v1650 = vmul.f32 %v1363, %v1619
        %v1651 = vmul.f32 %v1364, %v1619
        %v1652 = vmul.f32 %v1365, %v1619
        %v1653 = vmul.f32 %v1366, %v1619
        %v1654 = vmul.f32 %v1367, %v1619
        %v1655 = vmul.f32 %v1368, %v1619
        %v1656 = vmul.f32 %v1369, %v1619
        %v1657 = vmul.f32 %v1370, %v1619
        %v1658 = vmul.f32 %v1371, %v1619
        %v1659 = vmul.f32 %v1372, %v1619
        %v1660 = vmul.f32 %v1373, %v1619
        %v1661 = vmul.f32 %v1374, %v1619
        %v1662 = vmul.f32 %v1375, %v1619
        %v1663 = vmul.f32 %v1376, %v1619
        %v1664 = vmul.f32 %v1377, %v1619
        %v1665 = vmul.f32 %v1378, %v1619
        %v1666 = vmul.f32 %v1379, %v1619
        %v1667 = vmul.f32 %v1380, %v1619
        %v1668 = vmul.f32 %v1381, %v1619
        %v1669 = vmul.f32 %v1382, %v1619
        %v1670 = vmul.f32 %v1383, %v1619
        %v1671 = vmul.f32 %v1384, %v1619
        %v1672 = vmul.f32 %v1385, %v1619
        %v1673 = vmul.f32 %v1386, %v1619
        %v1674 = vmul.f32 %v1387, %v1619
        %v1675 = vmul.f32 %v1388, %v1619
        %v1676 = vadd.f32 %v1563, %v1620
        %v1677 = vadd.f32 %v1564, %v1621
        %v1678 = vadd.f32 %v1565, %v1622
        %v1679 = vadd.f32 %v1566, %v1623
        %v1680 = vadd.f32 %v1567, %v1624
        %v1681 = vadd.f32 %v1568, %v1625
        %v1682 = vadd.f32 %v1569, %v1626
        %v1683 = vadd.f32 %v1570, %v1627
        %v1684 = vadd.f32 %v1571, %v1628
        %v1685 = vadd.f32 %v1572, %v1629
        %v1686 = vadd.f32 %v1573, %v1630
        %v1687 = vadd.f32 %v1574, %v1631
        %v1688 = vadd.f32 %v1575, %v1632
        %v1689 = vadd.f32 %v1576, %v1633
        %v1690 = vadd.f32 %v1577, %v1634
        %v1691 = vadd.f32 %v1578, %v1635
        %v1692 = vadd.f32 %v1579, %v1636
        %v1693 = vadd.f32 %v1580, %v1637
        %v1694 = vadd.f32 %v1581, %v1638
        %v1695 = vadd.f32 %v1582, %v1639
        %v1696 = vadd.f32 %v1583, %v1640
        %v1697 = vadd.f32 %v1584, %v1641
        %v1698 = vadd.f32 %v1585, %v1642
        %v1699 = vadd.f32 %v1586, %v1643
        %v1700 = vadd.f32 %v1587, %v1644
        %v1701 = vadd.f32 %v1588, %v1645
        %v1702 = vadd.f32 %v1589, %v1646
        %v1703 = vadd.f32 %v1590, %v1647
        %v1704 = vadd.f32 %v1591, %v1648
        %v1705 = vadd.f32 %v1592, %v1649
        %v1706 = vadd.f32 %v1593, %v1650
        %v1707 = vadd.f32 %v1594, %v1651
        %v1708 = vadd.f32 %v1595, %v1652
        %v1709 = vadd.f32 %v1596, %v1653
        %v1710 = vadd.f32 %v1597, %v1654
        %v1711 = vadd.f32 %v1598, %v1655
        %v1712 = vadd.f32 %v1599, %v1656
        %v1713 = vadd.f32 %v1600, %v1657
        %v1714 = vadd.f32 %v1601, %v1658
        %v1715 = vadd.f32 %v1602, %v1659
        %v1716 = vadd.f32 %v1603, %v1660
        %v1717 = vadd.f32 %v1604, %v1661
        %v1718 = vadd.f32 %v1605, %v1662
        %v1719 = vadd.f32 %v1606, %v1663
        %v1720 = vadd.f32 %v1607, %v1664
        %v1721 = vadd.f32 %v1608, %v1665
        %v1722 = vadd.f32 %v1609, %v1666
        %v1723 = vadd.f32 %v1610, %v1667
        %v1724 = vadd.f32 %v1611, %v1668
        %v1725 = vadd.f32 %v1612, %v1669
        %v1726 = vadd.f32 %v1613, %v1670
        %v1727 = vadd.f32 %v1614, %v1671
        %v1728 = vadd.f32 %v1615, %v1672
        %v1729 = vadd.f32 %v1616, %v1673
        %v1730 = vadd.f32 %v1617, %v1674
        %v1731 = vadd.f32 %v1618, %v1675
        %v1732 = vperm.slane %v738, 0
        %v1733 = vmul.f32 %v1327, %v1732
        %v1734 = vmul.f32 %v1328, %v1732
        %v1735 = vmul.f32 %v1329, %v1732
        %v1736 = vmul.f32 %v1330, %v1732
        %v1737 = vmul.f32 %v1331, %v1732
        %v1738 = vmul.f32 %v1332, %v1732
        %v1739 = vmul.f32 %v1333, %v1732
        %v1740 = vmul.f32 %v1334, %v1732
        %v1741 = vmul.f32 %v1335, %v1732
        %v1742 = vmul.f32 %v1336, %v1732
        %v1743 = vmul.f32 %v1337, %v1732
        %v1744 = vmul.f32 %v1338, %v1732
        %v1745 = vmul.f32 %v1339, %v1732
        %v1746 = vmul.f32 %v1340, %v1732
        %v1747 = vmul.f32 %v1341, %v1732
        %v1748 = vmul.f32 %v1342, %v1732
        %v1749 = vmul.f32 %v1343, %v1732
        %v1750 = vmul.f32 %v1344, %v1732
        %v1751 = vmul.f32 %v1345, %v1732
        %v1752 = vmul.f32 %v1346, %v1732
        %v1753 = vmul.f32 %v1347, %v1732
        %v1754 = vmul.f32 %v1348, %v1732
        %v1755 = vmul.f32 %v1349, %v1732
        %v1756 = vmul.f32 %v1350, %v1732
        %v1757 = vmul.f32 %v1351, %v1732
        %v1758 = vmul.f32 %v1352, %v1732
        %v1759 = vmul.f32 %v1353, %v1732
        %v1760 = vmul.f32 %v1354, %v1732
        %v1761 = vmul.f32 %v1363, %v1732
        %v1762 = vmul.f32 %v1364, %v1732
        %v1763 = vmul.f32 %v1365, %v1732
        %v1764 = vmul.f32 %v1366, %v1732
        %v1765 = vmul.f32 %v1367, %v1732
        %v1766 = vmul.f32 %v1368, %v1732
        %v1767 = vmul.f32 %v1369, %v1732
        %v1768 = vmul.f32 %v1370, %v1732
        %v1769 = vmul.f32 %v1371, %v1732
        %v1770 = vmul.f32 %v1372, %v1732
        %v1771 = vmul.f32 %v1373, %v1732
        %v1772 = vmul.f32 %v1374, %v1732
        %v1773 = vmul.f32 %v1375, %v1732
        %v1774 = vmul.f32 %v1376, %v1732
        %v1775 = vmul.f32 %v1377, %v1732
        %v1776 = vmul.f32 %v1378, %v1732
        %v1777 = vmul.f32 %v1379, %v1732
        %v1778 = vmul.f32 %v1380, %v1732
        %v1779 = vmul.f32 %v1381, %v1732
        %v1780 = vmul.f32 %v1382, %v1732
        %v1781 = vmul.f32 %v1383, %v1732
        %v1782 = vmul.f32 %v1384, %v1732
        %v1783 = vmul.f32 %v1385, %v1732
        %v1784 = vmul.f32 %v1386, %v1732
        %v1785 = vmul.f32 %v1387, %v1732
        %v1786 = vmul.f32 %v1388, %v1732
        %v1787 = vmul.f32 %v1389, %v1732
        %v1788 = vmul.f32 %v1390, %v1732
        %v1789 = vadd.f32 %v1676, %v1733
        %v1790 = vadd.f32 %v1677, %v1734
        %v1791 = vadd.f32 %v1678, %v1735
        %v1792 = vadd.f32 %v1679, %v1736
        %v1793 = vadd.f32 %v1680, %v1737
        %v1794 = vadd.f32 %v1681, %v1738
        %v1795 = vadd.f32 %v1682, %v1739
        %v1796 = vadd.f32 %v1683, %v1740
        %v1797 = vadd.f32 %v1684, %v1741
        %v1798 = vadd.f32 %v1685, %v1742
        %v1799 = vadd.f32 %v1686, %v1743
        %v1800 = vadd.f32 %v1687, %v1744
        %v1801 = vadd.f32 %v1688, %v1745
        %v1802 = vadd.f32 %v1689, %v1746
        %v1803 = vadd.f32 %v1690, %v1747
        %v1804 = vadd.f32 %v1691, %v1748
        %v1805 = vadd.f32 %v1692, %v1749
        %v1806 = vadd.f32 %v1693, %v1750
        %v1807 = vadd.f32 %v1694, %v1751
        %v1808 = vadd.f32 %v1695, %v1752
        %v1809 = vadd.f32 %v1696, %v1753
        %v1810 = vadd.f32 %v1697, %v1754
        %v1811 = vadd.f32 %v1698, %v1755
        %v1812 = vadd.f32 %v1699, %v1756
        %v1813 = vadd.f32 %v1700, %v1757
        %v1814 = vadd.f32 %v1701, %v1758
        %v1815 = vadd.f32 %v1702, %v1759
        %v1816 = vadd.f32 %v1703, %v1760
        %v1817 = vadd.f32 %v1704, %v1761
        %v1818 = vadd.f32 %v1705, %v1762
        %v1819 = vadd.f32 %v1706, %v1763
        %v1820 = vadd.f32 %v1707, %v1764
        %v1821 = vadd.f32 %v1708, %v1765
        %v1822 = vadd.f32 %v1709, %v1766
        %v1823 = vadd.f32 %v1710, %v1767
        %v1824 = vadd.f32 %v1711, %v1768
        %v1825 = vadd.f32 %v1712, %v1769
        %v1826 = vadd.f32 %v1713, %v1770
        %v1827 = vadd.f32 %v1714, %v1771
        %v1828 = vadd.f32 %v1715, %v1772
        %v1829 = vadd.f32 %v1716, %v1773
        %v1830 = vadd.f32 %v1717, %v1774
        %v1831 = vadd.f32 %v1718, %v1775
        %v1832 = vadd.f32 %v1719, %v1776
        %v1833 = vadd.f32 %v1720, %v1777
        %v1834 = vadd.f32 %v1721, %v1778
        %v1835 = vadd.f32 %v1722, %v1779
        %v1836 = vadd.f32 %v1723, %v1780
        %v1837 = vadd.f32 %v1724, %v1781
        %v1838 = vadd.f32 %v1725, %v1782
        %v1839 = vadd.f32 %v1726, %v1783
        %v1840 = vadd.f32 %v1727, %v1784
        %v1841 = vadd.f32 %v1728, %v1785
        %v1842 = vadd.f32 %v1729, %v1786
        %v1843 = vadd.f32 %v1730, %v1787
        %v1844 = vadd.f32 %v1731, %v1788
        %v1845 = vperm.slane %v738, 5
        %v1846 = vmul.f32 %v1329, %v1845
        %v1847 = vmul.f32 %v1330, %v1845
        %v1848 = vmul.f32 %v1331, %v1845
        %v1849 = vmul.f32 %v1332, %v1845
        %v1850 = vmul.f32 %v1333, %v1845
        %v1851 = vmul.f32 %v1334, %v1845
        %v1852 = vmul.f32 %v1335, %v1845
        %v1853 = vmul.f32 %v1336, %v1845
        %v1854 = vmul.f32 %v1337, %v1845
        %v1855 = vmul.f32 %v1338, %v1845
        %v1856 = vmul.f32 %v1339, %v1845
        %v1857 = vmul.f32 %v1340, %v1845
        %v1858 = vmul.f32 %v1341, %v1845
        %v1859 = vmul.f32 %v1342, %v1845
        %v1860 = vmul.f32 %v1343, %v1845
        %v1861 = vmul.f32 %v1344, %v1845
        %v1862 = vmul.f32 %v1345, %v1845
        %v1863 = vmul.f32 %v1346, %v1845
        %v1864 = vmul.f32 %v1347, %v1845
        %v1865 = vmul.f32 %v1348, %v1845
        %v1866 = vmul.f32 %v1349, %v1845
        %v1867 = vmul.f32 %v1350, %v1845
        %v1868 = vmul.f32 %v1351, %v1845
        %v1869 = vmul.f32 %v1352, %v1845
        %v1870 = vmul.f32 %v1353, %v1845
        %v1871 = vmul.f32 %v1354, %v1845
        %v1872 = vmul.f32 %v1355, %v1845
        %v1873 = vmul.f32 %v1356, %v1845
        %v1874 = vmul.f32 %v1365, %v1845
        %v1875 = vmul.f32 %v1366, %v1845
        %v1876 = vmul.f32 %v1367, %v1845
        %v1877 = vmul.f32 %v1368, %v1845
        %v1878 = vmul.f32 %v1369, %v1845
        %v1879 = vmul.f32 %v1370, %v1845
        %v1880 = vmul.f32 %v1371, %v1845
        %v1881 = vmul.f32 %v1372, %v1845
        %v1882 = vmul.f32 %v1373, %v1845
        %v1883 = vmul.f32 %v1374, %v1845
        %v1884 = vmul.f32 %v1375, %v1845
        %v1885 = vmul.f32 %v1376, %v1845
        %v1886 = vmul.f32 %v1377, %v1845
        %v1887 = vmul.f32 %v1378, %v1845
        %v1888 = vmul.f32 %v1379, %v1845
        %v1889 = vmul.f32 %v1380, %v1845
        %v1890 = vmul.f32 %v1381, %v1845
        %v1891 = vmul.f32 %v1382, %v1845
        %v1892 = vmul.f32 %v1383, %v1845
        %v1893 = vmul.f32 %v1384, %v1845
        %v1894 = vmul.f32 %v1385, %v1845
        %v1895 = vmul.f32 %v1386, %v1845
        %v1896 = vmul.f32 %v1387, %v1845
        %v1897 = vmul.f32 %v1388, %v1845
        %v1898 = vmul.f32 %v1389, %v1845
        %v1899 = vmul.f32 %v1390, %v1845
        %v1900 = vmul.f32 %v1391, %v1845
        %v1901 = vmul.f32 %v1392, %v1845
        %v1902 = vadd.f32 %v1789, %v1846
        %v1903 = vadd.f32 %v1790, %v1847
        %v1904 = vadd.f32 %v1791, %v1848
        %v1905 = vadd.f32 %v1792, %v1849
        %v1906 = vadd.f32 %v1793, %v1850
        %v1907 = vadd.f32 %v1794, %v1851
        %v1908 = vadd.f32 %v1795, %v1852
        %v1909 = vadd.f32 %v1796, %v1853
        %v1910 = vadd.f32 %v1797, %v1854
        %v1911 = vadd.f32 %v1798, %v1855
        %v1912 = vadd.f32 %v1799, %v1856
        %v1913 = vadd.f32 %v1800, %v1857
        %v1914 = vadd.f32 %v1801, %v1858
        %v1915 = vadd.f32 %v1802, %v1859
        %v1916 = vadd.f32 %v1803, %v1860
        %v1917 = vadd.f32 %v1804, %v1861
        %v1918 = vadd.f32 %v1805, %v1862
        %v1919 = vadd.f32 %v1806, %v1863
        %v1920 = vadd.f32 %v1807, %v1864
        %v1921 = vadd.f32 %v1808, %v1865
        %v1922 = vadd.f32 %v1809, %v1866
        %v1923 = vadd.f32 %v1810, %v1867
        %v1924 = vadd.f32 %v1811, %v1868
        %v1925 = vadd.f32 %v1812, %v1869
        %v1926 = vadd.f32 %v1813, %v1870
        %v1927 = vadd.f32 %v1814, %v1871
        %v1928 = vadd.f32 %v1815, %v1872
        %v1929 = vadd.f32 %v1816, %v1873
        %v1930 = vadd.f32 %v1817, %v1874
        %v1931 = vadd.f32 %v1818, %v1875
        %v1932 = vadd.f32 %v1819, %v1876
        %v1933 = vadd.f32 %v1820, %v1877
        %v1934 = vadd.f32 %v1821, %v1878
        %v1935 = vadd.f32 %v1822, %v1879
        %v1936 = vadd.f32 %v1823, %v1880
        %v1937 = vadd.f32 %v1824, %v1881
        %v1938 = vadd.f32 %v1825, %v1882
        %v1939 = vadd.f32 %v1826, %v1883
        %v1940 = vadd.f32 %v1827, %v1884
        %v1941 = vadd.f32 %v1828, %v1885
        %v1942 = vadd.f32 %v1829, %v1886
        %v1943 = vadd.f32 %v1830, %v1887
        %v1944 = vadd.f32 %v1831, %v1888
        %v1945 = vadd.f32 %v1832, %v1889
        %v1946 = vadd.f32 %v1833, %v1890
        %v1947 = vadd.f32 %v1834, %v1891
        %v1948 = vadd.f32 %v1835, %v1892
        %v1949 = vadd.f32 %v1836, %v1893
        %v1950 = vadd.f32 %v1837, %v1894
        %v1951 = vadd.f32 %v1838, %v1895
        %v1952 = vadd.f32 %v1839, %v1896
        %v1953 = vadd.f32 %v1840, %v1897
        %v1954 = vadd.f32 %v1841, %v1898
        %v1955 = vadd.f32 %v1842, %v1899
        %v1956 = vadd.f32 %v1843, %v1900
        %v1957 = vadd.f32 %v1844, %v1901
        %v1958 = vld [vmem:[#allocation2 + $0x2] sm:$0xff]
        %v1959 = vld [vmem:[#allocation2 + $0xa] sm:$0x3f]
        %v1960 = vld [vmem:[#allocation2 + $0x1a] sm:$0xff]
        %v1961 = vld [vmem:[#allocation2 + $0x22] sm:$0x3f]
        %v1962 = vld [vmem:[#allocation2 + $0x32] sm:$0xff]
        %v1963 = vld [vmem:[#allocation2 + $0x3a] sm:$0x3f]
        %v1964 = vld [vmem:[#allocation2 + $0x4a] sm:$0xff]
        %v1965 = vld [vmem:[#allocation2 + $0x52] sm:$0x3f]
        %v1966 = vld [vmem:[#allocation2 + $0x62] sm:$0xff]
        %v1967 = vld [vmem:[#allocation2 + $0x6a] sm:$0x3f]
        %v1968 = vld [vmem:[#allocation2 + $0x7a] sm:$0xff]
        %v1969 = vld [vmem:[#allocation2 + $0x82] sm:$0x3f]
        %v1970 = vld [vmem:[#allocation2 + $0x92] sm:$0xff]
        %v1971 = vld [vmem:[#allocation2 + $0x9a] sm:$0x3f]
        %v1972 = vld [vmem:[#allocation2 + $0xaa] sm:$0xff]
        %v1973 = vld [vmem:[#allocation2 + $0xb2] sm:$0x3f]
        %v1974 = vld [vmem:[#allocation2 + $0xc2] sm:$0xff]
        %v1975 = vld [vmem:[#allocation2 + $0xca] sm:$0x3f]
        %v1976 = vld [vmem:[#allocation2 + $0xda] sm:$0xff]
        %v1977 = vld [vmem:[#allocation2 + $0xe2] sm:$0x3f]
        %v1978 = vld [vmem:[#allocation2 + $0xf2] sm:$0xff]
        %v1979 = vld [vmem:[#allocation2 + $0xfa] sm:$0x3f]
        %v1980 = vld [vmem:[#allocation2 + $0x10a] sm:$0xff]
        %v1981 = vld [vmem:[#allocation2 + $0x112] sm:$0x3f]
        %v1982 = vld [vmem:[#allocation2 + $0x122] sm:$0xff]
        %v1983 = vld [vmem:[#allocation2 + $0x12a] sm:$0x3f]
        %v1984 = vld [vmem:[#allocation2 + $0x13a] sm:$0xff]
        %v1985 = vld [vmem:[#allocation2 + $0x142] sm:$0x3f]
        %v1986 = vld [vmem:[#allocation2 + $0x152] sm:$0xff]
        %v1987 = vld [vmem:[#allocation2 + $0x15a] sm:$0x3f]
        %v1988 = vld [vmem:[#allocation2 + $0x16a] sm:$0xff]
        %v1989 = vld [vmem:[#allocation2 + $0x172] sm:$0x3f]
        %v1990 = vld [vmem:[#allocation2 + $0x182] sm:$0xff]
        %v1991 = vld [vmem:[#allocation2 + $0x18a] sm:$0x3f]
        %v1992 = vld [vmem:[#allocation2 + $0x19a] sm:$0xff]
        %v1993 = vld [vmem:[#allocation2 + $0x1a2] sm:$0x3f]
        %v1994 = vld [vmem:[#allocation2 + $0x1b2] sm:$0xff]
        %v1995 = vld [vmem:[#allocation2 + $0x1ba] sm:$0x3f]
        %v1996 = vld [vmem:[#allocation2 + $0x1ca] sm:$0xff]
        %v1997 = vld [vmem:[#allocation2 + $0x1d2] sm:$0x3f]
        %v1998 = vld [vmem:[#allocation2 + $0x1e2] sm:$0xff]
        %v1999 = vld [vmem:[#allocation2 + $0x1ea] sm:$0x3f]
        %v2000 = vld [vmem:[#allocation2 + $0x1fa] sm:$0xff]
        %v2001 = vld [vmem:[#allocation2 + $0x202] sm:$0x3f]
        %v2002 = vld [vmem:[#allocation2 + $0x212] sm:$0xff]
        %v2003 = vld [vmem:[#allocation2 + $0x21a] sm:$0x3f]
        %v2004 = vld [vmem:[#allocation2 + $0x22a] sm:$0xff]
        %v2005 = vld [vmem:[#allocation2 + $0x232] sm:$0x3f]
        %v2006 = vld [vmem:[#allocation2 + $0x242] sm:$0xff]
        %v2007 = vld [vmem:[#allocation2 + $0x24a] sm:$0x3f]
        %v2008 = vld [vmem:[#allocation2 + $0x25a] sm:$0xff]
        %v2009 = vld [vmem:[#allocation2 + $0x262] sm:$0x3f]
        %v2010 = vld [vmem:[#allocation2 + $0x272] sm:$0xff]
        %v2011 = vld [vmem:[#allocation2 + $0x27a] sm:$0x3f]
        %v2012 = vld [vmem:[#allocation2 + $0x28a] sm:$0xff]
        %v2013 = vld [vmem:[#allocation2 + $0x292] sm:$0x3f]
        %v2014 = vld [vmem:[#allocation2 + $0x2a2] sm:$0xff]
        %v2015 = vld [vmem:[#allocation2 + $0x2aa] sm:$0x3f]
        %v2016 = vld [vmem:[#allocation2 + $0x2ba] sm:$0xff]
        %v2017 = vld [vmem:[#allocation2 + $0x2c2] sm:$0x3f]
        %v2018 = vld [vmem:[#allocation2 + $0x2d2] sm:$0xff]
        %v2019 = vld [vmem:[#allocation2 + $0x2da] sm:$0x3f]
        %v2020 = vld [vmem:[#allocation2 + $0x2ea] sm:$0xff]
        %v2021 = vld [vmem:[#allocation2 + $0x2f2] sm:$0x3f]
        %v2022 = vld [vmem:[#allocation2 + $0x302] sm:$0xff]
        %v2023 = vld [vmem:[#allocation2 + $0x30a] sm:$0x3f]
        %v2024 = vld [vmem:[#allocation2 + $0x31a] sm:$0xff]
        %v2025 = vld [vmem:[#allocation2 + $0x322] sm:$0x3f]
        %v2026 = vld [vmem:[#allocation2 + $0x332] sm:$0xff]
        %v2027 = vld [vmem:[#allocation2 + $0x33a] sm:$0x3f]
        %v2028 = vld [vmem:[#allocation2 + $0x34a] sm:$0xff]
        %v2029 = vld [vmem:[#allocation2 + $0x352] sm:$0x3f]
        %v2030 = vperm.slane %v736, 2
        %v2031 = vmul.f32 %v1958, %v2030
        %v2032 = vmul.f32 %v1959, %v2030
        %v2033 = vmul.f32 %v1960, %v2030
        %v2034 = vmul.f32 %v1961, %v2030
        %v2035 = vmul.f32 %v1962, %v2030
        %v2036 = vmul.f32 %v1963, %v2030
        %v2037 = vmul.f32 %v1964, %v2030
        %v2038 = vmul.f32 %v1965, %v2030
        %v2039 = vmul.f32 %v1966, %v2030
        %v2040 = vmul.f32 %v1967, %v2030
        %v2041 = vmul.f32 %v1968, %v2030
        %v2042 = vmul.f32 %v1969, %v2030
        %v2043 = vmul.f32 %v1970, %v2030
        %v2044 = vmul.f32 %v1971, %v2030
        %v2045 = vmul.f32 %v1972, %v2030
        %v2046 = vmul.f32 %v1973, %v2030
        %v2047 = vmul.f32 %v1974, %v2030
        %v2048 = vmul.f32 %v1975, %v2030
        %v2049 = vmul.f32 %v1976, %v2030
        %v2050 = vmul.f32 %v1977, %v2030
        %v2051 = vmul.f32 %v1978, %v2030
        %v2052 = vmul.f32 %v1979, %v2030
        %v2053 = vmul.f32 %v1980, %v2030
        %v2054 = vmul.f32 %v1981, %v2030
        %v2055 = vmul.f32 %v1982, %v2030
        %v2056 = vmul.f32 %v1983, %v2030
        %v2057 = vmul.f32 %v1984, %v2030
        %v2058 = vmul.f32 %v1985, %v2030
        %v2059 = vmul.f32 %v1994, %v2030
        %v2060 = vmul.f32 %v1995, %v2030
        %v2061 = vmul.f32 %v1996, %v2030
        %v2062 = vmul.f32 %v1997, %v2030
        %v2063 = vmul.f32 %v1998, %v2030
        %v2064 = vmul.f32 %v1999, %v2030
        %v2065 = vmul.f32 %v2000, %v2030
        %v2066 = vmul.f32 %v2001, %v2030
        %v2067 = vmul.f32 %v2002, %v2030
        %v2068 = vmul.f32 %v2003, %v2030
        %v2069 = vmul.f32 %v2004, %v2030
        %v2070 = vmul.f32 %v2005, %v2030
        %v2071 = vmul.f32 %v2006, %v2030
        %v2072 = vmul.f32 %v2007, %v2030
        %v2073 = vmul.f32 %v2008, %v2030
        %v2074 = vmul.f32 %v2009, %v2030
        %v2075 = vmul.f32 %v2010, %v2030
        %v2076 = vmul.f32 %v2011, %v2030
        %v2077 = vmul.f32 %v2012, %v2030
        %v2078 = vmul.f32 %v2013, %v2030
        %v2079 = vmul.f32 %v2014, %v2030
        %v2080 = vmul.f32 %v2015, %v2030
        %v2081 = vmul.f32 %v2016, %v2030
        %v2082 = vmul.f32 %v2017, %v2030
        %v2083 = vmul.f32 %v2018, %v2030
        %v2084 = vmul.f32 %v2019, %v2030
        %v2085 = vmul.f32 %v2020, %v2030
        %v2086 = vmul.f32 %v2021, %v2030
        %v2087 = vadd.f32 %v1902, %v2031
        %v2088 = vadd.f32 %v1903, %v2032
        %v2089 = vadd.f32 %v1904, %v2033
        %v2090 = vadd.f32 %v1905, %v2034
        %v2091 = vadd.f32 %v1906, %v2035
        %v2092 = vadd.f32 %v1907, %v2036
        %v2093 = vadd.f32 %v1908, %v2037
        %v2094 = vadd.f32 %v1909, %v2038
        %v2095 = vadd.f32 %v1910, %v2039
        %v2096 = vadd.f32 %v1911, %v2040
        %v2097 = vadd.f32 %v1912, %v2041
        %v2098 = vadd.f32 %v1913, %v2042
        %v2099 = vadd.f32 %v1914, %v2043
        %v2100 = vadd.f32 %v1915, %v2044
        %v2101 = vadd.f32 %v1916, %v2045
        %v2102 = vadd.f32 %v1917, %v2046
        %v2103 = vadd.f32 %v1918, %v2047
        %v2104 = vadd.f32 %v1919, %v2048
        %v2105 = vadd.f32 %v1920, %v2049
        %v2106 = vadd.f32 %v1921, %v2050
        %v2107 = vadd.f32 %v1922, %v2051
        %v2108 = vadd.f32 %v1923, %v2052
        %v2109 = vadd.f32 %v1924, %v2053
        %v2110 = vadd.f32 %v1925, %v2054
        %v2111 = vadd.f32 %v1926, %v2055
        %v2112 = vadd.f32 %v1927, %v2056
        %v2113 = vadd.f32 %v1928, %v2057
        %v2114 = vadd.f32 %v1929, %v2058
        %v2115 = vadd.f32 %v1930, %v2059
        %v2116 = vadd.f32 %v1931, %v2060
        %v2117 = vadd.f32 %v1932, %v2061
        %v2118 = vadd.f32 %v1933, %v2062
        %v2119 = vadd.f32 %v1934, %v2063
        %v2120 = vadd.f32 %v1935, %v2064
        %v2121 = vadd.f32 %v1936, %v2065
        %v2122 = vadd.f32 %v1937, %v2066
        %v2123 = vadd.f32 %v1938, %v2067
        %v2124 = vadd.f32 %v1939, %v2068
        %v2125 = vadd.f32 %v1940, %v2069
        %v2126 = vadd.f32 %v1941, %v2070
        %v2127 = vadd.f32 %v1942, %v2071
        %v2128 = vadd.f32 %v1943, %v2072
        %v2129 = vadd.f32 %v1944, %v2073
        %v2130 = vadd.f32 %v1945, %v2074
        %v2131 = vadd.f32 %v1946, %v2075
        %v2132 = vadd.f32 %v1947, %v2076
        %v2133 = vadd.f32 %v1948, %v2077
        %v2134 = vadd.f32 %v1949, %v2078
        %v2135 = vadd.f32 %v1950, %v2079
        %v2136 = vadd.f32 %v1951, %v2080
        %v2137 = vadd.f32 %v1952, %v2081
        %v2138 = vadd.f32 %v1953, %v2082
        %v2139 = vadd.f32 %v1954, %v2083
        %v2140 = vadd.f32 %v1955, %v2084
        %v2141 = vadd.f32 %v1956, %v2085
        %v2142 = vadd.f32 %v1957, %v2086
        %v2143 = vperm.slane %v736, 7
        %v2144 = vmul.f32 %v1960, %v2143
        %v2145 = vmul.f32 %v1961, %v2143
        %v2146 = vmul.f32 %v1962, %v2143
        %v2147 = vmul.f32 %v1963, %v2143
        %v2148 = vmul.f32 %v1964, %v2143
        %v2149 = vmul.f32 %v1965, %v2143
        %v2150 = vmul.f32 %v1966, %v2143
        %v2151 = vmul.f32 %v1967, %v2143
        %v2152 = vmul.f32 %v1968, %v2143
        %v2153 = vmul.f32 %v1969, %v2143
        %v2154 = vmul.f32 %v1970, %v2143
        %v2155 = vmul.f32 %v1971, %v2143
        %v2156 = vmul.f32 %v1972, %v2143
        %v2157 = vmul.f32 %v1973, %v2143
        %v2158 = vmul.f32 %v1974, %v2143
        %v2159 = vmul.f32 %v1975, %v2143
        %v2160 = vmul.f32 %v1976, %v2143
        %v2161 = vmul.f32 %v1977, %v2143
        %v2162 = vmul.f32 %v1978, %v2143
        %v2163 = vmul.f32 %v1979, %v2143
        %v2164 = vmul.f32 %v1980, %v2143
        %v2165 = vmul.f32 %v1981, %v2143
        %v2166 = vmul.f32 %v1982, %v2143
        %v2167 = vmul.f32 %v1983, %v2143
        %v2168 = vmul.f32 %v1984, %v2143
        %v2169 = vmul.f32 %v1985, %v2143
        %v2170 = vmul.f32 %v1986, %v2143
        %v2171 = vmul.f32 %v1987, %v2143
        %v2172 = vmul.f32 %v1996, %v2143
        %v2173 = vmul.f32 %v1997, %v2143
        %v2174 = vmul.f32 %v1998, %v2143
        %v2175 = vmul.f32 %v1999, %v2143
        %v2176 = vmul.f32 %v2000, %v2143
        %v2177 = vmul.f32 %v2001, %v2143
        %v2178 = vmul.f32 %v2002, %v2143
        %v2179 = vmul.f32 %v2003, %v2143
        %v2180 = vmul.f32 %v2004, %v2143
        %v2181 = vmul.f32 %v2005, %v2143
        %v2182 = vmul.f32 %v2006, %v2143
        %v2183 = vmul.f32 %v2007, %v2143
        %v2184 = vmul.f32 %v2008, %v2143
        %v2185 = vmul.f32 %v2009, %v2143
        %v2186 = vmul.f32 %v2010, %v2143
        %v2187 = vmul.f32 %v2011, %v2143
        %v2188 = vmul.f32 %v2012, %v2143
        %v2189 = vmul.f32 %v2013, %v2143
        %v2190 = vmul.f32 %v2014, %v2143
        %v2191 = vmul.f32 %v2015, %v2143
        %v2192 = vmul.f32 %v2016, %v2143
        %v2193 = vmul.f32 %v2017, %v2143
        %v2194 = vmul.f32 %v2018, %v2143
        %v2195 = vmul.f32 %v2019, %v2143
        %v2196 = vmul.f32 %v2020, %v2143
        %v2197 = vmul.f32 %v2021, %v2143
        %v2198 = vmul.f32 %v2022, %v2143
        %v2199 = vmul.f32 %v2023, %v2143
        %v2200 = vadd.f32 %v2087, %v2144
        %v2201 = vadd.f32 %v2088, %v2145
        %v2202 = vadd.f32 %v2089, %v2146
        %v2203 = vadd.f32 %v2090, %v2147
        %v2204 = vadd.f32 %v2091, %v2148
        %v2205 = vadd.f32 %v2092, %v2149
        %v2206 = vadd.f32 %v2093, %v2150
        %v2207 = vadd.f32 %v2094, %v2151
        %v2208 = vadd.f32 %v2095, %v2152
        %v2209 = vadd.f32 %v2096, %v2153
        %v2210 = vadd.f32 %v2097, %v2154
        %v2211 = vadd.f32 %v2098, %v2155
        %v2212 = vadd.f32 %v2099, %v2156
        %v2213 = vadd.f32 %v2100, %v2157
        %v2214 = vadd.f32 %v2101, %v2158
        %v2215 = vadd.f32 %v2102, %v2159
        %v2216 = vadd.f32 %v2103, %v2160
        %v2217 = vadd.f32 %v2104, %v2161
        %v2218 = vadd.f32 %v2105, %v2162
        %v2219 = vadd.f32 %v2106, %v2163
        %v2220 = vadd.f32 %v2107, %v2164
        %v2221 = vadd.f32 %v2108, %v2165
        %v2222 = vadd.f32 %v2109, %v2166
        %v2223 = vadd.f32 %v2110, %v2167
        %v2224 = vadd.f32 %v2111, %v2168
        %v2225 = vadd.f32 %v2112, %v2169
        %v2226 = vadd.f32 %v2113, %v2170
        %v2227 = vadd.f32 %v2114, %v2171
        %v2228 = vadd.f32 %v2115, %v2172
        %v2229 = vadd.f32 %v2116, %v2173
        %v2230 = vadd.f32 %v2117, %v2174
        %v2231 = vadd.f32 %v2118, %v2175
        %v2232 = vadd.f32 %v2119, %v2176
        %v2233 = vadd.f32 %v2120, %v2177
        %v2234 = vadd.f32 %v2121, %v2178
        %v2235 = vadd.f32 %v2122, %v2179
        %v2236 = vadd.f32 %v2123, %v2180
        %v2237 = vadd.f32 %v2124, %v2181
        %v2238 = vadd.f32 %v2125, %v2182
        %v2239 = vadd.f32 %v2126, %v2183
        %v2240 = vadd.f32 %v2127, %v2184
        %v2241 = vadd.f32 %v2128, %v2185
        %v2242 = vadd.f32 %v2129, %v2186
        %v2243 = vadd.f32 %v2130, %v2187
        %v2244 = vadd.f32 %v2131, %v2188
        %v2245 = vadd.f32 %v2132, %v2189
        %v2246 = vadd.f32 %v2133, %v2190
        %v2247 = vadd.f32 %v2134, %v2191
        %v2248 = vadd.f32 %v2135, %v2192
        %v2249 = vadd.f32 %v2136, %v2193
        %v2250 = vadd.f32 %v2137, %v2194
        %v2251 = vadd.f32 %v2138, %v2195
        %v2252 = vadd.f32 %v2139, %v2196
        %v2253 = vadd.f32 %v2140, %v2197
        %v2254 = vadd.f32 %v2141, %v2198
        %v2255 = vadd.f32 %v2142, %v2199
        %v2256 = vperm.slane %v737, 4
        %v2257 = vmul.f32 %v1962, %v2256
        %v2258 = vmul.f32 %v1963, %v2256
        %v2259 = vmul.f32 %v1964, %v2256
        %v2260 = vmul.f32 %v1965, %v2256
        %v2261 = vmul.f32 %v1966, %v2256
        %v2262 = vmul.f32 %v1967, %v2256
        %v2263 = vmul.f32 %v1968, %v2256
        %v2264 = vmul.f32 %v1969, %v2256
        %v2265 = vmul.f32 %v1970, %v2256
        %v2266 = vmul.f32 %v1971, %v2256
        %v2267 = vmul.f32 %v1972, %v2256
        %v2268 = vmul.f32 %v1973, %v2256
        %v2269 = vmul.f32 %v1974, %v2256
        %v2270 = vmul.f32 %v1975, %v2256
        %v2271 = vmul.f32 %v1976, %v2256
        %v2272 = vmul.f32 %v1977, %v2256
        %v2273 = vmul.f32 %v1978, %v2256
        %v2274 = vmul.f32 %v1979, %v2256
        %v2275 = vmul.f32 %v1980, %v2256
        %v2276 = vmul.f32 %v1981, %v2256
        %v2277 = vmul.f32 %v1982, %v2256
        %v2278 = vmul.f32 %v1983, %v2256
        %v2279 = vmul.f32 %v1984, %v2256
        %v2280 = vmul.f32 %v1985, %v2256
        %v2281 = vmul.f32 %v1986, %v2256
        %v2282 = vmul.f32 %v1987, %v2256
        %v2283 = vmul.f32 %v1988, %v2256
        %v2284 = vmul.f32 %v1989, %v2256
        %v2285 = vmul.f32 %v1998, %v2256
        %v2286 = vmul.f32 %v1999, %v2256
        %v2287 = vmul.f32 %v2000, %v2256
        %v2288 = vmul.f32 %v2001, %v2256
        %v2289 = vmul.f32 %v2002, %v2256
        %v2290 = vmul.f32 %v2003, %v2256
        %v2291 = vmul.f32 %v2004, %v2256
        %v2292 = vmul.f32 %v2005, %v2256
        %v2293 = vmul.f32 %v2006, %v2256
        %v2294 = vmul.f32 %v2007, %v2256
        %v2295 = vmul.f32 %v2008, %v2256
        %v2296 = vmul.f32 %v2009, %v2256
        %v2297 = vmul.f32 %v2010, %v2256
        %v2298 = vmul.f32 %v2011, %v2256
        %v2299 = vmul.f32 %v2012, %v2256
        %v2300 = vmul.f32 %v2013, %v2256
        %v2301 = vmul.f32 %v2014, %v2256
        %v2302 = vmul.f32 %v2015, %v2256
        %v2303 = vmul.f32 %v2016, %v2256
        %v2304 = vmul.f32 %v2017, %v2256
        %v2305 = vmul.f32 %v2018, %v2256
        %v2306 = vmul.f32 %v2019, %v2256
        %v2307 = vmul.f32 %v2020, %v2256
        %v2308 = vmul.f32 %v2021, %v2256
        %v2309 = vmul.f32 %v2022, %v2256
        %v2310 = vmul.f32 %v2023, %v2256
        %v2311 = vmul.f32 %v2024, %v2256
        %v2312 = vmul.f32 %v2025, %v2256
        %v2313 = vadd.f32 %v2200, %v2257
        %v2314 = vadd.f32 %v2201, %v2258
        %v2315 = vadd.f32 %v2202, %v2259
        %v2316 = vadd.f32 %v2203, %v2260
        %v2317 = vadd.f32 %v2204, %v2261
        %v2318 = vadd.f32 %v2205, %v2262
        %v2319 = vadd.f32 %v2206, %v2263
        %v2320 = vadd.f32 %v2207, %v2264
        %v2321 = vadd.f32 %v2208, %v2265
        %v2322 = vadd.f32 %v2209, %v2266
        %v2323 = vadd.f32 %v2210, %v2267
        %v2324 = vadd.f32 %v2211, %v2268
        %v2325 = vadd.f32 %v2212, %v2269
        %v2326 = vadd.f32 %v2213, %v2270
        %v2327 = vadd.f32 %v2214, %v2271
        %v2328 = vadd.f32 %v2215, %v2272
        %v2329 = vadd.f32 %v2216, %v2273
        %v2330 = vadd.f32 %v2217, %v2274
        %v2331 = vadd.f32 %v2218, %v2275
        %v2332 = vadd.f32 %v2219, %v2276
        %v2333 = vadd.f32 %v2220, %v2277
        %v2334 = vadd.f32 %v2221, %v2278
        %v2335 = vadd.f32 %v2222, %v2279
        %v2336 = vadd.f32 %v2223, %v2280
        %v2337 = vadd.f32 %v2224, %v2281
        %v2338 = vadd.f32 %v2225, %v2282
        %v2339 = vadd.f32 %v2226, %v2283
        %v2340 = vadd.f32 %v2227, %v2284
        %v2341 = vadd.f32 %v2228, %v2285
        %v2342 = vadd.f32 %v2229, %v2286
        %v2343 = vadd.f32 %v2230, %v2287
        %v2344 = vadd.f32 %v2231, %v2288
        %v2345 = vadd.f32 %v2232, %v2289
        %v2346 = vadd.f32 %v2233, %v2290
        %v2347 = vadd.f32 %v2234, %v2291
        %v2348 = vadd.f32 %v2235, %v2292
        %v2349 = vadd.f32 %v2236, %v2293
        %v2350 = vadd.f32 %v2237, %v2294
        %v2351 = vadd.f32 %v2238, %v2295
        %v2352 = vadd.f32 %v2239, %v2296
        %v2353 = vadd.f32 %v2240, %v2297
        %v2354 = vadd.f32 %v2241, %v2298
        %v2355 = vadd.f32 %v2242, %v2299
        %v2356 = vadd.f32 %v2243, %v2300
        %v2357 = vadd.f32 %v2244, %v2301
        %v2358 = vadd.f32 %v2245, %v2302
        %v2359 = vadd.f32 %v2246, %v2303
        %v2360 = vadd.f32 %v2247, %v2304
        %v2361 = vadd.f32 %v2248, %v2305
        %v2362 = vadd.f32 %v2249, %v2306
        %v2363 = vadd.f32 %v2250, %v2307
        %v2364 = vadd.f32 %v2251, %v2308
        %v2365 = vadd.f32 %v2252, %v2309
        %v2366 = vadd.f32 %v2253, %v2310
        %v2367 = vadd.f32 %v2254, %v2311
        %v2368 = vadd.f32 %v2255, %v2312
        %v2369 = vperm.slane %v738, 1
        %v2370 = vmul.f32 %v1964, %v2369
        %v2371 = vmul.f32 %v1965, %v2369
        %v2372 = vmul.f32 %v1966, %v2369
        %v2373 = vmul.f32 %v1967, %v2369
        %v2374 = vmul.f32 %v1968, %v2369
        %v2375 = vmul.f32 %v1969, %v2369
        %v2376 = vmul.f32 %v1970, %v2369
        %v2377 = vmul.f32 %v1971, %v2369
        %v2378 = vmul.f32 %v1972, %v2369
        %v2379 = vmul.f32 %v1973, %v2369
        %v2380 = vmul.f32 %v1974, %v2369
        %v2381 = vmul.f32 %v1975, %v2369
        %v2382 = vmul.f32 %v1976, %v2369
        %v2383 = vmul.f32 %v1977, %v2369
        %v2384 = vmul.f32 %v1978, %v2369
        %v2385 = vmul.f32 %v1979, %v2369
        %v2386 = vmul.f32 %v1980, %v2369
        %v2387 = vmul.f32 %v1981, %v2369
        %v2388 = vmul.f32 %v1982, %v2369
        %v2389 = vmul.f32 %v1983, %v2369
        %v2390 = vmul.f32 %v1984, %v2369
        %v2391 = vmul.f32 %v1985, %v2369
        %v2392 = vmul.f32 %v1986, %v2369
        %v2393 = vmul.f32 %v1987, %v2369
        %v2394 = vmul.f32 %v1988, %v2369
        %v2395 = vmul.f32 %v1989, %v2369
        %v2396 = vmul.f32 %v1990, %v2369
        %v2397 = vmul.f32 %v1991, %v2369
        %v2398 = vmul.f32 %v2000, %v2369
        %v2399 = vmul.f32 %v2001, %v2369
        %v2400 = vmul.f32 %v2002, %v2369
        %v2401 = vmul.f32 %v2003, %v2369
        %v2402 = vmul.f32 %v2004, %v2369
        %v2403 = vmul.f32 %v2005, %v2369
        %v2404 = vmul.f32 %v2006, %v2369
        %v2405 = vmul.f32 %v2007, %v2369
        %v2406 = vmul.f32 %v2008, %v2369
        %v2407 = vmul.f32 %v2009, %v2369
        %v2408 = vmul.f32 %v2010, %v2369
        %v2409 = vmul.f32 %v2011, %v2369
        %v2410 = vmul.f32 %v2012, %v2369
        %v2411 = vmul.f32 %v2013, %v2369
        %v2412 = vmul.f32 %v2014, %v2369
        %v2413 = vmul.f32 %v2015, %v2369
        %v2414 = vmul.f32 %v2016, %v2369
        %v2415 = vmul.f32 %v2017, %v2369
        %v2416 = vmul.f32 %v2018, %v2369
        %v2417 = vmul.f32 %v2019, %v2369
        %v2418 = vmul.f32 %v2020, %v2369
        %v2419 = vmul.f32 %v2021, %v2369
        %v2420 = vmul.f32 %v2022, %v2369
        %v2421 = vmul.f32 %v2023, %v2369
        %v2422 = vmul.f32 %v2024, %v2369
        %v2423 = vmul.f32 %v2025, %v2369
        %v2424 = vmul.f32 %v2026, %v2369
        %v2425 = vmul.f32 %v2027, %v2369
        %v2426 = vadd.f32 %v2313, %v2370
        %v2427 = vadd.f32 %v2314, %v2371
        %v2428 = vadd.f32 %v2315, %v2372
        %v2429 = vadd.f32 %v2316, %v2373
        %v2430 = vadd.f32 %v2317, %v2374
        %v2431 = vadd.f32 %v2318, %v2375
        %v2432 = vadd.f32 %v2319, %v2376
        %v2433 = vadd.f32 %v2320, %v2377
        %v2434 = vadd.f32 %v2321, %v2378
        %v2435 = vadd.f32 %v2322, %v2379
        %v2436 = vadd.f32 %v2323, %v2380
        %v2437 = vadd.f32 %v2324, %v2381
        %v2438 = vadd.f32 %v2325, %v2382
        %v2439 = vadd.f32 %v2326, %v2383
        %v2440 = vadd.f32 %v2327, %v2384
        %v2441 = vadd.f32 %v2328, %v2385
        %v2442 = vadd.f32 %v2329, %v2386
        %v2443 = vadd.f32 %v2330, %v2387
        %v2444 = vadd.f32 %v2331, %v2388
        %v2445 = vadd.f32 %v2332, %v2389
        %v2446 = vadd.f32 %v2333, %v2390
        %v2447 = vadd.f32 %v2334, %v2391
        %v2448 = vadd.f32 %v2335, %v2392
        %v2449 = vadd.f32 %v2336, %v2393
        %v2450 = vadd.f32 %v2337, %v2394
        %v2451 = vadd.f32 %v2338, %v2395
        %v2452 = vadd.f32 %v2339, %v2396
        %v2453 = vadd.f32 %v2340, %v2397
        %v2454 = vadd.f32 %v2341, %v2398
        %v2455 = vadd.f32 %v2342, %v2399
        %v2456 = vadd.f32 %v2343, %v2400
        %v2457 = vadd.f32 %v2344, %v2401
        %v2458 = vadd.f32 %v2345, %v2402
        %v2459 = vadd.f32 %v2346, %v2403
        %v2460 = vadd.f32 %v2347, %v2404
        %v2461 = vadd.f32 %v2348, %v2405
        %v2462 = vadd.f32 %v2349, %v2406
        %v2463 = vadd.f32 %v2350, %v2407
        %v2464 = vadd.f32 %v2351, %v2408
        %v2465 = vadd.f32 %v2352, %v2409
        %v2466 = vadd.f32 %v2353, %v2410
        %v2467 = vadd.f32 %v2354, %v2411
        %v2468 = vadd.f32 %v2355, %v2412
        %v2469 = vadd.f32 %v2356, %v2413
        %v2470 = vadd.f32 %v2357, %v2414
        %v2471 = vadd.f32 %v2358, %v2415
        %v2472 = vadd.f32 %v2359, %v2416
        %v2473 = vadd.f32 %v2360, %v2417
        %v2474 = vadd.f32 %v2361, %v2418
        %v2475 = vadd.f32 %v2362, %v2419
        %v2476 = vadd.f32 %v2363, %v2420
        %v2477 = vadd.f32 %v2364, %v2421
        %v2478 = vadd.f32 %v2365, %v2422
        %v2479 = vadd.f32 %v2366, %v2423
        %v2480 = vadd.f32 %v2367, %v2424
        %v2481 = vadd.f32 %v2368, %v2425
        %v2482 = vperm.slane %v738, 6
        %v2483 = vmul.f32 %v1966, %v2482
        %v2484 = vmul.f32 %v1967, %v2482
        %v2485 = vmul.f32 %v1968, %v2482
        %v2486 = vmul.f32 %v1969, %v2482
        %v2487 = vmul.f32 %v1970, %v2482
        %v2488 = vmul.f32 %v1971, %v2482
        %v2489 = vmul.f32 %v1972, %v2482
        %v2490 = vmul.f32 %v1973, %v2482
        %v2491 = vmul.f32 %v1974, %v2482
        %v2492 = vmul.f32 %v1975, %v2482
        %v2493 = vmul.f32 %v1976, %v2482
        %v2494 = vmul.f32 %v1977, %v2482
        %v2495 = vmul.f32 %v1978, %v2482
        %v2496 = vmul.f32 %v1979, %v2482
        %v2497 = vmul.f32 %v1980, %v2482
        %v2498 = vmul.f32 %v1981, %v2482
        %v2499 = vmul.f32 %v1982, %v2482
        %v2500 = vmul.f32 %v1983, %v2482
        %v2501 = vmul.f32 %v1984, %v2482
        %v2502 = vmul.f32 %v1985, %v2482
        %v2503 = vmul.f32 %v1986, %v2482
        %v2504 = vmul.f32 %v1987, %v2482
        %v2505 = vmul.f32 %v1988, %v2482
        %v2506 = vmul.f32 %v1989, %v2482
        %v2507 = vmul.f32 %v1990, %v2482
        %v2508 = vmul.f32 %v1991, %v2482
        %v2509 = vmul.f32 %v1992, %v2482
        %v2510 = vmul.f32 %v1993, %v2482
        %v2511 = vmul.f32 %v2002, %v2482
        %v2512 = vmul.f32 %v2003, %v2482
        %v2513 = vmul.f32 %v2004, %v2482
        %v2514 = vmul.f32 %v2005, %v2482
        %v2515 = vmul.f32 %v2006, %v2482
        %v2516 = vmul.f32 %v2007, %v2482
        %v2517 = vmul.f32 %v2008, %v2482
        %v2518 = vmul.f32 %v2009, %v2482
        %v2519 = vmul.f32 %v2010, %v2482
        %v2520 = vmul.f32 %v2011, %v2482
        %v2521 = vmul.f32 %v2012, %v2482
        %v2522 = vmul.f32 %v2013, %v2482
        %v2523 = vmul.f32 %v2014, %v2482
        %v2524 = vmul.f32 %v2015, %v2482
        %v2525 = vmul.f32 %v2016, %v2482
        %v2526 = vmul.f32 %v2017, %v2482
        %v2527 = vmul.f32 %v2018, %v2482
        %v2528 = vmul.f32 %v2019, %v2482
        %v2529 = vmul.f32 %v2020, %v2482
        %v2530 = vmul.f32 %v2021, %v2482
        %v2531 = vmul.f32 %v2022, %v2482
        %v2532 = vmul.f32 %v2023, %v2482
        %v2533 = vmul.f32 %v2024, %v2482
        %v2534 = vmul.f32 %v2025, %v2482
        %v2535 = vmul.f32 %v2026, %v2482
        %v2536 = vmul.f32 %v2027, %v2482
        %v2537 = vmul.f32 %v2028, %v2482
        %v2538 = vmul.f32 %v2029, %v2482
        %v2539 = vadd.f32 %v2426, %v2483
        %v2540 = vadd.f32 %v2427, %v2484
        %v2541 = vadd.f32 %v2428, %v2485
        %v2542 = vadd.f32 %v2429, %v2486
        %v2543 = vadd.f32 %v2430, %v2487
        %v2544 = vadd.f32 %v2431, %v2488
        %v2545 = vadd.f32 %v2432, %v2489
        %v2546 = vadd.f32 %v2433, %v2490
        %v2547 = vadd.f32 %v2434, %v2491
        %v2548 = vadd.f32 %v2435, %v2492
        %v2549 = vadd.f32 %v2436, %v2493
        %v2550 = vadd.f32 %v2437, %v2494
        %v2551 = vadd.f32 %v2438, %v2495
        %v2552 = vadd.f32 %v2439, %v2496
        %v2553 = vadd.f32 %v2440, %v2497
        %v2554 = vadd.f32 %v2441, %v2498
        %v2555 = vadd.f32 %v2442, %v2499
        %v2556 = vadd.f32 %v2443, %v2500
        %v2557 = vadd.f32 %v2444, %v2501
        %v2558 = vadd.f32 %v2445, %v2502
        %v2559 = vadd.f32 %v2446, %v2503
        %v2560 = vadd.f32 %v2447, %v2504
        %v2561 = vadd.f32 %v2448, %v2505
        %v2562 = vadd.f32 %v2449, %v2506
        %v2563 = vadd.f32 %v2450, %v2507
        %v2564 = vadd.f32 %v2451, %v2508
        %v2565 = vadd.f32 %v2452, %v2509
        %v2566 = vadd.f32 %v2453, %v2510
        %v2567 = vadd.f32 %v2454, %v2511
        %v2568 = vadd.f32 %v2455, %v2512
        %v2569 = vadd.f32 %v2456, %v2513
        %v2570 = vadd.f32 %v2457, %v2514
        %v2571 = vadd.f32 %v2458, %v2515
        %v2572 = vadd.f32 %v2459, %v2516
        %v2573 = vadd.f32 %v2460, %v2517
        %v2574 = vadd.f32 %v2461, %v2518
        %v2575 = vadd.f32 %v2462, %v2519
        %v2576 = vadd.f32 %v2463, %v2520
        %v2577 = vadd.f32 %v2464, %v2521
        %v2578 = vadd.f32 %v2465, %v2522
        %v2579 = vadd.f32 %v2466, %v2523
        %v2580 = vadd.f32 %v2467, %v2524
        %v2581 = vadd.f32 %v2468, %v2525
        %v2582 = vadd.f32 %v2469, %v2526
        %v2583 = vadd.f32 %v2470, %v2527
        %v2584 = vadd.f32 %v2471, %v2528
        %v2585 = vadd.f32 %v2472, %v2529
        %v2586 = vadd.f32 %v2473, %v2530
        %v2587 = vadd.f32 %v2474, %v2531
        %v2588 = vadd.f32 %v2475, %v2532
        %v2589 = vadd.f32 %v2476, %v2533
        %v2590 = vadd.f32 %v2477, %v2534
        %v2591 = vadd.f32 %v2478, %v2535
        %v2592 = vadd.f32 %v2479, %v2536
        %v2593 = vadd.f32 %v2480, %v2537
        %v2594 = vadd.f32 %v2481, %v2538
        %v2595 = vld [vmem:[#allocation2 + $0x3] sm:$0xff]
        %v2596 = vld [vmem:[#allocation2 + $0xb] sm:$0x3f]
        %v2597 = vld [vmem:[#allocation2 + $0x1b] sm:$0xff]
        %v2598 = vld [vmem:[#allocation2 + $0x23] sm:$0x3f]
        %v2599 = vld [vmem:[#allocation2 + $0x33] sm:$0xff]
        %v2600 = vld [vmem:[#allocation2 + $0x3b] sm:$0x3f]
        %v2601 = vld [vmem:[#allocation2 + $0x4b] sm:$0xff]
        %v2602 = vld [vmem:[#allocation2 + $0x53] sm:$0x3f]
        %v2603 = vld [vmem:[#allocation2 + $0x63] sm:$0xff]
        %v2604 = vld [vmem:[#allocation2 + $0x6b] sm:$0x3f]
        %v2605 = vld [vmem:[#allocation2 + $0x7b] sm:$0xff]
        %v2606 = vld [vmem:[#allocation2 + $0x83] sm:$0x3f]
        %v2607 = vld [vmem:[#allocation2 + $0x93] sm:$0xff]
        %v2608 = vld [vmem:[#allocation2 + $0x9b] sm:$0x3f]
        %v2609 = vld [vmem:[#allocation2 + $0xab] sm:$0xff]
        %v2610 = vld [vmem:[#allocation2 + $0xb3] sm:$0x3f]
        %v2611 = vld [vmem:[#allocation2 + $0xc3] sm:$0xff]
        %v2612 = vld [vmem:[#allocation2 + $0xcb] sm:$0x3f]
        %v2613 = vld [vmem:[#allocation2 + $0xdb] sm:$0xff]
        %v2614 = vld [vmem:[#allocation2 + $0xe3] sm:$0x3f]
        %v2615 = vld [vmem:[#allocation2 + $0xf3] sm:$0xff]
        %v2616 = vld [vmem:[#allocation2 + $0xfb] sm:$0x3f]
        %v2617 = vld [vmem:[#allocation2 + $0x10b] sm:$0xff]
        %v2618 = vld [vmem:[#allocation2 + $0x113] sm:$0x3f]
        %v2619 = vld [vmem:[#allocation2 + $0x123] sm:$0xff]
        %v2620 = vld [vmem:[#allocation2 + $0x12b] sm:$0x3f]
        %v2621 = vld [vmem:[#allocation2 + $0x13b] sm:$0xff]
        %v2622 = vld [vmem:[#allocation2 + $0x143] sm:$0x3f]
        %v2623 = vld [vmem:[#allocation2 + $0x153] sm:$0xff]
        %v2624 = vld [vmem:[#allocation2 + $0x15b] sm:$0x3f]
        %v2625 = vld [vmem:[#allocation2 + $0x16b] sm:$0xff]
        %v2626 = vld [vmem:[#allocation2 + $0x173] sm:$0x3f]
        %v2627 = vld [vmem:[#allocation2 + $0x183] sm:$0xff]
        %v2628 = vld [vmem:[#allocation2 + $0x18b] sm:$0x3f]
        %v2629 = vld [vmem:[#allocation2 + $0x19b] sm:$0xff]
        %v2630 = vld [vmem:[#allocation2 + $0x1a3] sm:$0x3f]
        %v2631 = vld [vmem:[#allocation2 + $0x1b3] sm:$0xff]
        %v2632 = vld [vmem:[#allocation2 + $0x1bb] sm:$0x3f]
        %v2633 = vld [vmem:[#allocation2 + $0x1cb] sm:$0xff]
        %v2634 = vld [vmem:[#allocation2 + $0x1d3] sm:$0x3f]
        %v2635 = vld [vmem:[#allocation2 + $0x1e3] sm:$0xff]
        %v2636 = vld [vmem:[#allocation2 + $0x1eb] sm:$0x3f]
        %v2637 = vld [vmem:[#allocation2 + $0x1fb] sm:$0xff]
        %v2638 = vld [vmem:[#allocation2 + $0x203] sm:$0x3f]
        %v2639 = vld [vmem:[#allocation2 + $0x213] sm:$0xff]
        %v2640 = vld [vmem:[#allocation2 + $0x21b] sm:$0x3f]
        %v2641 = vld [vmem:[#allocation2 + $0x22b] sm:$0xff]
        %v2642 = vld [vmem:[#allocation2 + $0x233] sm:$0x3f]
        %v2643 = vld [vmem:[#allocation2 + $0x243] sm:$0xff]
        %v2644 = vld [vmem:[#allocation2 + $0x24b] sm:$0x3f]
        %v2645 = vld [vmem:[#allocation2 + $0x25b] sm:$0xff]
        %v2646 = vld [vmem:[#allocation2 + $0x263] sm:$0x3f]
        %v2647 = vld [vmem:[#allocation2 + $0x273] sm:$0xff]
        %v2648 = vld [vmem:[#allocation2 + $0x27b] sm:$0x3f]
        %v2649 = vld [vmem:[#allocation2 + $0x28b] sm:$0xff]
        %v2650 = vld [vmem:[#allocation2 + $0x293] sm:$0x3f]
        %v2651 = vld [vmem:[#allocation2 + $0x2a3] sm:$0xff]
        %v2652 = vld [vmem:[#allocation2 + $0x2ab] sm:$0x3f]
        %v2653 = vld [vmem:[#allocation2 + $0x2bb] sm:$0xff]
        %v2654 = vld [vmem:[#allocation2 + $0x2c3] sm:$0x3f]
        %v2655 = vld [vmem:[#allocation2 + $0x2d3] sm:$0xff]
        %v2656 = vld [vmem:[#allocation2 + $0x2db] sm:$0x3f]
        %v2657 = vld [vmem:[#allocation2 + $0x2eb] sm:$0xff]
        %v2658 = vld [vmem:[#allocation2 + $0x2f3] sm:$0x3f]
        %v2659 = vld [vmem:[#allocation2 + $0x303] sm:$0xff]
        %v2660 = vld [vmem:[#allocation2 + $0x30b] sm:$0x3f]
        %v2661 = vld [vmem:[#allocation2 + $0x31b] sm:$0xff]
        %v2662 = vld [vmem:[#allocation2 + $0x323] sm:$0x3f]
        %v2663 = vld [vmem:[#allocation2 + $0x333] sm:$0xff]
        %v2664 = vld [vmem:[#allocation2 + $0x33b] sm:$0x3f]
        %v2665 = vld [vmem:[#allocation2 + $0x34b] sm:$0xff]
        %v2666 = vld [vmem:[#allocation2 + $0x353] sm:$0x3f]
        %v2667 = vperm.slane %v736, 3
        %v2668 = vmul.f32 %v2595, %v2667
        %v2669 = vmul.f32 %v2596, %v2667
        %v2670 = vmul.f32 %v2597, %v2667
        %v2671 = vmul.f32 %v2598, %v2667
        %v2672 = vmul.f32 %v2599, %v2667
        %v2673 = vmul.f32 %v2600, %v2667
        %v2674 = vmul.f32 %v2601, %v2667
        %v2675 = vmul.f32 %v2602, %v2667
        %v2676 = vmul.f32 %v2603, %v2667
        %v2677 = vmul.f32 %v2604, %v2667
        %v2678 = vmul.f32 %v2605, %v2667
        %v2679 = vmul.f32 %v2606, %v2667
        %v2680 = vmul.f32 %v2607, %v2667
        %v2681 = vmul.f32 %v2608, %v2667
        %v2682 = vmul.f32 %v2609, %v2667
        %v2683 = vmul.f32 %v2610, %v2667
        %v2684 = vmul.f32 %v2611, %v2667
        %v2685 = vmul.f32 %v2612, %v2667
        %v2686 = vmul.f32 %v2613, %v2667
        %v2687 = vmul.f32 %v2614, %v2667
        %v2688 = vmul.f32 %v2615, %v2667
        %v2689 = vmul.f32 %v2616, %v2667
        %v2690 = vmul.f32 %v2617, %v2667
        %v2691 = vmul.f32 %v2618, %v2667
        %v2692 = vmul.f32 %v2619, %v2667
        %v2693 = vmul.f32 %v2620, %v2667
        %v2694 = vmul.f32 %v2621, %v2667
        %v2695 = vmul.f32 %v2622, %v2667
        %v2696 = vmul.f32 %v2631, %v2667
        %v2697 = vmul.f32 %v2632, %v2667
        %v2698 = vmul.f32 %v2633, %v2667
        %v2699 = vmul.f32 %v2634, %v2667
        %v2700 = vmul.f32 %v2635, %v2667
        %v2701 = vmul.f32 %v2636, %v2667
        %v2702 = vmul.f32 %v2637, %v2667
        %v2703 = vmul.f32 %v2638, %v2667
        %v2704 = vmul.f32 %v2639, %v2667
        %v2705 = vmul.f32 %v2640, %v2667
        %v2706 = vmul.f32 %v2641, %v2667
        %v2707 = vmul.f32 %v2642, %v2667
        %v2708 = vmul.f32 %v2643, %v2667
        %v2709 = vmul.f32 %v2644, %v2667
        %v2710 = vmul.f32 %v2645, %v2667
        %v2711 = vmul.f32 %v2646, %v2667
        %v2712 = vmul.f32 %v2647, %v2667
        %v2713 = vmul.f32 %v2648, %v2667
        %v2714 = vmul.f32 %v2649, %v2667
        %v2715 = vmul.f32 %v2650, %v2667
        %v2716 = vmul.f32 %v2651, %v2667
        %v2717 = vmul.f32 %v2652, %v2667
        %v2718 = vmul.f32 %v2653, %v2667
        %v2719 = vmul.f32 %v2654, %v2667
        %v2720 = vmul.f32 %v2655, %v2667
        %v2721 = vmul.f32 %v2656, %v2667
        %v2722 = vmul.f32 %v2657, %v2667
        %v2723 = vmul.f32 %v2658, %v2667
        %v2724 = vadd.f32 %v2539, %v2668
        %v2725 = vadd.f32 %v2540, %v2669
        %v2726 = vadd.f32 %v2541, %v2670
        %v2727 = vadd.f32 %v2542, %v2671
        %v2728 = vadd.f32 %v2543, %v2672
        %v2729 = vadd.f32 %v2544, %v2673
        %v2730 = vadd.f32 %v2545, %v2674
        %v2731 = vadd.f32 %v2546, %v2675
        %v2732 = vadd.f32 %v2547, %v2676
        %v2733 = vadd.f32 %v2548, %v2677
        %v2734 = vadd.f32 %v2549, %v2678
        %v2735 = vadd.f32 %v2550, %v2679
        %v2736 = vadd.f32 %v2551, %v2680
        %v2737 = vadd.f32 %v2552, %v2681
        %v2738 = vadd.f32 %v2553, %v2682
        %v2739 = vadd.f32 %v2554, %v2683
        %v2740 = vadd.f32 %v2555, %v2684
        %v2741 = vadd.f32 %v2556, %v2685
        %v2742 = vadd.f32 %v2557, %v2686
        %v2743 = vadd.f32 %v2558, %v2687
        %v2744 = vadd.f32 %v2559, %v2688
        %v2745 = vadd.f32 %v2560, %v2689
        %v2746 = vadd.f32 %v2561, %v2690
        %v2747 = vadd.f32 %v2562, %v2691
        %v2748 = vadd.f32 %v2563, %v2692
        %v2749 = vadd.f32 %v2564, %v2693
        %v2750 = vadd.f32 %v2565, %v2694
        %v2751 = vadd.f32 %v2566, %v2695
        %v2752 = vadd.f32 %v2567, %v2696
        %v2753 = vadd.f32 %v2568, %v2697
        %v2754 = vadd.f32 %v2569, %v2698
        %v2755 = vadd.f32 %v2570, %v2699
        %v2756 = vadd.f32 %v2571, %v2700
        %v2757 = vadd.f32 %v2572, %v2701
        %v2758 = vadd.f32 %v2573, %v2702
        %v2759 = vadd.f32 %v2574, %v2703
        %v2760 = vadd.f32 %v2575, %v2704
        %v2761 = vadd.f32 %v2576, %v2705
        %v2762 = vadd.f32 %v2577, %v2706
        %v2763 = vadd.f32 %v2578, %v2707
        %v2764 = vadd.f32 %v2579, %v2708
        %v2765 = vadd.f32 %v2580, %v2709
        %v2766 = vadd.f32 %v2581, %v2710
        %v2767 = vadd.f32 %v2582, %v2711
        %v2768 = vadd.f32 %v2583, %v2712
        %v2769 = vadd.f32 %v2584, %v2713
        %v2770 = vadd.f32 %v2585, %v2714
        %v2771 = vadd.f32 %v2586, %v2715
        %v2772 = vadd.f32 %v2587, %v2716
        %v2773 = vadd.f32 %v2588, %v2717
        %v2774 = vadd.f32 %v2589, %v2718
        %v2775 = vadd.f32 %v2590, %v2719
        %v2776 = vadd.f32 %v2591, %v2720
        %v2777 = vadd.f32 %v2592, %v2721
        %v2778 = vadd.f32 %v2593, %v2722
        %v2779 = vadd.f32 %v2594, %v2723
        %v2780 = vperm.slane %v737, 0
        %v2781 = vmul.f32 %v2597, %v2780
        %v2782 = vmul.f32 %v2598, %v2780
        %v2783 = vmul.f32 %v2599, %v2780
        %v2784 = vmul.f32 %v2600, %v2780
        %v2785 = vmul.f32 %v2601, %v2780
        %v2786 = vmul.f32 %v2602, %v2780
        %v2787 = vmul.f32 %v2603, %v2780
        %v2788 = vmul.f32 %v2604, %v2780
        %v2789 = vmul.f32 %v2605, %v2780
        %v2790 = vmul.f32 %v2606, %v2780
        %v2791 = vmul.f32 %v2607, %v2780
        %v2792 = vmul.f32 %v2608, %v2780
        %v2793 = vmul.f32 %v2609, %v2780
        %v2794 = vmul.f32 %v2610, %v2780
        %v2795 = vmul.f32 %v2611, %v2780
        %v2796 = vmul.f32 %v2612, %v2780
        %v2797 = vmul.f32 %v2613, %v2780
        %v2798 = vmul.f32 %v2614, %v2780
        %v2799 = vmul.f32 %v2615, %v2780
        %v2800 = vmul.f32 %v2616, %v2780
        %v2801 = vmul.f32 %v2617, %v2780
        %v2802 = vmul.f32 %v2618, %v2780
        %v2803 = vmul.f32 %v2619, %v2780
        %v2804 = vmul.f32 %v2620, %v2780
        %v2805 = vmul.f32 %v2621, %v2780
        %v2806 = vmul.f32 %v2622, %v2780
        %v2807 = vmul.f32 %v2623, %v2780
        %v2808 = vmul.f32 %v2624, %v2780
        %v2809 = vmul.f32 %v2633, %v2780
        %v2810 = vmul.f32 %v2634, %v2780
        %v2811 = vmul.f32 %v2635, %v2780
        %v2812 = vmul.f32 %v2636, %v2780
        %v2813 = vmul.f32 %v2637, %v2780
        %v2814 = vmul.f32 %v2638, %v2780
        %v2815 = vmul.f32 %v2639, %v2780
        %v2816 = vmul.f32 %v2640, %v2780
        %v2817 = vmul.f32 %v2641, %v2780
        %v2818 = vmul.f32 %v2642, %v2780
        %v2819 = vmul.f32 %v2643, %v2780
        %v2820 = vmul.f32 %v2644, %v2780
        %v2821 = vmul.f32 %v2645, %v2780
        %v2822 = vmul.f32 %v2646, %v2780
        %v2823 = vmul.f32 %v2647, %v2780
        %v2824 = vmul.f32 %v2648, %v2780
        %v2825 = vmul.f32 %v2649, %v2780
        %v2826 = vmul.f32 %v2650, %v2780
        %v2827 = vmul.f32 %v2651, %v2780
        %v2828 = vmul.f32 %v2652, %v2780
        %v2829 = vmul.f32 %v2653, %v2780
        %v2830 = vmul.f32 %v2654, %v2780
        %v2831 = vmul.f32 %v2655, %v2780
        %v2832 = vmul.f32 %v2656, %v2780
        %v2833 = vmul.f32 %v2657, %v2780
        %v2834 = vmul.f32 %v2658, %v2780
        %v2835 = vmul.f32 %v2659, %v2780
        %v2836 = vmul.f32 %v2660, %v2780
        %v2837 = vadd.f32 %v2724, %v2781
        %v2838 = vadd.f32 %v2725, %v2782
        %v2839 = vadd.f32 %v2726, %v2783
        %v2840 = vadd.f32 %v2727, %v2784
        %v2841 = vadd.f32 %v2728, %v2785
        %v2842 = vadd.f32 %v2729, %v2786
        %v2843 = vadd.f32 %v2730, %v2787
        %v2844 = vadd.f32 %v2731, %v2788
        %v2845 = vadd.f32 %v2732, %v2789
        %v2846 = vadd.f32 %v2733, %v2790
        %v2847 = vadd.f32 %v2734, %v2791
        %v2848 = vadd.f32 %v2735, %v2792
        %v2849 = vadd.f32 %v2736, %v2793
        %v2850 = vadd.f32 %v2737, %v2794
        %v2851 = vadd.f32 %v2738, %v2795
        %v2852 = vadd.f32 %v2739, %v2796
        %v2853 = vadd.f32 %v2740, %v2797
        %v2854 = vadd.f32 %v2741, %v2798
        %v2855 = vadd.f32 %v2742, %v2799
        %v2856 = vadd.f32 %v2743, %v2800
        %v2857 = vadd.f32 %v2744, %v2801
        %v2858 = vadd.f32 %v2745, %v2802
        %v2859 = vadd.f32 %v2746, %v2803
        %v2860 = vadd.f32 %v2747, %v2804
        %v2861 = vadd.f32 %v2748, %v2805
        %v2862 = vadd.f32 %v2749, %v2806
        %v2863 = vadd.f32 %v2750, %v2807
        %v2864 = vadd.f32 %v2751, %v2808
        %v2865 = vadd.f32 %v2752, %v2809
        %v2866 = vadd.f32 %v2753, %v2810
        %v2867 = vadd.f32 %v2754, %v2811
        %v2868 = vadd.f32 %v2755, %v2812
        %v2869 = vadd.f32 %v2756, %v2813
        %v2870 = vadd.f32 %v2757, %v2814
        %v2871 = vadd.f32 %v2758, %v2815
        %v2872 = vadd.f32 %v2759, %v2816
        %v2873 = vadd.f32 %v2760, %v2817
        %v2874 = vadd.f32 %v2761, %v2818
        %v2875 = vadd.f32 %v2762, %v2819
        %v2876 = vadd.f32 %v2763, %v2820
        %v2877 = vadd.f32 %v2764, %v2821
        %v2878 = vadd.f32 %v2765, %v2822
        %v2879 = vadd.f32 %v2766, %v2823
        %v2880 = vadd.f32 %v2767, %v2824
        %v2881 = vadd.f32 %v2768, %v2825
        %v2882 = vadd.f32 %v2769, %v2826
        %v2883 = vadd.f32 %v2770, %v2827
        %v2884 = vadd.f32 %v2771, %v2828
        %v2885 = vadd.f32 %v2772, %v2829
        %v2886 = vadd.f32 %v2773, %v2830
        %v2887 = vadd.f32 %v2774, %v2831
        %v2888 = vadd.f32 %v2775, %v2832
        %v2889 = vadd.f32 %v2776, %v2833
        %v2890 = vadd.f32 %v2777, %v2834
        %v2891 = vadd.f32 %v2778, %v2835
        %v2892 = vadd.f32 %v2779, %v2836
        %v2893 = vperm.slane %v737, 5
        %v2894 = vmul.f32 %v2599, %v2893
        %v2895 = vmul.f32 %v2600, %v2893
        %v2896 = vmul.f32 %v2601, %v2893
        %v2897 = vmul.f32 %v2602, %v2893
        %v2898 = vmul.f32 %v2603, %v2893
        %v2899 = vmul.f32 %v2604, %v2893
        %v2900 = vmul.f32 %v2605, %v2893
        %v2901 = vmul.f32 %v2606, %v2893
        %v2902 = vmul.f32 %v2607, %v2893
        %v2903 = vmul.f32 %v2608, %v2893
        %v2904 = vmul.f32 %v2609, %v2893
        %v2905 = vmul.f32 %v2610, %v2893
        %v2906 = vmul.f32 %v2611, %v2893
        %v2907 = vmul.f32 %v2612, %v2893
        %v2908 = vmul.f32 %v2613, %v2893
        %v2909 = vmul.f32 %v2614, %v2893
        %v2910 = vmul.f32 %v2615, %v2893
        %v2911 = vmul.f32 %v2616, %v2893
        %v2912 = vmul.f32 %v2617, %v2893
        %v2913 = vmul.f32 %v2618, %v2893
        %v2914 = vmul.f32 %v2619, %v2893
        %v2915 = vmul.f32 %v2620, %v2893
        %v2916 = vmul.f32 %v2621, %v2893
        %v2917 = vmul.f32 %v2622, %v2893
        %v2918 = vmul.f32 %v2623, %v2893
        %v2919 = vmul.f32 %v2624, %v2893
        %v2920 = vmul.f32 %v2625, %v2893
        %v2921 = vmul.f32 %v2626, %v2893
        %v2922 = vmul.f32 %v2635, %v2893
        %v2923 = vmul.f32 %v2636, %v2893
        %v2924 = vmul.f32 %v2637, %v2893
        %v2925 = vmul.f32 %v2638, %v2893
        %v2926 = vmul.f32 %v2639, %v2893
        %v2927 = vmul.f32 %v2640, %v2893
        %v2928 = vmul.f32 %v2641, %v2893
        %v2929 = vmul.f32 %v2642, %v2893
        %v2930 = vmul.f32 %v2643, %v2893
        %v2931 = vmul.f32 %v2644, %v2893
        %v2932 = vmul.f32 %v2645, %v2893
        %v2933 = vmul.f32 %v2646, %v2893
        %v2934 = vmul.f32 %v2647, %v2893
        %v2935 = vmul.f32 %v2648, %v2893
        %v2936 = vmul.f32 %v2649, %v2893
        %v2937 = vmul.f32 %v2650, %v2893
        %v2938 = vmul.f32 %v2651, %v2893
        %v2939 = vmul.f32 %v2652, %v2893
        %v2940 = vmul.f32 %v2653, %v2893
        %v2941 = vmul.f32 %v2654, %v2893
        %v2942 = vmul.f32 %v2655, %v2893
        %v2943 = vmul.f32 %v2656, %v2893
        %v2944 = vmul.f32 %v2657, %v2893
        %v2945 = vmul.f32 %v2658, %v2893
        %v2946 = vmul.f32 %v2659, %v2893
        %v2947 = vmul.f32 %v2660, %v2893
        %v2948 = vmul.f32 %v2661, %v2893
        %v2949 = vmul.f32 %v2662, %v2893
        %v2950 = vadd.f32 %v2837, %v2894
        %v2951 = vadd.f32 %v2838, %v2895
        %v2952 = vadd.f32 %v2839, %v2896
        %v2953 = vadd.f32 %v2840, %v2897
        %v2954 = vadd.f32 %v2841, %v2898
        %v2955 = vadd.f32 %v2842, %v2899
        %v2956 = vadd.f32 %v2843, %v2900
        %v2957 = vadd.f32 %v2844, %v2901
        %v2958 = vadd.f32 %v2845, %v2902
        %v2959 = vadd.f32 %v2846, %v2903
        %v2960 = vadd.f32 %v2847, %v2904
        %v2961 = vadd.f32 %v2848, %v2905
        %v2962 = vadd.f32 %v2849, %v2906
        %v2963 = vadd.f32 %v2850, %v2907
        %v2964 = vadd.f32 %v2851, %v2908
        %v2965 = vadd.f32 %v2852, %v2909
        %v2966 = vadd.f32 %v2853, %v2910
        %v2967 = vadd.f32 %v2854, %v2911
        %v2968 = vadd.f32 %v2855, %v2912
        %v2969 = vadd.f32 %v2856, %v2913
        %v2970 = vadd.f32 %v2857, %v2914
        %v2971 = vadd.f32 %v2858, %v2915
        %v2972 = vadd.f32 %v2859, %v2916
        %v2973 = vadd.f32 %v2860, %v2917
        %v2974 = vadd.f32 %v2861, %v2918
        %v2975 = vadd.f32 %v2862, %v2919
        %v2976 = vadd.f32 %v2863, %v2920
        %v2977 = vadd.f32 %v2864, %v2921
        %v2978 = vadd.f32 %v2865, %v2922
        %v2979 = vadd.f32 %v2866, %v2923
        %v2980 = vadd.f32 %v2867, %v2924
        %v2981 = vadd.f32 %v2868, %v2925
        %v2982 = vadd.f32 %v2869, %v2926
        %v2983 = vadd.f32 %v2870, %v2927
        %v2984 = vadd.f32 %v2871, %v2928
        %v2985 = vadd.f32 %v2872, %v2929
        %v2986 = vadd.f32 %v2873, %v2930
        %v2987 = vadd.f32 %v2874, %v2931
        %v2988 = vadd.f32 %v2875, %v2932
        %v2989 = vadd.f32 %v2876, %v2933
        %v2990 = vadd.f32 %v2877, %v2934
        %v2991 = vadd.f32 %v2878, %v2935
        %v2992 = vadd.f32 %v2879, %v2936
        %v2993 = vadd.f32 %v2880, %v2937
        %v2994 = vadd.f32 %v2881, %v2938
        %v2995 = vadd.f32 %v2882, %v2939
        %v2996 = vadd.f32 %v2883, %v2940
        %v2997 = vadd.f32 %v2884, %v2941
        %v2998 = vadd.f32 %v2885, %v2942
        %v2999 = vadd.f32 %v2886, %v2943
        %v3000 = vadd.f32 %v2887, %v2944
        %v3001 = vadd.f32 %v2888, %v2945
        %v3002 = vadd.f32 %v2889, %v2946
        %v3003 = vadd.f32 %v2890, %v2947
        %v3004 = vadd.f32 %v2891, %v2948
        %v3005 = vadd.f32 %v2892, %v2949
        %v3006 = vperm.slane %v738, 2
        %v3007 = vmul.f32 %v2601, %v3006
        %v3008 = vmul.f32 %v2602, %v3006
        %v3009 = vmul.f32 %v2603, %v3006
        %v3010 = vmul.f32 %v2604, %v3006
        %v3011 = vmul.f32 %v2605, %v3006
        %v3012 = vmul.f32 %v2606, %v3006
        %v3013 = vmul.f32 %v2607, %v3006
        %v3014 = vmul.f32 %v2608, %v3006
        %v3015 = vmul.f32 %v2609, %v3006
        %v3016 = vmul.f32 %v2610, %v3006
        %v3017 = vmul.f32 %v2611, %v3006
        %v3018 = vmul.f32 %v2612, %v3006
        %v3019 = vmul.f32 %v2613, %v3006
        %v3020 = vmul.f32 %v2614, %v3006
        %v3021 = vmul.f32 %v2615, %v3006
        %v3022 = vmul.f32 %v2616, %v3006
        %v3023 = vmul.f32 %v2617, %v3006
        %v3024 = vmul.f32 %v2618, %v3006
        %v3025 = vmul.f32 %v2619, %v3006
        %v3026 = vmul.f32 %v2620, %v3006
        %v3027 = vmul.f32 %v2621, %v3006
        %v3028 = vmul.f32 %v2622, %v3006
        %v3029 = vmul.f32 %v2623, %v3006
        %v3030 = vmul.f32 %v2624, %v3006
        %v3031 = vmul.f32 %v2625, %v3006
        %v3032 = vmul.f32 %v2626, %v3006
        %v3033 = vmul.f32 %v2627, %v3006
        %v3034 = vmul.f32 %v2628, %v3006
        %v3035 = vmul.f32 %v2637, %v3006
        %v3036 = vmul.f32 %v2638, %v3006
        %v3037 = vmul.f32 %v2639, %v3006
        %v3038 = vmul.f32 %v2640, %v3006
        %v3039 = vmul.f32 %v2641, %v3006
        %v3040 = vmul.f32 %v2642, %v3006
        %v3041 = vmul.f32 %v2643, %v3006
        %v3042 = vmul.f32 %v2644, %v3006
        %v3043 = vmul.f32 %v2645, %v3006
        %v3044 = vmul.f32 %v2646, %v3006
        %v3045 = vmul.f32 %v2647, %v3006
        %v3046 = vmul.f32 %v2648, %v3006
        %v3047 = vmul.f32 %v2649, %v3006
        %v3048 = vmul.f32 %v2650, %v3006
        %v3049 = vmul.f32 %v2651, %v3006
        %v3050 = vmul.f32 %v2652, %v3006
        %v3051 = vmul.f32 %v2653, %v3006
        %v3052 = vmul.f32 %v2654, %v3006
        %v3053 = vmul.f32 %v2655, %v3006
        %v3054 = vmul.f32 %v2656, %v3006
        %v3055 = vmul.f32 %v2657, %v3006
        %v3056 = vmul.f32 %v2658, %v3006
        %v3057 = vmul.f32 %v2659, %v3006
        %v3058 = vmul.f32 %v2660, %v3006
        %v3059 = vmul.f32 %v2661, %v3006
        %v3060 = vmul.f32 %v2662, %v3006
        %v3061 = vmul.f32 %v2663, %v3006
        %v3062 = vmul.f32 %v2664, %v3006
        %v3063 = vadd.f32 %v2950, %v3007
        %v3064 = vadd.f32 %v2951, %v3008
        %v3065 = vadd.f32 %v2952, %v3009
        %v3066 = vadd.f32 %v2953, %v3010
        %v3067 = vadd.f32 %v2954, %v3011
        %v3068 = vadd.f32 %v2955, %v3012
        %v3069 = vadd.f32 %v2956, %v3013
        %v3070 = vadd.f32 %v2957, %v3014
        %v3071 = vadd.f32 %v2958, %v3015
        %v3072 = vadd.f32 %v2959, %v3016
        %v3073 = vadd.f32 %v2960, %v3017
        %v3074 = vadd.f32 %v2961, %v3018
        %v3075 = vadd.f32 %v2962, %v3019
        %v3076 = vadd.f32 %v2963, %v3020
        %v3077 = vadd.f32 %v2964, %v3021
        %v3078 = vadd.f32 %v2965, %v3022
        %v3079 = vadd.f32 %v2966, %v3023
        %v3080 = vadd.f32 %v2967, %v3024
        %v3081 = vadd.f32 %v2968, %v3025
        %v3082 = vadd.f32 %v2969, %v3026
        %v3083 = vadd.f32 %v2970, %v3027
        %v3084 = vadd.f32 %v2971, %v3028
        %v3085 = vadd.f32 %v2972, %v3029
        %v3086 = vadd.f32 %v2973, %v3030
        %v3087 = vadd.f32 %v2974, %v3031
        %v3088 = vadd.f32 %v2975, %v3032
        %v3089 = vadd.f32 %v2976, %v3033
        %v3090 = vadd.f32 %v2977, %v3034
        %v3091 = vadd.f32 %v2978, %v3035
        %v3092 = vadd.f32 %v2979, %v3036
        %v3093 = vadd.f32 %v2980, %v3037
        %v3094 = vadd.f32 %v2981, %v3038
        %v3095 = vadd.f32 %v2982, %v3039
        %v3096 = vadd.f32 %v2983, %v3040
        %v3097 = vadd.f32 %v2984, %v3041
        %v3098 = vadd.f32 %v2985, %v3042
        %v3099 = vadd.f32 %v2986, %v3043
        %v3100 = vadd.f32 %v2987, %v3044
        %v3101 = vadd.f32 %v2988, %v3045
        %v3102 = vadd.f32 %v2989, %v3046
        %v3103 = vadd.f32 %v2990, %v3047
        %v3104 = vadd.f32 %v2991, %v3048
        %v3105 = vadd.f32 %v2992, %v3049
        %v3106 = vadd.f32 %v2993, %v3050
        %v3107 = vadd.f32 %v2994, %v3051
        %v3108 = vadd.f32 %v2995, %v3052
        %v3109 = vadd.f32 %v2996, %v3053
        %v3110 = vadd.f32 %v2997, %v3054
        %v3111 = vadd.f32 %v2998, %v3055
        %v3112 = vadd.f32 %v2999, %v3056
        %v3113 = vadd.f32 %v3000, %v3057
        %v3114 = vadd.f32 %v3001, %v3058
        %v3115 = vadd.f32 %v3002, %v3059
        %v3116 = vadd.f32 %v3003, %v3060
        %v3117 = vadd.f32 %v3004, %v3061
        %v3118 = vadd.f32 %v3005, %v3062
        %v3119 = vperm.slane %v738, 7
        %v3120 = vmul.f32 %v2603, %v3119
        %v3121 = vmul.f32 %v2604, %v3119
        %v3122 = vmul.f32 %v2605, %v3119
        %v3123 = vmul.f32 %v2606, %v3119
        %v3124 = vmul.f32 %v2607, %v3119
        %v3125 = vmul.f32 %v2608, %v3119
        %v3126 = vmul.f32 %v2609, %v3119
        %v3127 = vmul.f32 %v2610, %v3119
        %v3128 = vmul.f32 %v2611, %v3119
        %v3129 = vmul.f32 %v2612, %v3119
        %v3130 = vmul.f32 %v2613, %v3119
        %v3131 = vmul.f32 %v2614, %v3119
        %v3132 = vmul.f32 %v2615, %v3119
        %v3133 = vmul.f32 %v2616, %v3119
        %v3134 = vmul.f32 %v2617, %v3119
        %v3135 = vmul.f32 %v2618, %v3119
        %v3136 = vmul.f32 %v2619, %v3119
        %v3137 = vmul.f32 %v2620, %v3119
        %v3138 = vmul.f32 %v2621, %v3119
        %v3139 = vmul.f32 %v2622, %v3119
        %v3140 = vmul.f32 %v2623, %v3119
        %v3141 = vmul.f32 %v2624, %v3119
        %v3142 = vmul.f32 %v2625, %v3119
        %v3143 = vmul.f32 %v2626, %v3119
        %v3144 = vmul.f32 %v2627, %v3119
        %v3145 = vmul.f32 %v2628, %v3119
        %v3146 = vmul.f32 %v2629, %v3119
        %v3147 = vmul.f32 %v2630, %v3119
        %v3148 = vmul.f32 %v2639, %v3119
        %v3149 = vmul.f32 %v2640, %v3119
        %v3150 = vmul.f32 %v2641, %v3119
        %v3151 = vmul.f32 %v2642, %v3119
        %v3152 = vmul.f32 %v2643, %v3119
        %v3153 = vmul.f32 %v2644, %v3119
        %v3154 = vmul.f32 %v2645, %v3119
        %v3155 = vmul.f32 %v2646, %v3119
        %v3156 = vmul.f32 %v2647, %v3119
        %v3157 = vmul.f32 %v2648, %v3119
        %v3158 = vmul.f32 %v2649, %v3119
        %v3159 = vmul.f32 %v2650, %v3119
        %v3160 = vmul.f32 %v2651, %v3119
        %v3161 = vmul.f32 %v2652, %v3119
        %v3162 = vmul.f32 %v2653, %v3119
        %v3163 = vmul.f32 %v2654, %v3119
        %v3164 = vmul.f32 %v2655, %v3119
        %v3165 = vmul.f32 %v2656, %v3119
        %v3166 = vmul.f32 %v2657, %v3119
        %v3167 = vmul.f32 %v2658, %v3119
        %v3168 = vmul.f32 %v2659, %v3119
        %v3169 = vmul.f32 %v2660, %v3119
        %v3170 = vmul.f32 %v2661, %v3119
        %v3171 = vmul.f32 %v2662, %v3119
        %v3172 = vmul.f32 %v2663, %v3119
        %v3173 = vmul.f32 %v2664, %v3119
        %v3174 = vmul.f32 %v2665, %v3119
        %v3175 = vmul.f32 %v2666, %v3119
        %v3176 = vadd.f32 %v3063, %v3120
        %v3177 = vadd.f32 %v3064, %v3121
        %v3178 = vadd.f32 %v3065, %v3122
        %v3179 = vadd.f32 %v3066, %v3123
        %v3180 = vadd.f32 %v3067, %v3124
        %v3181 = vadd.f32 %v3068, %v3125
        %v3182 = vadd.f32 %v3069, %v3126
        %v3183 = vadd.f32 %v3070, %v3127
        %v3184 = vadd.f32 %v3071, %v3128
        %v3185 = vadd.f32 %v3072, %v3129
        %v3186 = vadd.f32 %v3073, %v3130
        %v3187 = vadd.f32 %v3074, %v3131
        %v3188 = vadd.f32 %v3075, %v3132
        %v3189 = vadd.f32 %v3076, %v3133
        %v3190 = vadd.f32 %v3077, %v3134
        %v3191 = vadd.f32 %v3078, %v3135
        %v3192 = vadd.f32 %v3079, %v3136
        %v3193 = vadd.f32 %v3080, %v3137
        %v3194 = vadd.f32 %v3081, %v3138
        %v3195 = vadd.f32 %v3082, %v3139
        %v3196 = vadd.f32 %v3083, %v3140
        %v3197 = vadd.f32 %v3084, %v3141
        %v3198 = vadd.f32 %v3085, %v3142
        %v3199 = vadd.f32 %v3086, %v3143
        %v3200 = vadd.f32 %v3087, %v3144
        %v3201 = vadd.f32 %v3088, %v3145
        %v3202 = vadd.f32 %v3089, %v3146
        %v3203 = vadd.f32 %v3090, %v3147
        %v3204 = vadd.f32 %v3091, %v3148
        %v3205 = vadd.f32 %v3092, %v3149
        %v3206 = vadd.f32 %v3093, %v3150
        %v3207 = vadd.f32 %v3094, %v3151
        %v3208 = vadd.f32 %v3095, %v3152
        %v3209 = vadd.f32 %v3096, %v3153
        %v3210 = vadd.f32 %v3097, %v3154
        %v3211 = vadd.f32 %v3098, %v3155
        %v3212 = vadd.f32 %v3099, %v3156
        %v3213 = vadd.f32 %v3100, %v3157
        %v3214 = vadd.f32 %v3101, %v3158
        %v3215 = vadd.f32 %v3102, %v3159
        %v3216 = vadd.f32 %v3103, %v3160
        %v3217 = vadd.f32 %v3104, %v3161
        %v3218 = vadd.f32 %v3105, %v3162
        %v3219 = vadd.f32 %v3106, %v3163
        %v3220 = vadd.f32 %v3107, %v3164
        %v3221 = vadd.f32 %v3108, %v3165
        %v3222 = vadd.f32 %v3109, %v3166
        %v3223 = vadd.f32 %v3110, %v3167
        %v3224 = vadd.f32 %v3111, %v3168
        %v3225 = vadd.f32 %v3112, %v3169
        %v3226 = vadd.f32 %v3113, %v3170
        %v3227 = vadd.f32 %v3114, %v3171
        %v3228 = vadd.f32 %v3115, %v3172
        %v3229 = vadd.f32 %v3116, %v3173
        %v3230 = vadd.f32 %v3117, %v3174
        %v3231 = vadd.f32 %v3118, %v3175
        %v3232 = vld [vmem:[#allocation2 + $0x4] sm:$0xff]
        %v3233 = vld [vmem:[#allocation2 + $0xc] sm:$0x3f]
        %v3234 = vld [vmem:[#allocation2 + $0x1c] sm:$0xff]
        %v3235 = vld [vmem:[#allocation2 + $0x24] sm:$0x3f]
        %v3236 = vld [vmem:[#allocation2 + $0x34] sm:$0xff]
        %v3237 = vld [vmem:[#allocation2 + $0x3c] sm:$0x3f]
        %v3238 = vld [vmem:[#allocation2 + $0x4c] sm:$0xff]
        %v3239 = vld [vmem:[#allocation2 + $0x54] sm:$0x3f]
        %v3240 = vld [vmem:[#allocation2 + $0x64] sm:$0xff]
        %v3241 = vld [vmem:[#allocation2 + $0x6c] sm:$0x3f]
        %v3242 = vld [vmem:[#allocation2 + $0x7c] sm:$0xff]
        %v3243 = vld [vmem:[#allocation2 + $0x84] sm:$0x3f]
        %v3244 = vld [vmem:[#allocation2 + $0x94] sm:$0xff]
        %v3245 = vld [vmem:[#allocation2 + $0x9c] sm:$0x3f]
        %v3246 = vld [vmem:[#allocation2 + $0xac] sm:$0xff]
        %v3247 = vld [vmem:[#allocation2 + $0xb4] sm:$0x3f]
        %v3248 = vld [vmem:[#allocation2 + $0xc4] sm:$0xff]
        %v3249 = vld [vmem:[#allocation2 + $0xcc] sm:$0x3f]
        %v3250 = vld [vmem:[#allocation2 + $0xdc] sm:$0xff]
        %v3251 = vld [vmem:[#allocation2 + $0xe4] sm:$0x3f]
        %v3252 = vld [vmem:[#allocation2 + $0xf4] sm:$0xff]
        %v3253 = vld [vmem:[#allocation2 + $0xfc] sm:$0x3f]
        %v3254 = vld [vmem:[#allocation2 + $0x10c] sm:$0xff]
        %v3255 = vld [vmem:[#allocation2 + $0x114] sm:$0x3f]
        %v3256 = vld [vmem:[#allocation2 + $0x124] sm:$0xff]
        %v3257 = vld [vmem:[#allocation2 + $0x12c] sm:$0x3f]
        %v3258 = vld [vmem:[#allocation2 + $0x13c] sm:$0xff]
        %v3259 = vld [vmem:[#allocation2 + $0x144] sm:$0x3f]
        %v3260 = vld [vmem:[#allocation2 + $0x154] sm:$0xff]
        %v3261 = vld [vmem:[#allocation2 + $0x15c] sm:$0x3f]
        %v3262 = vld [vmem:[#allocation2 + $0x16c] sm:$0xff]
        %v3263 = vld [vmem:[#allocation2 + $0x174] sm:$0x3f]
        %v3264 = vld [vmem:[#allocation2 + $0x184] sm:$0xff]
        %v3265 = vld [vmem:[#allocation2 + $0x18c] sm:$0x3f]
        %v3266 = vld [vmem:[#allocation2 + $0x19c] sm:$0xff]
        %v3267 = vld [vmem:[#allocation2 + $0x1a4] sm:$0x3f]
        %v3268 = vld [vmem:[#allocation2 + $0x1b4] sm:$0xff]
        %v3269 = vld [vmem:[#allocation2 + $0x1bc] sm:$0x3f]
        %v3270 = vld [vmem:[#allocation2 + $0x1cc] sm:$0xff]
        %v3271 = vld [vmem:[#allocation2 + $0x1d4] sm:$0x3f]
        %v3272 = vld [vmem:[#allocation2 + $0x1e4] sm:$0xff]
        %v3273 = vld [vmem:[#allocation2 + $0x1ec] sm:$0x3f]
        %v3274 = vld [vmem:[#allocation2 + $0x1fc] sm:$0xff]
        %v3275 = vld [vmem:[#allocation2 + $0x204] sm:$0x3f]
        %v3276 = vld [vmem:[#allocation2 + $0x214] sm:$0xff]
        %v3277 = vld [vmem:[#allocation2 + $0x21c] sm:$0x3f]
        %v3278 = vld [vmem:[#allocation2 + $0x22c] sm:$0xff]
        %v3279 = vld [vmem:[#allocation2 + $0x234] sm:$0x3f]
        %v3280 = vld [vmem:[#allocation2 + $0x244] sm:$0xff]
        %v3281 = vld [vmem:[#allocation2 + $0x24c] sm:$0x3f]
        %v3282 = vld [vmem:[#allocation2 + $0x25c] sm:$0xff]
        %v3283 = vld [vmem:[#allocation2 + $0x264] sm:$0x3f]
        %v3284 = vld [vmem:[#allocation2 + $0x274] sm:$0xff]
        %v3285 = vld [vmem:[#allocation2 + $0x27c] sm:$0x3f]
        %v3286 = vld [vmem:[#allocation2 + $0x28c] sm:$0xff]
        %v3287 = vld [vmem:[#allocation2 + $0x294] sm:$0x3f]
        %v3288 = vld [vmem:[#allocation2 + $0x2a4] sm:$0xff]
        %v3289 = vld [vmem:[#allocation2 + $0x2ac] sm:$0x3f]
        %v3290 = vld [vmem:[#allocation2 + $0x2bc] sm:$0xff]
        %v3291 = vld [vmem:[#allocation2 + $0x2c4] sm:$0x3f]
        %v3292 = vld [vmem:[#allocation2 + $0x2d4] sm:$0xff]
        %v3293 = vld [vmem:[#allocation2 + $0x2dc] sm:$0x3f]
        %v3294 = vld [vmem:[#allocation2 + $0x2ec] sm:$0xff]
        %v3295 = vld [vmem:[#allocation2 + $0x2f4] sm:$0x3f]
        %v3296 = vld [vmem:[#allocation2 + $0x304] sm:$0xff]
        %v3297 = vld [vmem:[#allocation2 + $0x30c] sm:$0x3f]
        %v3298 = vld [vmem:[#allocation2 + $0x31c] sm:$0xff]
        %v3299 = vld [vmem:[#allocation2 + $0x324] sm:$0x3f]
        %v3300 = vld [vmem:[#allocation2 + $0x334] sm:$0xff]
        %v3301 = vld [vmem:[#allocation2 + $0x33c] sm:$0x3f]
        %v3302 = vld [vmem:[#allocation2 + $0x34c] sm:$0xff]
        %v3303 = vld [vmem:[#allocation2 + $0x354] sm:$0x3f]
        %v3304 = vperm.slane %v736, 4
        %v3305 = vmul.f32 %v3232, %v3304
        %v3306 = vmul.f32 %v3233, %v3304
        %v3307 = vmul.f32 %v3234, %v3304
        %v3308 = vmul.f32 %v3235, %v3304
        %v3309 = vmul.f32 %v3236, %v3304
        %v3310 = vmul.f32 %v3237, %v3304
        %v3311 = vmul.f32 %v3238, %v3304
        %v3312 = vmul.f32 %v3239, %v3304
        %v3313 = vmul.f32 %v3240, %v3304
        %v3314 = vmul.f32 %v3241, %v3304
        %v3315 = vmul.f32 %v3242, %v3304
        %v3316 = vmul.f32 %v3243, %v3304
        %v3317 = vmul.f32 %v3244, %v3304
        %v3318 = vmul.f32 %v3245, %v3304
        %v3319 = vmul.f32 %v3246, %v3304
        %v3320 = vmul.f32 %v3247, %v3304
        %v3321 = vmul.f32 %v3248, %v3304
        %v3322 = vmul.f32 %v3249, %v3304
        %v3323 = vmul.f32 %v3250, %v3304
        %v3324 = vmul.f32 %v3251, %v3304
        %v3325 = vmul.f32 %v3252, %v3304
        %v3326 = vmul.f32 %v3253, %v3304
        %v3327 = vmul.f32 %v3254, %v3304
        %v3328 = vmul.f32 %v3255, %v3304
        %v3329 = vmul.f32 %v3256, %v3304
        %v3330 = vmul.f32 %v3257, %v3304
        %v3331 = vmul.f32 %v3258, %v3304
        %v3332 = vmul.f32 %v3259, %v3304
        %v3333 = vmul.f32 %v3268, %v3304
        %v3334 = vmul.f32 %v3269, %v3304
        %v3335 = vmul.f32 %v3270, %v3304
        %v3336 = vmul.f32 %v3271, %v3304
        %v3337 = vmul.f32 %v3272, %v3304
        %v3338 = vmul.f32 %v3273, %v3304
        %v3339 = vmul.f32 %v3274, %v3304
        %v3340 = vmul.f32 %v3275, %v3304
        %v3341 = vmul.f32 %v3276, %v3304
        %v3342 = vmul.f32 %v3277, %v3304
        %v3343 = vmul.f32 %v3278, %v3304
        %v3344 = vmul.f32 %v3279, %v3304
        %v3345 = vmul.f32 %v3280, %v3304
        %v3346 = vmul.f32 %v3281, %v3304
        %v3347 = vmul.f32 %v3282, %v3304
        %v3348 = vmul.f32 %v3283, %v3304
        %v3349 = vmul.f32 %v3284, %v3304
        %v3350 = vmul.f32 %v3285, %v3304
        %v3351 = vmul.f32 %v3286, %v3304
        %v3352 = vmul.f32 %v3287, %v3304
        %v3353 = vmul.f32 %v3288, %v3304
        %v3354 = vmul.f32 %v3289, %v3304
        %v3355 = vmul.f32 %v3290, %v3304
        %v3356 = vmul.f32 %v3291, %v3304
        %v3357 = vmul.f32 %v3292, %v3304
        %v3358 = vmul.f32 %v3293, %v3304
        %v3359 = vmul.f32 %v3294, %v3304
        %v3360 = vmul.f32 %v3295, %v3304
        %v3361 = vadd.f32 %v3176, %v3305
        %v3362 = vadd.f32 %v3177, %v3306
        %v3363 = vadd.f32 %v3178, %v3307
        %v3364 = vadd.f32 %v3179, %v3308
        %v3365 = vadd.f32 %v3180, %v3309
        %v3366 = vadd.f32 %v3181, %v3310
        %v3367 = vadd.f32 %v3182, %v3311
        %v3368 = vadd.f32 %v3183, %v3312
        %v3369 = vadd.f32 %v3184, %v3313
        %v3370 = vadd.f32 %v3185, %v3314
        %v3371 = vadd.f32 %v3186, %v3315
        %v3372 = vadd.f32 %v3187, %v3316
        %v3373 = vadd.f32 %v3188, %v3317
        %v3374 = vadd.f32 %v3189, %v3318
        %v3375 = vadd.f32 %v3190, %v3319
        %v3376 = vadd.f32 %v3191, %v3320
        %v3377 = vadd.f32 %v3192, %v3321
        %v3378 = vadd.f32 %v3193, %v3322
        %v3379 = vadd.f32 %v3194, %v3323
        %v3380 = vadd.f32 %v3195, %v3324
        %v3381 = vadd.f32 %v3196, %v3325
        %v3382 = vadd.f32 %v3197, %v3326
        %v3383 = vadd.f32 %v3198, %v3327
        %v3384 = vadd.f32 %v3199, %v3328
        %v3385 = vadd.f32 %v3200, %v3329
        %v3386 = vadd.f32 %v3201, %v3330
        %v3387 = vadd.f32 %v3202, %v3331
        %v3388 = vadd.f32 %v3203, %v3332
        %v3389 = vadd.f32 %v3204, %v3333
        %v3390 = vadd.f32 %v3205, %v3334
        %v3391 = vadd.f32 %v3206, %v3335
        %v3392 = vadd.f32 %v3207, %v3336
        %v3393 = vadd.f32 %v3208, %v3337
        %v3394 = vadd.f32 %v3209, %v3338
        %v3395 = vadd.f32 %v3210, %v3339
        %v3396 = vadd.f32 %v3211, %v3340
        %v3397 = vadd.f32 %v3212, %v3341
        %v3398 = vadd.f32 %v3213, %v3342
        %v3399 = vadd.f32 %v3214, %v3343
        %v3400 = vadd.f32 %v3215, %v3344
        %v3401 = vadd.f32 %v3216, %v3345
        %v3402 = vadd.f32 %v3217, %v3346
        %v3403 = vadd.f32 %v3218, %v3347
        %v3404 = vadd.f32 %v3219, %v3348
        %v3405 = vadd.f32 %v3220, %v3349
        %v3406 = vadd.f32 %v3221, %v3350
        %v3407 = vadd.f32 %v3222, %v3351
        %v3408 = vadd.f32 %v3223, %v3352
        %v3409 = vadd.f32 %v3224, %v3353
        %v3410 = vadd.f32 %v3225, %v3354
        %v3411 = vadd.f32 %v3226, %v3355
        %v3412 = vadd.f32 %v3227, %v3356
        %v3413 = vadd.f32 %v3228, %v3357
        %v3414 = vadd.f32 %v3229, %v3358
        %v3415 = vadd.f32 %v3230, %v3359
        %v3416 = vadd.f32 %v3231, %v3360
        %v3417 = vperm.slane %v737, 1
        %v3418 = vmul.f32 %v3234, %v3417
        %v3419 = vmul.f32 %v3235, %v3417
        %v3420 = vmul.f32 %v3236, %v3417
        %v3421 = vmul.f32 %v3237, %v3417
        %v3422 = vmul.f32 %v3238, %v3417
        %v3423 = vmul.f32 %v3239, %v3417
        %v3424 = vmul.f32 %v3240, %v3417
        %v3425 = vmul.f32 %v3241, %v3417
        %v3426 = vmul.f32 %v3242, %v3417
        %v3427 = vmul.f32 %v3243, %v3417
        %v3428 = vmul.f32 %v3244, %v3417
        %v3429 = vmul.f32 %v3245, %v3417
        %v3430 = vmul.f32 %v3246, %v3417
        %v3431 = vmul.f32 %v3247, %v3417
        %v3432 = vmul.f32 %v3248, %v3417
        %v3433 = vmul.f32 %v3249, %v3417
        %v3434 = vmul.f32 %v3250, %v3417
        %v3435 = vmul.f32 %v3251, %v3417
        %v3436 = vmul.f32 %v3252, %v3417
        %v3437 = vmul.f32 %v3253, %v3417
        %v3438 = vmul.f32 %v3254, %v3417
        %v3439 = vmul.f32 %v3255, %v3417
        %v3440 = vmul.f32 %v3256, %v3417
        %v3441 = vmul.f32 %v3257, %v3417
        %v3442 = vmul.f32 %v3258, %v3417
        %v3443 = vmul.f32 %v3259, %v3417
        %v3444 = vmul.f32 %v3260, %v3417
        %v3445 = vmul.f32 %v3261, %v3417
        %v3446 = vmul.f32 %v3270, %v3417
        %v3447 = vmul.f32 %v3271, %v3417
        %v3448 = vmul.f32 %v3272, %v3417
        %v3449 = vmul.f32 %v3273, %v3417
        %v3450 = vmul.f32 %v3274, %v3417
        %v3451 = vmul.f32 %v3275, %v3417
        %v3452 = vmul.f32 %v3276, %v3417
        %v3453 = vmul.f32 %v3277, %v3417
        %v3454 = vmul.f32 %v3278, %v3417
        %v3455 = vmul.f32 %v3279, %v3417
        %v3456 = vmul.f32 %v3280, %v3417
        %v3457 = vmul.f32 %v3281, %v3417
        %v3458 = vmul.f32 %v3282, %v3417
        %v3459 = vmul.f32 %v3283, %v3417
        %v3460 = vmul.f32 %v3284, %v3417
        %v3461 = vmul.f32 %v3285, %v3417
        %v3462 = vmul.f32 %v3286, %v3417
        %v3463 = vmul.f32 %v3287, %v3417
        %v3464 = vmul.f32 %v3288, %v3417
        %v3465 = vmul.f32 %v3289, %v3417
        %v3466 = vmul.f32 %v3290, %v3417
        %v3467 = vmul.f32 %v3291, %v3417
        %v3468 = vmul.f32 %v3292, %v3417
        %v3469 = vmul.f32 %v3293, %v3417
        %v3470 = vmul.f32 %v3294, %v3417
        %v3471 = vmul.f32 %v3295, %v3417
        %v3472 = vmul.f32 %v3296, %v3417
        %v3473 = vmul.f32 %v3297, %v3417
        %v3474 = vadd.f32 %v3361, %v3418
        %v3475 = vadd.f32 %v3362, %v3419
        %v3476 = vadd.f32 %v3363, %v3420
        %v3477 = vadd.f32 %v3364, %v3421
        %v3478 = vadd.f32 %v3365, %v3422
        %v3479 = vadd.f32 %v3366, %v3423
        %v3480 = vadd.f32 %v3367, %v3424
        %v3481 = vadd.f32 %v3368, %v3425
        %v3482 = vadd.f32 %v3369, %v3426
        %v3483 = vadd.f32 %v3370, %v3427
        %v3484 = vadd.f32 %v3371, %v3428
        %v3485 = vadd.f32 %v3372, %v3429
        %v3486 = vadd.f32 %v3373, %v3430
        %v3487 = vadd.f32 %v3374, %v3431
        %v3488 = vadd.f32 %v3375, %v3432
        %v3489 = vadd.f32 %v3376, %v3433
        %v3490 = vadd.f32 %v3377, %v3434
        %v3491 = vadd.f32 %v3378, %v3435
        %v3492 = vadd.f32 %v3379, %v3436
        %v3493 = vadd.f32 %v3380, %v3437
        %v3494 = vadd.f32 %v3381, %v3438
        %v3495 = vadd.f32 %v3382, %v3439
        %v3496 = vadd.f32 %v3383, %v3440
        %v3497 = vadd.f32 %v3384, %v3441
        %v3498 = vadd.f32 %v3385, %v3442
        %v3499 = vadd.f32 %v3386, %v3443
        %v3500 = vadd.f32 %v3387, %v3444
        %v3501 = vadd.f32 %v3388, %v3445
        %v3502 = vadd.f32 %v3389, %v3446
        %v3503 = vadd.f32 %v3390, %v3447
        %v3504 = vadd.f32 %v3391, %v3448
        %v3505 = vadd.f32 %v3392, %v3449
        %v3506 = vadd.f32 %v3393, %v3450
        %v3507 = vadd.f32 %v3394, %v3451
        %v3508 = vadd.f32 %v3395, %v3452
        %v3509 = vadd.f32 %v3396, %v3453
        %v3510 = vadd.f32 %v3397, %v3454
        %v3511 = vadd.f32 %v3398, %v3455
        %v3512 = vadd.f32 %v3399, %v3456
        %v3513 = vadd.f32 %v3400, %v3457
        %v3514 = vadd.f32 %v3401, %v3458
        %v3515 = vadd.f32 %v3402, %v3459
        %v3516 = vadd.f32 %v3403, %v3460
        %v3517 = vadd.f32 %v3404, %v3461
        %v3518 = vadd.f32 %v3405, %v3462
        %v3519 = vadd.f32 %v3406, %v3463
        %v3520 = vadd.f32 %v3407, %v3464
        %v3521 = vadd.f32 %v3408, %v3465
        %v3522 = vadd.f32 %v3409, %v3466
        %v3523 = vadd.f32 %v3410, %v3467
        %v3524 = vadd.f32 %v3411, %v3468
        %v3525 = vadd.f32 %v3412, %v3469
        %v3526 = vadd.f32 %v3413, %v3470
        %v3527 = vadd.f32 %v3414, %v3471
        %v3528 = vadd.f32 %v3415, %v3472
        %v3529 = vadd.f32 %v3416, %v3473
        %v3530 = vperm.slane %v737, 6
        %v3531 = vmul.f32 %v3236, %v3530
        %v3532 = vmul.f32 %v3237, %v3530
        %v3533 = vmul.f32 %v3238, %v3530
        %v3534 = vmul.f32 %v3239, %v3530
        %v3535 = vmul.f32 %v3240, %v3530
        %v3536 = vmul.f32 %v3241, %v3530
        %v3537 = vmul.f32 %v3242, %v3530
        %v3538 = vmul.f32 %v3243, %v3530
        %v3539 = vmul.f32 %v3244, %v3530
        %v3540 = vmul.f32 %v3245, %v3530
        %v3541 = vmul.f32 %v3246, %v3530
        %v3542 = vmul.f32 %v3247, %v3530
        %v3543 = vmul.f32 %v3248, %v3530
        %v3544 = vmul.f32 %v3249, %v3530
        %v3545 = vmul.f32 %v3250, %v3530
        %v3546 = vmul.f32 %v3251, %v3530
        %v3547 = vmul.f32 %v3252, %v3530
        %v3548 = vmul.f32 %v3253, %v3530
        %v3549 = vmul.f32 %v3254, %v3530
        %v3550 = vmul.f32 %v3255, %v3530
        %v3551 = vmul.f32 %v3256, %v3530
        %v3552 = vmul.f32 %v3257, %v3530
        %v3553 = vmul.f32 %v3258, %v3530
        %v3554 = vmul.f32 %v3259, %v3530
        %v3555 = vmul.f32 %v3260, %v3530
        %v3556 = vmul.f32 %v3261, %v3530
        %v3557 = vmul.f32 %v3262, %v3530
        %v3558 = vmul.f32 %v3263, %v3530
        %v3559 = vmul.f32 %v3272, %v3530
        %v3560 = vmul.f32 %v3273, %v3530
        %v3561 = vmul.f32 %v3274, %v3530
        %v3562 = vmul.f32 %v3275, %v3530
        %v3563 = vmul.f32 %v3276, %v3530
        %v3564 = vmul.f32 %v3277, %v3530
        %v3565 = vmul.f32 %v3278, %v3530
        %v3566 = vmul.f32 %v3279, %v3530
        %v3567 = vmul.f32 %v3280, %v3530
        %v3568 = vmul.f32 %v3281, %v3530
        %v3569 = vmul.f32 %v3282, %v3530
        %v3570 = vmul.f32 %v3283, %v3530
        %v3571 = vmul.f32 %v3284, %v3530
        %v3572 = vmul.f32 %v3285, %v3530
        %v3573 = vmul.f32 %v3286, %v3530
        %v3574 = vmul.f32 %v3287, %v3530
        %v3575 = vmul.f32 %v3288, %v3530
        %v3576 = vmul.f32 %v3289, %v3530
        %v3577 = vmul.f32 %v3290, %v3530
        %v3578 = vmul.f32 %v3291, %v3530
        %v3579 = vmul.f32 %v3292, %v3530
        %v3580 = vmul.f32 %v3293, %v3530
        %v3581 = vmul.f32 %v3294, %v3530
        %v3582 = vmul.f32 %v3295, %v3530
        %v3583 = vmul.f32 %v3296, %v3530
        %v3584 = vmul.f32 %v3297, %v3530
        %v3585 = vmul.f32 %v3298, %v3530
        %v3586 = vmul.f32 %v3299, %v3530
        %v3587 = vadd.f32 %v3474, %v3531
        %v3588 = vadd.f32 %v3475, %v3532
        %v3589 = vadd.f32 %v3476, %v3533
        %v3590 = vadd.f32 %v3477, %v3534
        %v3591 = vadd.f32 %v3478, %v3535
        %v3592 = vadd.f32 %v3479, %v3536
        %v3593 = vadd.f32 %v3480, %v3537
        %v3594 = vadd.f32 %v3481, %v3538
        %v3595 = vadd.f32 %v3482, %v3539
        %v3596 = vadd.f32 %v3483, %v3540
        %v3597 = vadd.f32 %v3484, %v3541
        %v3598 = vadd.f32 %v3485, %v3542
        %v3599 = vadd.f32 %v3486, %v3543
        %v3600 = vadd.f32 %v3487, %v3544
        %v3601 = vadd.f32 %v3488, %v3545
        %v3602 = vadd.f32 %v3489, %v3546
        %v3603 = vadd.f32 %v3490, %v3547
        %v3604 = vadd.f32 %v3491, %v3548
        %v3605 = vadd.f32 %v3492, %v3549
        %v3606 = vadd.f32 %v3493, %v3550
        %v3607 = vadd.f32 %v3494, %v3551
        %v3608 = vadd.f32 %v3495, %v3552
        %v3609 = vadd.f32 %v3496, %v3553
        %v3610 = vadd.f32 %v3497, %v3554
        %v3611 = vadd.f32 %v3498, %v3555
        %v3612 = vadd.f32 %v3499, %v3556
        %v3613 = vadd.f32 %v3500, %v3557
        %v3614 = vadd.f32 %v3501, %v3558
        %v3615 = vadd.f32 %v3502, %v3559
        %v3616 = vadd.f32 %v3503, %v3560
        %v3617 = vadd.f32 %v3504, %v3561
        %v3618 = vadd.f32 %v3505, %v3562
        %v3619 = vadd.f32 %v3506, %v3563
        %v3620 = vadd.f32 %v3507, %v3564
        %v3621 = vadd.f32 %v3508, %v3565
        %v3622 = vadd.f32 %v3509, %v3566
        %v3623 = vadd.f32 %v3510, %v3567
        %v3624 = vadd.f32 %v3511, %v3568
        %v3625 = vadd.f32 %v3512, %v3569
        %v3626 = vadd.f32 %v3513, %v3570
        %v3627 = vadd.f32 %v3514, %v3571
        %v3628 = vadd.f32 %v3515, %v3572
        %v3629 = vadd.f32 %v3516, %v3573
        %v3630 = vadd.f32 %v3517, %v3574
        %v3631 = vadd.f32 %v3518, %v3575
        %v3632 = vadd.f32 %v3519, %v3576
        %v3633 = vadd.f32 %v3520, %v3577
        %v3634 = vadd.f32 %v3521, %v3578
        %v3635 = vadd.f32 %v3522, %v3579
        %v3636 = vadd.f32 %v3523, %v3580
        %v3637 = vadd.f32 %v3524, %v3581
        %v3638 = vadd.f32 %v3525, %v3582
        %v3639 = vadd.f32 %v3526, %v3583
        %v3640 = vadd.f32 %v3527, %v3584
        %v3641 = vadd.f32 %v3528, %v3585
        %v3642 = vadd.f32 %v3529, %v3586
        %v3643 = vperm.slane %v738, 3
        %v3644 = vmul.f32 %v3238, %v3643
        %v3645 = vmul.f32 %v3239, %v3643
        %v3646 = vmul.f32 %v3240, %v3643
        %v3647 = vmul.f32 %v3241, %v3643
        %v3648 = vmul.f32 %v3242, %v3643
        %v3649 = vmul.f32 %v3243, %v3643
        %v3650 = vmul.f32 %v3244, %v3643
        %v3651 = vmul.f32 %v3245, %v3643
        %v3652 = vmul.f32 %v3246, %v3643
        %v3653 = vmul.f32 %v3247, %v3643
        %v3654 = vmul.f32 %v3248, %v3643
        %v3655 = vmul.f32 %v3249, %v3643
        %v3656 = vmul.f32 %v3250, %v3643
        %v3657 = vmul.f32 %v3251, %v3643
        %v3658 = vmul.f32 %v3252, %v3643
        %v3659 = vmul.f32 %v3253, %v3643
        %v3660 = vmul.f32 %v3254, %v3643
        %v3661 = vmul.f32 %v3255, %v3643
        %v3662 = vmul.f32 %v3256, %v3643
        %v3663 = vmul.f32 %v3257, %v3643
        %v3664 = vmul.f32 %v3258, %v3643
        %v3665 = vmul.f32 %v3259, %v3643
        %v3666 = vmul.f32 %v3260, %v3643
        %v3667 = vmul.f32 %v3261, %v3643
        %v3668 = vmul.f32 %v3262, %v3643
        %v3669 = vmul.f32 %v3263, %v3643
        %v3670 = vmul.f32 %v3264, %v3643
        %v3671 = vmul.f32 %v3265, %v3643
        %v3672 = vmul.f32 %v3274, %v3643
        %v3673 = vmul.f32 %v3275, %v3643
        %v3674 = vmul.f32 %v3276, %v3643
        %v3675 = vmul.f32 %v3277, %v3643
        %v3676 = vmul.f32 %v3278, %v3643
        %v3677 = vmul.f32 %v3279, %v3643
        %v3678 = vmul.f32 %v3280, %v3643
        %v3679 = vmul.f32 %v3281, %v3643
        %v3680 = vmul.f32 %v3282, %v3643
        %v3681 = vmul.f32 %v3283, %v3643
        %v3682 = vmul.f32 %v3284, %v3643
        %v3683 = vmul.f32 %v3285, %v3643
        %v3684 = vmul.f32 %v3286, %v3643
        %v3685 = vmul.f32 %v3287, %v3643
        %v3686 = vmul.f32 %v3288, %v3643
        %v3687 = vmul.f32 %v3289, %v3643
        %v3688 = vmul.f32 %v3290, %v3643
        %v3689 = vmul.f32 %v3291, %v3643
        %v3690 = vmul.f32 %v3292, %v3643
        %v3691 = vmul.f32 %v3293, %v3643
        %v3692 = vmul.f32 %v3294, %v3643
        %v3693 = vmul.f32 %v3295, %v3643
        %v3694 = vmul.f32 %v3296, %v3643
        %v3695 = vmul.f32 %v3297, %v3643
        %v3696 = vmul.f32 %v3298, %v3643
        %v3697 = vmul.f32 %v3299, %v3643
        %v3698 = vmul.f32 %v3300, %v3643
        %v3699 = vmul.f32 %v3301, %v3643
        %v3700 = vadd.f32 %v3587, %v3644
        %v3701 = vadd.f32 %v3588, %v3645
        %v3702 = vadd.f32 %v3589, %v3646
        %v3703 = vadd.f32 %v3590, %v3647
        %v3704 = vadd.f32 %v3591, %v3648
        %v3705 = vadd.f32 %v3592, %v3649
        %v3706 = vadd.f32 %v3593, %v3650
        %v3707 = vadd.f32 %v3594, %v3651
        %v3708 = vadd.f32 %v3595, %v3652
        %v3709 = vadd.f32 %v3596, %v3653
        %v3710 = vadd.f32 %v3597, %v3654
        %v3711 = vadd.f32 %v3598, %v3655
        %v3712 = vadd.f32 %v3599, %v3656
        %v3713 = vadd.f32 %v3600, %v3657
        %v3714 = vadd.f32 %v3601, %v3658
        %v3715 = vadd.f32 %v3602, %v3659
        %v3716 = vadd.f32 %v3603, %v3660
        %v3717 = vadd.f32 %v3604, %v3661
        %v3718 = vadd.f32 %v3605, %v3662
        %v3719 = vadd.f32 %v3606, %v3663
        %v3720 = vadd.f32 %v3607, %v3664
        %v3721 = vadd.f32 %v3608, %v3665
        %v3722 = vadd.f32 %v3609, %v3666
        %v3723 = vadd.f32 %v3610, %v3667
        %v3724 = vadd.f32 %v3611, %v3668
        %v3725 = vadd.f32 %v3612, %v3669
        %v3726 = vadd.f32 %v3613, %v3670
        %v3727 = vadd.f32 %v3614, %v3671
        %v3728 = vadd.f32 %v3615, %v3672
        %v3729 = vadd.f32 %v3616, %v3673
        %v3730 = vadd.f32 %v3617, %v3674
        %v3731 = vadd.f32 %v3618, %v3675
        %v3732 = vadd.f32 %v3619, %v3676
        %v3733 = vadd.f32 %v3620, %v3677
        %v3734 = vadd.f32 %v3621, %v3678
        %v3735 = vadd.f32 %v3622, %v3679
        %v3736 = vadd.f32 %v3623, %v3680
        %v3737 = vadd.f32 %v3624, %v3681
        %v3738 = vadd.f32 %v3625, %v3682
        %v3739 = vadd.f32 %v3626, %v3683
        %v3740 = vadd.f32 %v3627, %v3684
        %v3741 = vadd.f32 %v3628, %v3685
        %v3742 = vadd.f32 %v3629, %v3686
        %v3743 = vadd.f32 %v3630, %v3687
        %v3744 = vadd.f32 %v3631, %v3688
        %v3745 = vadd.f32 %v3632, %v3689
        %v3746 = vadd.f32 %v3633, %v3690
        %v3747 = vadd.f32 %v3634, %v3691
        %v3748 = vadd.f32 %v3635, %v3692
        %v3749 = vadd.f32 %v3636, %v3693
        %v3750 = vadd.f32 %v3637, %v3694
        %v3751 = vadd.f32 %v3638, %v3695
        %v3752 = vadd.f32 %v3639, %v3696
        %v3753 = vadd.f32 %v3640, %v3697
        %v3754 = vadd.f32 %v3641, %v3698
        %v3755 = vadd.f32 %v3642, %v3699
        %v3756 = vperm.slane %v739, 0
        %v3757 = vmul.f32 %v3240, %v3756
        %v3758 = vmul.f32 %v3241, %v3756
        %v3759 = vmul.f32 %v3242, %v3756
        %v3760 = vmul.f32 %v3243, %v3756
        %v3761 = vmul.f32 %v3244, %v3756
        %v3762 = vmul.f32 %v3245, %v3756
        %v3763 = vmul.f32 %v3246, %v3756
        %v3764 = vmul.f32 %v3247, %v3756
        %v3765 = vmul.f32 %v3248, %v3756
        %v3766 = vmul.f32 %v3249, %v3756
        %v3767 = vmul.f32 %v3250, %v3756
        %v3768 = vmul.f32 %v3251, %v3756
        %v3769 = vmul.f32 %v3252, %v3756
        %v3770 = vmul.f32 %v3253, %v3756
        %v3771 = vmul.f32 %v3254, %v3756
        %v3772 = vmul.f32 %v3255, %v3756
        %v3773 = vmul.f32 %v3256, %v3756
        %v3774 = vmul.f32 %v3257, %v3756
        %v3775 = vmul.f32 %v3258, %v3756
        %v3776 = vmul.f32 %v3259, %v3756
        %v3777 = vmul.f32 %v3260, %v3756
        %v3778 = vmul.f32 %v3261, %v3756
        %v3779 = vmul.f32 %v3262, %v3756
        %v3780 = vmul.f32 %v3263, %v3756
        %v3781 = vmul.f32 %v3264, %v3756
        %v3782 = vmul.f32 %v3265, %v3756
        %v3783 = vmul.f32 %v3266, %v3756
        %v3784 = vmul.f32 %v3267, %v3756
        %v3785 = vmul.f32 %v3276, %v3756
        %v3786 = vmul.f32 %v3277, %v3756
        %v3787 = vmul.f32 %v3278, %v3756
        %v3788 = vmul.f32 %v3279, %v3756
        %v3789 = vmul.f32 %v3280, %v3756
        %v3790 = vmul.f32 %v3281, %v3756
        %v3791 = vmul.f32 %v3282, %v3756
        %v3792 = vmul.f32 %v3283, %v3756
        %v3793 = vmul.f32 %v3284, %v3756
        %v3794 = vmul.f32 %v3285, %v3756
        %v3795 = vmul.f32 %v3286, %v3756
        %v3796 = vmul.f32 %v3287, %v3756
        %v3797 = vmul.f32 %v3288, %v3756
        %v3798 = vmul.f32 %v3289, %v3756
        %v3799 = vmul.f32 %v3290, %v3756
        %v3800 = vmul.f32 %v3291, %v3756
        %v3801 = vmul.f32 %v3292, %v3756
        %v3802 = vmul.f32 %v3293, %v3756
        %v3803 = vmul.f32 %v3294, %v3756
        %v3804 = vmul.f32 %v3295, %v3756
        %v3805 = vmul.f32 %v3296, %v3756
        %v3806 = vmul.f32 %v3297, %v3756
        %v3807 = vmul.f32 %v3298, %v3756
        %v3808 = vmul.f32 %v3299, %v3756
        %v3809 = vmul.f32 %v3300, %v3756
        %v3810 = vmul.f32 %v3301, %v3756
        %v3811 = vmul.f32 %v3302, %v3756
        %v3812 = vmul.f32 %v3303, %v3756
        %v3813 = vadd.f32 %v3700, %v3757
        %v3814 = vadd.f32 %v3701, %v3758
        %v3815 = vadd.f32 %v3702, %v3759
        %v3816 = vadd.f32 %v3703, %v3760
        %v3817 = vadd.f32 %v3704, %v3761
        %v3818 = vadd.f32 %v3705, %v3762
        %v3819 = vadd.f32 %v3706, %v3763
        %v3820 = vadd.f32 %v3707, %v3764
        %v3821 = vadd.f32 %v3708, %v3765
        %v3822 = vadd.f32 %v3709, %v3766
        %v3823 = vadd.f32 %v3710, %v3767
        %v3824 = vadd.f32 %v3711, %v3768
        %v3825 = vadd.f32 %v3712, %v3769
        %v3826 = vadd.f32 %v3713, %v3770
        %v3827 = vadd.f32 %v3714, %v3771
        %v3828 = vadd.f32 %v3715, %v3772
        %v3829 = vadd.f32 %v3716, %v3773
        %v3830 = vadd.f32 %v3717, %v3774
        %v3831 = vadd.f32 %v3718, %v3775
        %v3832 = vadd.f32 %v3719, %v3776
        %v3833 = vadd.f32 %v3720, %v3777
        %v3834 = vadd.f32 %v3721, %v3778
        %v3835 = vadd.f32 %v3722, %v3779
        %v3836 = vadd.f32 %v3723, %v3780
        %v3837 = vadd.f32 %v3724, %v3781
        %v3838 = vadd.f32 %v3725, %v3782
        %v3839 = vadd.f32 %v3726, %v3783
        %v3840 = vadd.f32 %v3727, %v3784
        %v3841 = vadd.f32 %v3728, %v3785
        %v3842 = vadd.f32 %v3729, %v3786
        %v3843 = vadd.f32 %v3730, %v3787
        %v3844 = vadd.f32 %v3731, %v3788
        %v3845 = vadd.f32 %v3732, %v3789
        %v3846 = vadd.f32 %v3733, %v3790
        %v3847 = vadd.f32 %v3734, %v3791
        %v3848 = vadd.f32 %v3735, %v3792
        %v3849 = vadd.f32 %v3736, %v3793
        %v3850 = vadd.f32 %v3737, %v3794
        %v3851 = vadd.f32 %v3738, %v3795
        %v3852 = vadd.f32 %v3739, %v3796
        %v3853 = vadd.f32 %v3740, %v3797
        %v3854 = vadd.f32 %v3741, %v3798
        %v3855 = vadd.f32 %v3742, %v3799
        %v3856 = vadd.f32 %v3743, %v3800
        %v3857 = vadd.f32 %v3744, %v3801
        %v3858 = vadd.f32 %v3745, %v3802
        %v3859 = vadd.f32 %v3746, %v3803
        %v3860 = vadd.f32 %v3747, %v3804
        %v3861 = vadd.f32 %v3748, %v3805
        %v3862 = vadd.f32 %v3749, %v3806
        %v3863 = vadd.f32 %v3750, %v3807
        %v3864 = vadd.f32 %v3751, %v3808
        %v3865 = vadd.f32 %v3752, %v3809
        %v3866 = vadd.f32 %v3753, %v3810
        %v3867 = vadd.f32 %v3754, %v3811
        %v3868 = vadd.f32 %v3755, %v3812
        %vm3869 = vcmask 1045504
        %v3870 = vsel %vm3869, %v3814, 0.0
        %v3871 = vadd.f32 %v3813, %v3870
        %v3872 = vadd.f32 %v3871, %v3815
        %v3873 = vsel %vm3869, %v3816, 0.0
        %v3874 = vadd.f32 %v3872, %v3873
        %v3875 = vadd.f32 %v3874, %v3817
        %v3876 = vsel %vm3869, %v3818, 0.0
        %v3877 = vadd.f32 %v3875, %v3876
        %v3878 = vadd.f32 %v3877, %v3819
        %v3879 = vsel %vm3869, %v3820, 0.0
        %v3880 = vadd.f32 %v3878, %v3879
        %v3881 = vadd.f32 %v3880, %v3821
        %v3882 = vsel %vm3869, %v3822, 0.0
        %v3883 = vadd.f32 %v3881, %v3882
        %v3884 = vadd.f32 %v3883, %v3823
        %v3885 = vsel %vm3869, %v3824, 0.0
        %v3886 = vadd.f32 %v3884, %v3885
        %v3887 = vadd.f32 %v3886, %v3825
        %v3888 = vsel %vm3869, %v3826, 0.0
        %v3889 = vadd.f32 %v3887, %v3888
        %v3890 = vadd.f32 %v3889, %v3827
        %v3891 = vsel %vm3869, %v3828, 0.0
        %v3892 = vadd.f32 %v3890, %v3891
        %v3893 = vadd.f32 %v3892, %v3829
        %v3894 = vsel %vm3869, %v3830, 0.0
        %v3895 = vadd.f32 %v3893, %v3894
        %v3896 = vadd.f32 %v3895, %v3831
        %v3897 = vsel %vm3869, %v3832, 0.0
        %v3898 = vadd.f32 %v3896, %v3897
        %v3899 = vadd.f32 %v3898, %v3833
        %v3900 = vsel %vm3869, %v3834, 0.0
        %v3901 = vadd.f32 %v3899, %v3900
        %v3902 = vadd.f32 %v3901, %v3835
        %v3903 = vsel %vm3869, %v3836, 0.0
        %v3904 = vadd.f32 %v3902, %v3903
        %v3905 = vadd.f32 %v3904, %v3837
        %v3906 = vsel %vm3869, %v3838, 0.0
        %v3907 = vadd.f32 %v3905, %v3906
        %v3908 = vadd.f32 %v3907, %v3839
        %v3909 = vsel %vm3869, %v3840, 0.0
        %v3910 = vadd.f32 %v3908, %v3909
        %v3911 = vadd.f32 %v3910, %v3841
        %v3912 = vsel %vm3869, %v3842, 0.0
        %v3913 = vadd.f32 %v3911, %v3912
        %v3914 = vadd.f32 %v3913, %v3843
        %v3915 = vsel %vm3869, %v3844, 0.0
        %v3916 = vadd.f32 %v3914, %v3915
        %v3917 = vadd.f32 %v3916, %v3845
        %v3918 = vsel %vm3869, %v3846, 0.0
        %v3919 = vadd.f32 %v3917, %v3918
        %v3920 = vadd.f32 %v3919, %v3847
        %v3921 = vsel %vm3869, %v3848, 0.0
        %v3922 = vadd.f32 %v3920, %v3921
        %v3923 = vadd.f32 %v3922, %v3849
        %v3924 = vsel %vm3869, %v3850, 0.0
        %v3925 = vadd.f32 %v3923, %v3924
        %v3926 = vadd.f32 %v3925, %v3851
        %v3927 = vsel %vm3869, %v3852, 0.0
        %v3928 = vadd.f32 %v3926, %v3927
        %v3929 = vadd.f32 %v3928, %v3853
        %v3930 = vsel %vm3869, %v3854, 0.0
        %v3931 = vadd.f32 %v3929, %v3930
        %v3932 = vadd.f32 %v3931, %v3855
        %v3933 = vsel %vm3869, %v3856, 0.0
        %v3934 = vadd.f32 %v3932, %v3933
        %v3935 = vadd.f32 %v3934, %v3857
        %v3936 = vsel %vm3869, %v3858, 0.0
        %v3937 = vadd.f32 %v3935, %v3936
        %v3938 = vadd.f32 %v3937, %v3859
        %v3939 = vsel %vm3869, %v3860, 0.0
        %v3940 = vadd.f32 %v3938, %v3939
        %v3941 = vadd.f32 %v3940, %v3861
        %v3942 = vsel %vm3869, %v3862, 0.0
        %v3943 = vadd.f32 %v3941, %v3942
        %v3944 = vadd.f32 %v3943, %v3863
        %v3945 = vsel %vm3869, %v3864, 0.0
        %v3946 = vadd.f32 %v3944, %v3945
        %v3947 = vadd.f32 %v3946, %v3865
        %v3948 = vsel %vm3869, %v3866, 0.0
        %v3949 = vadd.f32 %v3947, %v3948
        %v3950 = vadd.f32 %v3949, %v3867
        %v3951 = vsel %vm3869, %v3868, 0.0
        %v3952 = vadd.f32 %v3950, %v3951
        %v3953 = vrot.slane %v3952, 4
        %v3954 = vadd.f32 %v3952, %v3953
        %v3955 = vrot.slane %v3954, 2
        %v3956 = vadd.f32 %v3954, %v3955
        %v3957 = vrot.slane %v3956, 1
        %v3958 = vadd.f32 %v3956, %v3957
        %v3959 = vmul.f32 %v3813, %v3813
        %v3960 = vmul.f32 %v3814, %v3814
        %v3961 = vmul.f32 %v3815, %v3815
        %v3962 = vmul.f32 %v3816, %v3816
        %v3963 = vmul.f32 %v3817, %v3817
        %v3964 = vmul.f32 %v3818, %v3818
        %v3965 = vmul.f32 %v3819, %v3819
        %v3966 = vmul.f32 %v3820, %v3820
        %v3967 = vmul.f32 %v3821, %v3821
        %v3968 = vmul.f32 %v3822, %v3822
        %v3969 = vmul.f32 %v3823, %v3823
        %v3970 = vmul.f32 %v3824, %v3824
        %v3971 = vmul.f32 %v3825, %v3825
        %v3972 = vmul.f32 %v3826, %v3826
        %v3973 = vmul.f32 %v3827, %v3827
        %v3974 = vmul.f32 %v3828, %v3828
        %v3975 = vmul.f32 %v3829, %v3829
        %v3976 = vmul.f32 %v3830, %v3830
        %v3977 = vmul.f32 %v3831, %v3831
        %v3978 = vmul.f32 %v3832, %v3832
        %v3979 = vmul.f32 %v3833, %v3833
        %v3980 = vmul.f32 %v3834, %v3834
        %v3981 = vmul.f32 %v3835, %v3835
        %v3982 = vmul.f32 %v3836, %v3836
        %v3983 = vmul.f32 %v3837, %v3837
        %v3984 = vmul.f32 %v3838, %v3838
        %v3985 = vmul.f32 %v3839, %v3839
        %v3986 = vmul.f32 %v3840, %v3840
        %v3987 = vmul.f32 %v3841, %v3841
        %v3988 = vmul.f32 %v3842, %v3842
        %v3989 = vmul.f32 %v3843, %v3843
        %v3990 = vmul.f32 %v3844, %v3844
        %v3991 = vmul.f32 %v3845, %v3845
        %v3992 = vmul.f32 %v3846, %v3846
        %v3993 = vmul.f32 %v3847, %v3847
        %v3994 = vmul.f32 %v3848, %v3848
        %v3995 = vmul.f32 %v3849, %v3849
        %v3996 = vmul.f32 %v3850, %v3850
        %v3997 = vmul.f32 %v3851, %v3851
        %v3998 = vmul.f32 %v3852, %v3852
        %v3999 = vmul.f32 %v3853, %v3853
        %v4000 = vmul.f32 %v3854, %v3854
        %v4001 = vmul.f32 %v3855, %v3855
        %v4002 = vmul.f32 %v3856, %v3856
        %v4003 = vmul.f32 %v3857, %v3857
        %v4004 = vmul.f32 %v3858, %v3858
        %v4005 = vmul.f32 %v3859, %v3859
        %v4006 = vmul.f32 %v3860, %v3860
        %v4007 = vmul.f32 %v3861, %v3861
        %v4008 = vmul.f32 %v3862, %v3862
        %v4009 = vmul.f32 %v3863, %v3863
        %v4010 = vmul.f32 %v3864, %v3864
        %v4011 = vmul.f32 %v3865, %v3865
        %v4012 = vmul.f32 %v3866, %v3866
        %v4013 = vmul.f32 %v3867, %v3867
        %v4014 = vmul.f32 %v3868, %v3868
        %v4015 = vsel %vm3869, %v3960, 0.0
        %v4016 = vadd.f32 %v3959, %v4015
        %v4017 = vadd.f32 %v4016, %v3961
        %v4018 = vsel %vm3869, %v3962, 0.0
        %v4019 = vadd.f32 %v4017, %v4018
        %v4020 = vadd.f32 %v4019, %v3963
        %v4021 = vsel %vm3869, %v3964, 0.0
        %v4022 = vadd.f32 %v4020, %v4021
        %v4023 = vadd.f32 %v4022, %v3965
        %v4024 = vsel %vm3869, %v3966, 0.0
        %v4025 = vadd.f32 %v4023, %v4024
        %v4026 = vadd.f32 %v4025, %v3967
        %v4027 = vsel %vm3869, %v3968, 0.0
        %v4028 = vadd.f32 %v4026, %v4027
        %v4029 = vadd.f32 %v4028, %v3969
        %v4030 = vsel %vm3869, %v3970, 0.0
        %v4031 = vadd.f32 %v4029, %v4030
        %v4032 = vadd.f32 %v4031, %v3971
        %v4033 = vsel %vm3869, %v3972, 0.0
        %v4034 = vadd.f32 %v4032, %v4033
        %v4035 = vadd.f32 %v4034, %v3973
        %v4036 = vsel %vm3869, %v3974, 0.0
        %v4037 = vadd.f32 %v4035, %v4036
        %v4038 = vadd.f32 %v4037, %v3975
        %v4039 = vsel %vm3869, %v3976, 0.0
        %v4040 = vadd.f32 %v4038, %v4039
        %v4041 = vadd.f32 %v4040, %v3977
        %v4042 = vsel %vm3869, %v3978, 0.0
        %v4043 = vadd.f32 %v4041, %v4042
        %v4044 = vadd.f32 %v4043, %v3979
        %v4045 = vsel %vm3869, %v3980, 0.0
        %v4046 = vadd.f32 %v4044, %v4045
        %v4047 = vadd.f32 %v4046, %v3981
        %v4048 = vsel %vm3869, %v3982, 0.0
        %v4049 = vadd.f32 %v4047, %v4048
        %v4050 = vadd.f32 %v4049, %v3983
        %v4051 = vsel %vm3869, %v3984, 0.0
        %v4052 = vadd.f32 %v4050, %v4051
        %v4053 = vadd.f32 %v4052, %v3985
        %v4054 = vsel %vm3869, %v3986, 0.0
        %v4055 = vadd.f32 %v4053, %v4054
        %v4056 = vadd.f32 %v4055, %v3987
        %v4057 = vsel %vm3869, %v3988, 0.0
        %v4058 = vadd.f32 %v4056, %v4057
        %v4059 = vadd.f32 %v4058, %v3989
        %v4060 = vsel %vm3869, %v3990, 0.0
        %v4061 = vadd.f32 %v4059, %v4060
        %v4062 = vadd.f32 %v4061, %v3991
        %v4063 = vsel %vm3869, %v3992, 0.0
        %v4064 = vadd.f32 %v4062, %v4063
        %v4065 = vadd.f32 %v4064, %v3993
        %v4066 = vsel %vm3869, %v3994, 0.0
        %v4067 = vadd.f32 %v4065, %v4066
        %v4068 = vadd.f32 %v4067, %v3995
        %v4069 = vsel %vm3869, %v3996, 0.0
        %v4070 = vadd.f32 %v4068, %v4069
        %v4071 = vadd.f32 %v4070, %v3997
        %v4072 = vsel %vm3869, %v3998, 0.0
        %v4073 = vadd.f32 %v4071, %v4072
        %v4074 = vadd.f32 %v4073, %v3999
        %v4075 = vsel %vm3869, %v4000, 0.0
        %v4076 = vadd.f32 %v4074, %v4075
        %v4077 = vadd.f32 %v4076, %v4001
        %v4078 = vsel %vm3869, %v4002, 0.0
        %v4079 = vadd.f32 %v4077, %v4078
        %v4080 = vadd.f32 %v4079, %v4003
        %v4081 = vsel %vm3869, %v4004, 0.0
        %v4082 = vadd.f32 %v4080, %v4081
        %v4083 = vadd.f32 %v4082, %v4005
        %v4084 = vsel %vm3869, %v4006, 0.0
        %v4085 = vadd.f32 %v4083, %v4084
        %v4086 = vadd.f32 %v4085, %v4007
        %v4087 = vsel %vm3869, %v4008, 0.0
        %v4088 = vadd.f32 %v4086, %v4087
        %v4089 = vadd.f32 %v4088, %v4009
        %v4090 = vsel %vm3869, %v4010, 0.0
        %v4091 = vadd.f32 %v4089, %v4090
        %v4092 = vadd.f32 %v4091, %v4011
        %v4093 = vsel %vm3869, %v4012, 0.0
        %v4094 = vadd.f32 %v4092, %v4093
        %v4095 = vadd.f32 %v4094, %v4013
        %v4096 = vsel %vm3869, %v4014, 0.0
        %v4097 = vadd.f32 %v4095, %v4096
        %v4098 = vrot.slane %v4097, 4
        %v4099 = vadd.f32 %v4097, %v4098
        %v4100 = vrot.slane %v4099, 2
        %v4101 = vadd.f32 %v4099, %v4100
        %v4102 = vrot.slane %v4101, 1
        %v4103 = vadd.f32 %v4101, %v4102
        %v4104 = vmul.f32 %v3958, 0.0025510204
        %v4105 = vmul.f32 %v4103, 0.0025510204
        %v4106 = vmul.f32 %v4104, %v4104
        %v4107 = vsub.f32 %v4105, %v4106
        %v4108 = vmax.f32 %v4107, 0.0
        %v4109 = vadd.f32 %v4108, 0.001
        %v4110 = vrsqrt.pop %v4109
        %v4111 = vmul.f32 %v4110, %v4109
        %v4112 = vmul.f32 %v4111, %v4110
        %v4113 = vmul.f32 0.5, %v4112
        %v4114 = vsub.f32 1.5, %v4113
        %v4115 = vmul.f32 %v4110, %v4114
        %vm4116 = vweird.f32 %v4109
        %vm4117 = vweird.f32 %v4110
        %vm4118 = vmor %vm4116, %vm4117
        %v4119 = vsel %vm4118, %v4110, %v4115
        %v4120 = vld [vmem:[%s538] sm:$0x1]
        %v4121 = vmul.f32 %v4120, %v4119
        %v4122 = vld [vmem:[%s541] sm:$0x1]
        %v4123 = vmul.f32 %v4104, %v4121
        %v4124 = vsub.f32 %v4122, %v4123
        %v4126 = vperm.slane %v4121, 0
        %v4128 = vmul.f32 %v3813, %v4126
        %v4129 = vmul.f32 %v3814, %v4126
        %v4130 = vmul.f32 %v3815, %v4126
        %v4131 = vmul.f32 %v3816, %v4126
        %v4132 = vmul.f32 %v3817, %v4126
        %v4133 = vmul.f32 %v3818, %v4126
        %v4134 = vmul.f32 %v3819, %v4126
        %v4135 = vmul.f32 %v3820, %v4126
        %v4136 = vmul.f32 %v3821, %v4126
        %v4137 = vmul.f32 %v3822, %v4126
        %v4138 = vmul.f32 %v3823, %v4126
        %v4139 = vmul.f32 %v3824, %v4126
        %v4140 = vmul.f32 %v3825, %v4126
        %v4141 = vmul.f32 %v3826, %v4126
        %v4142 = vmul.f32 %v3827, %v4126
        %v4143 = vmul.f32 %v3828, %v4126
        %v4144 = vmul.f32 %v3829, %v4126
        %v4145 = vmul.f32 %v3830, %v4126
        %v4146 = vmul.f32 %v3831, %v4126
        %v4147 = vmul.f32 %v3832, %v4126
        %v4148 = vmul.f32 %v3833, %v4126
        %v4149 = vmul.f32 %v3834, %v4126
        %v4150 = vmul.f32 %v3835, %v4126
        %v4151 = vmul.f32 %v3836, %v4126
        %v4152 = vmul.f32 %v3837, %v4126
        %v4153 = vmul.f32 %v3838, %v4126
        %v4154 = vmul.f32 %v3839, %v4126
        %v4155 = vmul.f32 %v3840, %v4126
        %v4156 = vmul.f32 %v3841, %v4126
        %v4157 = vmul.f32 %v3842, %v4126
        %v4158 = vmul.f32 %v3843, %v4126
        %v4159 = vmul.f32 %v3844, %v4126
        %v4160 = vmul.f32 %v3845, %v4126
        %v4161 = vmul.f32 %v3846, %v4126
        %v4162 = vmul.f32 %v3847, %v4126
        %v4163 = vmul.f32 %v3848, %v4126
        %v4164 = vmul.f32 %v3849, %v4126
        %v4165 = vmul.f32 %v3850, %v4126
        %v4166 = vmul.f32 %v3851, %v4126
        %v4167 = vmul.f32 %v3852, %v4126
        %v4168 = vmul.f32 %v3853, %v4126
        %v4169 = vmul.f32 %v3854, %v4126
        %v4170 = vmul.f32 %v3855, %v4126
        %v4171 = vmul.f32 %v3856, %v4126
        %v4172 = vmul.f32 %v3857, %v4126
        %v4173 = vmul.f32 %v3858, %v4126
        %v4174 = vmul.f32 %v3859, %v4126
        %v4175 = vmul.f32 %v3860, %v4126
        %v4176 = vmul.f32 %v3861, %v4126
        %v4177 = vmul.f32 %v3862, %v4126
        %v4178 = vmul.f32 %v3863, %v4126
        %v4179 = vmul.f32 %v3864, %v4126
        %v4180 = vmul.f32 %v3865, %v4126
        %v4181 = vmul.f32 %v3866, %v4126
        %v4182 = vmul.f32 %v3867, %v4126
        %v4183 = vmul.f32 %v3868, %v4126
        %v4185 = vperm.slane %v4124, 0
        %v4187 = vadd.f32 %v4128, %v4185
        %v4188 = vadd.f32 %v4129, %v4185
        %v4189 = vadd.f32 %v4130, %v4185
        %v4190 = vadd.f32 %v4131, %v4185
        %v4191 = vadd.f32 %v4132, %v4185
        %v4192 = vadd.f32 %v4133, %v4185
        %v4193 = vadd.f32 %v4134, %v4185
        %v4194 = vadd.f32 %v4135, %v4185
        %v4195 = vadd.f32 %v4136, %v4185
        %v4196 = vadd.f32 %v4137, %v4185
        %v4197 = vadd.f32 %v4138, %v4185
        %v4198 = vadd.f32 %v4139, %v4185
        %v4199 = vadd.f32 %v4140, %v4185
        %v4200 = vadd.f32 %v4141, %v4185
        %v4201 = vadd.f32 %v4142, %v4185
        %v4202 = vadd.f32 %v4143, %v4185
        %v4203 = vadd.f32 %v4144, %v4185
        %v4204 = vadd.f32 %v4145, %v4185
        %v4205 = vadd.f32 %v4146, %v4185
        %v4206 = vadd.f32 %v4147, %v4185
        %v4207 = vadd.f32 %v4148, %v4185
        %v4208 = vadd.f32 %v4149, %v4185
        %v4209 = vadd.f32 %v4150, %v4185
        %v4210 = vadd.f32 %v4151, %v4185
        %v4211 = vadd.f32 %v4152, %v4185
        %v4212 = vadd.f32 %v4153, %v4185
        %v4213 = vadd.f32 %v4154, %v4185
        %v4214 = vadd.f32 %v4155, %v4185
        %v4215 = vadd.f32 %v4156, %v4185
        %v4216 = vadd.f32 %v4157, %v4185
        %v4217 = vadd.f32 %v4158, %v4185
        %v4218 = vadd.f32 %v4159, %v4185
        %v4219 = vadd.f32 %v4160, %v4185
        %v4220 = vadd.f32 %v4161, %v4185
        %v4221 = vadd.f32 %v4162, %v4185
        %v4222 = vadd.f32 %v4163, %v4185
        %v4223 = vadd.f32 %v4164, %v4185
        %v4224 = vadd.f32 %v4165, %v4185
        %v4225 = vadd.f32 %v4166, %v4185
        %v4226 = vadd.f32 %v4167, %v4185
        %v4227 = vadd.f32 %v4168, %v4185
        %v4228 = vadd.f32 %v4169, %v4185
        %v4229 = vadd.f32 %v4170, %v4185
        %v4230 = vadd.f32 %v4171, %v4185
        %v4231 = vadd.f32 %v4172, %v4185
        %v4232 = vadd.f32 %v4173, %v4185
        %v4233 = vadd.f32 %v4174, %v4185
        %v4234 = vadd.f32 %v4175, %v4185
        %v4235 = vadd.f32 %v4176, %v4185
        %v4236 = vadd.f32 %v4177, %v4185
        %v4237 = vadd.f32 %v4178, %v4185
        %v4238 = vadd.f32 %v4179, %v4185
        %v4239 = vadd.f32 %v4180, %v4185
        %v4240 = vadd.f32 %v4181, %v4185
        %v4241 = vadd.f32 %v4182, %v4185
        %v4242 = vadd.f32 %v4183, %v4185
        %4243 = vst [vmem:[%s535] sm:$0xff] %v4187
        %4244 = vst [vmem:[%s535 + $0x8] sm:$0x3f] %v4188
        %4245 = vst [vmem:[%s535 + $0x10] sm:$0xff] %v4189
        %4246 = vst [vmem:[%s535 + $0x18] sm:$0x3f] %v4190
        %4247 = vst [vmem:[%s535 + $0x20] sm:$0xff] %v4191
        %4248 = vst [vmem:[%s535 + $0x28] sm:$0x3f] %v4192
        %4249 = vst [vmem:[%s535 + $0x30] sm:$0xff] %v4193
        %4250 = vst [vmem:[%s535 + $0x38] sm:$0x3f] %v4194
        %4251 = vst [vmem:[%s535 + $0x40] sm:$0xff] %v4195
        %4252 = vst [vmem:[%s535 + $0x48] sm:$0x3f] %v4196
        %4253 = vst [vmem:[%s535 + $0x50] sm:$0xff] %v4197
        %4254 = vst [vmem:[%s535 + $0x58] sm:$0x3f] %v4198
        %4255 = vst [vmem:[%s535 + $0x60] sm:$0xff] %v4199
        %4256 = vst [vmem:[%s535 + $0x68] sm:$0x3f] %v4200
        %4257 = vst [vmem:[%s535 + $0x70] sm:$0xff] %v4201
        %4258 = vst [vmem:[%s535 + $0x78] sm:$0x3f] %v4202
        %4259 = vst [vmem:[%s535 + $0x80] sm:$0xff] %v4203
        %4260 = vst [vmem:[%s535 + $0x88] sm:$0x3f] %v4204
        %4261 = vst [vmem:[%s535 + $0x90] sm:$0xff] %v4205
        %4262 = vst [vmem:[%s535 + $0x98] sm:$0x3f] %v4206
        %4263 = vst [vmem:[%s535 + $0xa0] sm:$0xff] %v4207
        %4264 = vst [vmem:[%s535 + $0xa8] sm:$0x3f] %v4208
        %4265 = vst [vmem:[%s535 + $0xb0] sm:$0xff] %v4209
        %4266 = vst [vmem:[%s535 + $0xb8] sm:$0x3f] %v4210
        %4267 = vst [vmem:[%s535 + $0xc0] sm:$0xff] %v4211
        %4268 = vst [vmem:[%s535 + $0xc8] sm:$0x3f] %v4212
        %4269 = vst [vmem:[%s535 + $0xd0] sm:$0xff] %v4213
        %4270 = vst [vmem:[%s535 + $0xd8] sm:$0x3f] %v4214
        %4271 = vst [vmem:[%s535 + $0xe0] sm:$0xff] %v4215
        %4272 = vst [vmem:[%s535 + $0xe8] sm:$0x3f] %v4216
        %4273 = vst [vmem:[%s535 + $0xf0] sm:$0xff] %v4217
        %4274 = vst [vmem:[%s535 + $0xf8] sm:$0x3f] %v4218
        %4275 = vst [vmem:[%s535 + $0x100] sm:$0xff] %v4219
        %4276 = vst [vmem:[%s535 + $0x108] sm:$0x3f] %v4220
        %4277 = vst [vmem:[%s535 + $0x110] sm:$0xff] %v4221
        %4278 = vst [vmem:[%s535 + $0x118] sm:$0x3f] %v4222
        %4279 = vst [vmem:[%s535 + $0x120] sm:$0xff] %v4223
        %4280 = vst [vmem:[%s535 + $0x128] sm:$0x3f] %v4224
        %4281 = vst [vmem:[%s535 + $0x130] sm:$0xff] %v4225
        %4282 = vst [vmem:[%s535 + $0x138] sm:$0x3f] %v4226
        %4283 = vst [vmem:[%s535 + $0x140] sm:$0xff] %v4227
        %4284 = vst [vmem:[%s535 + $0x148] sm:$0x3f] %v4228
        %4285 = vst [vmem:[%s535 + $0x150] sm:$0xff] %v4229
        %4286 = vst [vmem:[%s535 + $0x158] sm:$0x3f] %v4230
        %4287 = vst [vmem:[%s535 + $0x160] sm:$0xff] %v4231
        %4288 = vst [vmem:[%s535 + $0x168] sm:$0x3f] %v4232
        %4289 = vst [vmem:[%s535 + $0x170] sm:$0xff] %v4233
        %4290 = vst [vmem:[%s535 + $0x178] sm:$0x3f] %v4234
        %4291 = vst [vmem:[%s535 + $0x180] sm:$0xff] %v4235
        %4292 = vst [vmem:[%s535 + $0x188] sm:$0x3f] %v4236
        %4293 = vst [vmem:[%s535 + $0x190] sm:$0xff] %v4237
        %4294 = vst [vmem:[%s535 + $0x198] sm:$0x3f] %v4238
        %4295 = vst [vmem:[%s535 + $0x1a0] sm:$0xff] %v4239
        %4296 = vst [vmem:[%s535 + $0x1a8] sm:$0x3f] %v4240
        %4297 = vst [vmem:[%s535 + $0x1b0] sm:$0xff] %v4241
        %4298 = vst [vmem:[%s535 + $0x1b8] sm:$0x3f] %v4242
        %s4299 = sand.u32 %s127, 1
        %s4300 = sand.u32 %s127, 1
        %s4301 = smul.addr %s4300, 448
        %s4302 = scalar_lea.vmem [#allocation5], %s4301
        // Predicated region
        $region113: #{depthwise_conv_bn.1} parent=103 // pred_check
          %p4303 = pneg %p137
        $region114: #{depthwise_conv_bn.1} parent=103 // pred_check_branch
          %4305 = sbr.rel (%p4303) target = $region116
        $region115: #{depthwise_conv_bn.1} parent=103 // pred_region
          %s4306 = smul.addr %s15, 8
          %s4307 = scalar_lea.vmem %s4, %s4306
          // Predicated region
          $region117: #{depthwise_conv_bn.1} parent=115 // pred_check
            _
          $region118: #{depthwise_conv_bn.1} parent=115 // pred_check_branch
            %4309 = sbr.rel (0) target = $region120
          $region119: #{depthwise_conv_bn.1} parent=115 // pred_region
            // Predicated region
            $region121: #{depthwise_conv_bn.1} parent=119 // pred_check
              _
            $region122: #{depthwise_conv_bn.1} parent=119 // pred_check_branch
              %4311 = sbr.rel (0) target = $region124
            $region123: #{depthwise_conv_bn.1} parent=119 // pred_region
              // Predicated region
              $region136: #{depthwise_conv_bn.1} parent=123 // pred_check
                _
              $region137: #{depthwise_conv_bn.1} parent=123 // pred_check_branch
                %4437 = sbr.rel (0) target = $region139
              $region138: #{depthwise_conv_bn.1} parent=123 // pred_region
                loop: start=0, step=1, limit=1
                $region140: #{depthwise_conv_bn.1} parent=138 // loop_pre_header
                  _
                $region141: #{depthwise_conv_bn.1} parent=138 // loop_header
                  %s4439 = sphi 0, %s4443
                  %p4440 = scmp.ge.s32.totalorder %s4439, 1
                  %s4444 = sphi %s4302, %s4302
                  %s4445 = sphi %s4307, %s4307
                $region142: #{depthwise_conv_bn.1} parent=138 // loop_header_branch
                  %4442 = sbr.rel (%p4440) target = $region146
                $region143: #{depthwise_conv_bn.1} parent=138 // loop_body
                  %v4446 = vld [vmem:[%s4444] sm:$0xff]
                  %4447 = vst [vmem:[%s4445] sm:$0xff] %v4446
                  %v4448 = vld [vmem:[%s4444 + $0x8] sm:$0xff]
                  %4449 = vst [vmem:[%s4445 + $0x10] sm:$0xff] %v4448
                  %v4450 = vld [vmem:[%s4444 + $0x10] sm:$0xff]
                  %4451 = vst [vmem:[%s4445 + $0x20] sm:$0xff] %v4450
                  %v4452 = vld [vmem:[%s4444 + $0x18] sm:$0xff]
                  %4453 = vst [vmem:[%s4445 + $0x30] sm:$0xff] %v4452
                  %v4454 = vld [vmem:[%s4444 + $0x20] sm:$0xff]
                  %4455 = vst [vmem:[%s4445 + $0x40] sm:$0xff] %v4454
                  %v4456 = vld [vmem:[%s4444 + $0x28] sm:$0xff]
                  %4457 = vst [vmem:[%s4445 + $0x50] sm:$0xff] %v4456
                  %v4458 = vld [vmem:[%s4444 + $0x30] sm:$0xff]
                  %4459 = vst [vmem:[%s4445 + $0x60] sm:$0xff] %v4458
                  %v4460 = vld [vmem:[%s4444 + $0x38] sm:$0xff]
                  %4461 = vst [vmem:[%s4445 + $0x70] sm:$0xff] %v4460
                  %v4462 = vld [vmem:[%s4444 + $0x40] sm:$0xff]
                  %4463 = vst [vmem:[%s4445 + $0x80] sm:$0xff] %v4462
                  %v4464 = vld [vmem:[%s4444 + $0x48] sm:$0xff]
                  %4465 = vst [vmem:[%s4445 + $0x90] sm:$0xff] %v4464
                  %v4466 = vld [vmem:[%s4444 + $0x50] sm:$0xff]
                  %4467 = vst [vmem:[%s4445 + $0xa0] sm:$0xff] %v4466
                  %v4468 = vld [vmem:[%s4444 + $0x58] sm:$0xff]
                  %4469 = vst [vmem:[%s4445 + $0xb0] sm:$0xff] %v4468
                  %v4470 = vld [vmem:[%s4444 + $0x60] sm:$0xff]
                  %4471 = vst [vmem:[%s4445 + $0xc0] sm:$0xff] %v4470
                  %v4472 = vld [vmem:[%s4444 + $0x68] sm:$0xff]
                  %4473 = vst [vmem:[%s4445 + $0xd0] sm:$0xff] %v4472
                  %v4474 = vld [vmem:[%s4444 + $0x70] sm:$0xff]
                  %4475 = vst [vmem:[%s4445 + $0xe0] sm:$0xff] %v4474
                  %v4476 = vld [vmem:[%s4444 + $0x78] sm:$0xff]
                  %4477 = vst [vmem:[%s4445 + $0xf0] sm:$0xff] %v4476
                  %v4478 = vld [vmem:[%s4444 + $0x80] sm:$0xff]
                  %4479 = vst [vmem:[%s4445 + $0x100] sm:$0xff] %v4478
                  %v4480 = vld [vmem:[%s4444 + $0x88] sm:$0xff]
                  %4481 = vst [vmem:[%s4445 + $0x110] sm:$0xff] %v4480
                  %v4482 = vld [vmem:[%s4444 + $0x90] sm:$0xff]
                  %4483 = vst [vmem:[%s4445 + $0x120] sm:$0xff] %v4482
                  %v4484 = vld [vmem:[%s4444 + $0x98] sm:$0xff]
                  %4485 = vst [vmem:[%s4445 + $0x130] sm:$0xff] %v4484
                  %v4486 = vld [vmem:[%s4444 + $0xa0] sm:$0xff]
                  %4487 = vst [vmem:[%s4445 + $0x140] sm:$0xff] %v4486
                  %v4488 = vld [vmem:[%s4444 + $0xa8] sm:$0xff]
                  %4489 = vst [vmem:[%s4445 + $0x150] sm:$0xff] %v4488
                  %v4490 = vld [vmem:[%s4444 + $0xb0] sm:$0xff]
                  %4491 = vst [vmem:[%s4445 + $0x160] sm:$0xff] %v4490
                  %v4492 = vld [vmem:[%s4444 + $0xb8] sm:$0xff]
                  %4493 = vst [vmem:[%s4445 + $0x170] sm:$0xff] %v4492
                  %v4494 = vld [vmem:[%s4444 + $0xc0] sm:$0xff]
                  %4495 = vst [vmem:[%s4445 + $0x180] sm:$0xff] %v4494
                  %v4496 = vld [vmem:[%s4444 + $0xc8] sm:$0xff]
                  %4497 = vst [vmem:[%s4445 + $0x190] sm:$0xff] %v4496
                  %v4498 = vld [vmem:[%s4444 + $0xd0] sm:$0xff]
                  %4499 = vst [vmem:[%s4445 + $0x1a0] sm:$0xff] %v4498
                  %v4500 = vld [vmem:[%s4444 + $0xd8] sm:$0xff]
                  %4501 = vst [vmem:[%s4445 + $0x1b0] sm:$0xff] %v4500
                  %v4502 = vld [vmem:[%s4444 + $0xe0] sm:$0xff]
                  %4503 = vst [vmem:[%s4445 + $0x1c0] sm:$0xff] %v4502
                  %v4504 = vld [vmem:[%s4444 + $0xe8] sm:$0xff]
                  %4505 = vst [vmem:[%s4445 + $0x1d0] sm:$0xff] %v4504
                  %v4506 = vld [vmem:[%s4444 + $0xf0] sm:$0xff]
                  %4507 = vst [vmem:[%s4445 + $0x1e0] sm:$0xff] %v4506
                  %v4508 = vld [vmem:[%s4444 + $0xf8] sm:$0xff]
                  %4509 = vst [vmem:[%s4445 + $0x1f0] sm:$0xff] %v4508
                  %v4510 = vld [vmem:[%s4444 + $0x100] sm:$0xff]
                  %4511 = vst [vmem:[%s4445 + $0x200] sm:$0xff] %v4510
                  %v4512 = vld [vmem:[%s4444 + $0x108] sm:$0xff]
                  %4513 = vst [vmem:[%s4445 + $0x210] sm:$0xff] %v4512
                  %v4514 = vld [vmem:[%s4444 + $0x110] sm:$0xff]
                  %4515 = vst [vmem:[%s4445 + $0x220] sm:$0xff] %v4514
                  %v4516 = vld [vmem:[%s4444 + $0x118] sm:$0xff]
                  %4517 = vst [vmem:[%s4445 + $0x230] sm:$0xff] %v4516
                  %v4518 = vld [vmem:[%s4444 + $0x120] sm:$0xff]
                  %4519 = vst [vmem:[%s4445 + $0x240] sm:$0xff] %v4518
                  %v4520 = vld [vmem:[%s4444 + $0x128] sm:$0xff]
                  %4521 = vst [vmem:[%s4445 + $0x250] sm:$0xff] %v4520
                  %v4522 = vld [vmem:[%s4444 + $0x130] sm:$0xff]
                  %4523 = vst [vmem:[%s4445 + $0x260] sm:$0xff] %v4522
                  %v4524 = vld [vmem:[%s4444 + $0x138] sm:$0xff]
                  %4525 = vst [vmem:[%s4445 + $0x270] sm:$0xff] %v4524
                  %v4526 = vld [vmem:[%s4444 + $0x140] sm:$0xff]
                  %4527 = vst [vmem:[%s4445 + $0x280] sm:$0xff] %v4526
                  %v4528 = vld [vmem:[%s4444 + $0x148] sm:$0xff]
                  %4529 = vst [vmem:[%s4445 + $0x290] sm:$0xff] %v4528
                  %v4530 = vld [vmem:[%s4444 + $0x150] sm:$0xff]
                  %4531 = vst [vmem:[%s4445 + $0x2a0] sm:$0xff] %v4530
                  %v4532 = vld [vmem:[%s4444 + $0x158] sm:$0xff]
                  %4533 = vst [vmem:[%s4445 + $0x2b0] sm:$0xff] %v4532
                  %v4534 = vld [vmem:[%s4444 + $0x160] sm:$0xff]
                  %4535 = vst [vmem:[%s4445 + $0x2c0] sm:$0xff] %v4534
                  %v4536 = vld [vmem:[%s4444 + $0x168] sm:$0xff]
                  %4537 = vst [vmem:[%s4445 + $0x2d0] sm:$0xff] %v4536
                  %v4538 = vld [vmem:[%s4444 + $0x170] sm:$0xff]
                  %4539 = vst [vmem:[%s4445 + $0x2e0] sm:$0xff] %v4538
                  %v4540 = vld [vmem:[%s4444 + $0x178] sm:$0xff]
                  %4541 = vst [vmem:[%s4445 + $0x2f0] sm:$0xff] %v4540
                  %v4542 = vld [vmem:[%s4444 + $0x180] sm:$0xff]
                  %4543 = vst [vmem:[%s4445 + $0x300] sm:$0xff] %v4542
                  %v4544 = vld [vmem:[%s4444 + $0x188] sm:$0xff]
                  %4545 = vst [vmem:[%s4445 + $0x310] sm:$0xff] %v4544
                  %v4546 = vld [vmem:[%s4444 + $0x190] sm:$0xff]
                  %4547 = vst [vmem:[%s4445 + $0x320] sm:$0xff] %v4546
                  %v4548 = vld [vmem:[%s4444 + $0x198] sm:$0xff]
                  %4549 = vst [vmem:[%s4445 + $0x330] sm:$0xff] %v4548
                  %v4550 = vld [vmem:[%s4444 + $0x1a0] sm:$0xff]
                  %4551 = vst [vmem:[%s4445 + $0x340] sm:$0xff] %v4550
                  %v4552 = vld [vmem:[%s4444 + $0x1a8] sm:$0xff]
                  %4553 = vst [vmem:[%s4445 + $0x350] sm:$0xff] %v4552
                  %v4554 = vld [vmem:[%s4444 + $0x1b0] sm:$0xff]
                  %4555 = vst [vmem:[%s4445 + $0x360] sm:$0xff] %v4554
                  %v4556 = vld [vmem:[%s4444 + $0x1b8] sm:$0xff]
                  %4557 = vst [vmem:[%s4445 + $0x370] sm:$0xff] %v4556
                $region144: #{depthwise_conv_bn.1} parent=138 // loop_footer
                  %s4443 = sadd.s32 1, %s4439
                $region145: #{depthwise_conv_bn.1} parent=138 // loop_footer_branch
                  %4438 = sbr.rel target = $region141
                $region146: #{depthwise_conv_bn.1} parent=138 // loop_exit
                  _
              $region139: #{depthwise_conv_bn.1} parent=123 // pred_fallthru
                _
              // Predicated region
              $region147: #{depthwise_conv_bn.1} parent=123 // pred_check
                _
              $region148: #{depthwise_conv_bn.1} parent=123 // pred_check_branch
                %4559 = sbr.rel target = $region150
              $region149: #{depthwise_conv_bn.1} parent=123 // pred_region
                _
              $region150: #{depthwise_conv_bn.1} parent=123 // pred_fallthru
                _
            $region124: #{depthwise_conv_bn.1} parent=119 // pred_fallthru
              _
            // Predicated region
            $region125: #{depthwise_conv_bn.1} parent=119 // pred_check
              _
            $region126: #{depthwise_conv_bn.1} parent=119 // pred_check_branch
              %4313 = sbr.rel target = $region128
            $region127: #{depthwise_conv_bn.1} parent=119 // pred_region
              %s4315 = ssub.s32 256, 1
              loop: start=0, step=1, limit=1
              $region129: #{depthwise_conv_bn.1} parent=127 // loop_pre_header
                _
              $region130: #{depthwise_conv_bn.1} parent=127 // loop_header
                %s4317 = sphi 0, %s4321
                %p4318 = scmp.ge.s32.totalorder %s4317, 1
                %s4322 = sphi %s4302, %s4302
                %s4323 = sphi %s4307, %s4307
              $region131: #{depthwise_conv_bn.1} parent=127 // loop_header_branch
                %4320 = sbr.rel (%p4318) target = $region135
              $region132: #{depthwise_conv_bn.1} parent=127 // loop_body
                %v4324 = vld [vmem:[%s4322] sm:%s4315]
                %4325 = vst [vmem:[%s4323] sm:%s4315] %v4324
                %v4326 = vld [vmem:[%s4322 + $0x8] sm:%s4315]
                %4327 = vst [vmem:[%s4323 + $0x10] sm:%s4315] %v4326
                %v4328 = vld [vmem:[%s4322 + $0x10] sm:%s4315]
                %4329 = vst [vmem:[%s4323 + $0x20] sm:%s4315] %v4328
                %v4330 = vld [vmem:[%s4322 + $0x18] sm:%s4315]
                %4331 = vst [vmem:[%s4323 + $0x30] sm:%s4315] %v4330
                %v4332 = vld [vmem:[%s4322 + $0x20] sm:%s4315]
                %4333 = vst [vmem:[%s4323 + $0x40] sm:%s4315] %v4332
                %v4334 = vld [vmem:[%s4322 + $0x28] sm:%s4315]
                %4335 = vst [vmem:[%s4323 + $0x50] sm:%s4315] %v4334
                %v4336 = vld [vmem:[%s4322 + $0x30] sm:%s4315]
                %4337 = vst [vmem:[%s4323 + $0x60] sm:%s4315] %v4336
                %v4338 = vld [vmem:[%s4322 + $0x38] sm:%s4315]
                %4339 = vst [vmem:[%s4323 + $0x70] sm:%s4315] %v4338
                %v4340 = vld [vmem:[%s4322 + $0x40] sm:%s4315]
                %4341 = vst [vmem:[%s4323 + $0x80] sm:%s4315] %v4340
                %v4342 = vld [vmem:[%s4322 + $0x48] sm:%s4315]
                %4343 = vst [vmem:[%s4323 + $0x90] sm:%s4315] %v4342
                %v4344 = vld [vmem:[%s4322 + $0x50] sm:%s4315]
                %4345 = vst [vmem:[%s4323 + $0xa0] sm:%s4315] %v4344
                %v4346 = vld [vmem:[%s4322 + $0x58] sm:%s4315]
                %4347 = vst [vmem:[%s4323 + $0xb0] sm:%s4315] %v4346
                %v4348 = vld [vmem:[%s4322 + $0x60] sm:%s4315]
                %4349 = vst [vmem:[%s4323 + $0xc0] sm:%s4315] %v4348
                %v4350 = vld [vmem:[%s4322 + $0x68] sm:%s4315]
                %4351 = vst [vmem:[%s4323 + $0xd0] sm:%s4315] %v4350
                %v4352 = vld [vmem:[%s4322 + $0x70] sm:%s4315]
                %4353 = vst [vmem:[%s4323 + $0xe0] sm:%s4315] %v4352
                %v4354 = vld [vmem:[%s4322 + $0x78] sm:%s4315]
                %4355 = vst [vmem:[%s4323 + $0xf0] sm:%s4315] %v4354
                %v4356 = vld [vmem:[%s4322 + $0x80] sm:%s4315]
                %4357 = vst [vmem:[%s4323 + $0x100] sm:%s4315] %v4356
                %v4358 = vld [vmem:[%s4322 + $0x88] sm:%s4315]
                %4359 = vst [vmem:[%s4323 + $0x110] sm:%s4315] %v4358
                %v4360 = vld [vmem:[%s4322 + $0x90] sm:%s4315]
                %4361 = vst [vmem:[%s4323 + $0x120] sm:%s4315] %v4360
                %v4362 = vld [vmem:[%s4322 + $0x98] sm:%s4315]
                %4363 = vst [vmem:[%s4323 + $0x130] sm:%s4315] %v4362
                %v4364 = vld [vmem:[%s4322 + $0xa0] sm:%s4315]
                %4365 = vst [vmem:[%s4323 + $0x140] sm:%s4315] %v4364
                %v4366 = vld [vmem:[%s4322 + $0xa8] sm:%s4315]
                %4367 = vst [vmem:[%s4323 + $0x150] sm:%s4315] %v4366
                %v4368 = vld [vmem:[%s4322 + $0xb0] sm:%s4315]
                %4369 = vst [vmem:[%s4323 + $0x160] sm:%s4315] %v4368
                %v4370 = vld [vmem:[%s4322 + $0xb8] sm:%s4315]
                %4371 = vst [vmem:[%s4323 + $0x170] sm:%s4315] %v4370
                %v4372 = vld [vmem:[%s4322 + $0xc0] sm:%s4315]
                %4373 = vst [vmem:[%s4323 + $0x180] sm:%s4315] %v4372
                %v4374 = vld [vmem:[%s4322 + $0xc8] sm:%s4315]
                %4375 = vst [vmem:[%s4323 + $0x190] sm:%s4315] %v4374
                %v4376 = vld [vmem:[%s4322 + $0xd0] sm:%s4315]
                %4377 = vst [vmem:[%s4323 + $0x1a0] sm:%s4315] %v4376
                %v4378 = vld [vmem:[%s4322 + $0xd8] sm:%s4315]
                %4379 = vst [vmem:[%s4323 + $0x1b0] sm:%s4315] %v4378
                %v4380 = vld [vmem:[%s4322 + $0xe0] sm:%s4315]
                %4381 = vst [vmem:[%s4323 + $0x1c0] sm:%s4315] %v4380
                %v4382 = vld [vmem:[%s4322 + $0xe8] sm:%s4315]
                %4383 = vst [vmem:[%s4323 + $0x1d0] sm:%s4315] %v4382
                %v4384 = vld [vmem:[%s4322 + $0xf0] sm:%s4315]
                %4385 = vst [vmem:[%s4323 + $0x1e0] sm:%s4315] %v4384
                %v4386 = vld [vmem:[%s4322 + $0xf8] sm:%s4315]
                %4387 = vst [vmem:[%s4323 + $0x1f0] sm:%s4315] %v4386
                %v4388 = vld [vmem:[%s4322 + $0x100] sm:%s4315]
                %4389 = vst [vmem:[%s4323 + $0x200] sm:%s4315] %v4388
                %v4390 = vld [vmem:[%s4322 + $0x108] sm:%s4315]
                %4391 = vst [vmem:[%s4323 + $0x210] sm:%s4315] %v4390
                %v4392 = vld [vmem:[%s4322 + $0x110] sm:%s4315]
                %4393 = vst [vmem:[%s4323 + $0x220] sm:%s4315] %v4392
                %v4394 = vld [vmem:[%s4322 + $0x118] sm:%s4315]
                %4395 = vst [vmem:[%s4323 + $0x230] sm:%s4315] %v4394
                %v4396 = vld [vmem:[%s4322 + $0x120] sm:%s4315]
                %4397 = vst [vmem:[%s4323 + $0x240] sm:%s4315] %v4396
                %v4398 = vld [vmem:[%s4322 + $0x128] sm:%s4315]
                %4399 = vst [vmem:[%s4323 + $0x250] sm:%s4315] %v4398
                %v4400 = vld [vmem:[%s4322 + $0x130] sm:%s4315]
                %4401 = vst [vmem:[%s4323 + $0x260] sm:%s4315] %v4400
                %v4402 = vld [vmem:[%s4322 + $0x138] sm:%s4315]
                %4403 = vst [vmem:[%s4323 + $0x270] sm:%s4315] %v4402
                %v4404 = vld [vmem:[%s4322 + $0x140] sm:%s4315]
                %4405 = vst [vmem:[%s4323 + $0x280] sm:%s4315] %v4404
                %v4406 = vld [vmem:[%s4322 + $0x148] sm:%s4315]
                %4407 = vst [vmem:[%s4323 + $0x290] sm:%s4315] %v4406
                %v4408 = vld [vmem:[%s4322 + $0x150] sm:%s4315]
                %4409 = vst [vmem:[%s4323 + $0x2a0] sm:%s4315] %v4408
                %v4410 = vld [vmem:[%s4322 + $0x158] sm:%s4315]
                %4411 = vst [vmem:[%s4323 + $0x2b0] sm:%s4315] %v4410
                %v4412 = vld [vmem:[%s4322 + $0x160] sm:%s4315]
                %4413 = vst [vmem:[%s4323 + $0x2c0] sm:%s4315] %v4412
                %v4414 = vld [vmem:[%s4322 + $0x168] sm:%s4315]
                %4415 = vst [vmem:[%s4323 + $0x2d0] sm:%s4315] %v4414
                %v4416 = vld [vmem:[%s4322 + $0x170] sm:%s4315]
                %4417 = vst [vmem:[%s4323 + $0x2e0] sm:%s4315] %v4416
                %v4418 = vld [vmem:[%s4322 + $0x178] sm:%s4315]
                %4419 = vst [vmem:[%s4323 + $0x2f0] sm:%s4315] %v4418
                %v4420 = vld [vmem:[%s4322 + $0x180] sm:%s4315]
                %4421 = vst [vmem:[%s4323 + $0x300] sm:%s4315] %v4420
                %v4422 = vld [vmem:[%s4322 + $0x188] sm:%s4315]
                %4423 = vst [vmem:[%s4323 + $0x310] sm:%s4315] %v4422
                %v4424 = vld [vmem:[%s4322 + $0x190] sm:%s4315]
                %4425 = vst [vmem:[%s4323 + $0x320] sm:%s4315] %v4424
                %v4426 = vld [vmem:[%s4322 + $0x198] sm:%s4315]
                %4427 = vst [vmem:[%s4323 + $0x330] sm:%s4315] %v4426
                %v4428 = vld [vmem:[%s4322 + $0x1a0] sm:%s4315]
                %4429 = vst [vmem:[%s4323 + $0x340] sm:%s4315] %v4428
                %v4430 = vld [vmem:[%s4322 + $0x1a8] sm:%s4315]
                %4431 = vst [vmem:[%s4323 + $0x350] sm:%s4315] %v4430
                %v4432 = vld [vmem:[%s4322 + $0x1b0] sm:%s4315]
                %4433 = vst [vmem:[%s4323 + $0x360] sm:%s4315] %v4432
                %v4434 = vld [vmem:[%s4322 + $0x1b8] sm:%s4315]
                %4435 = vst [vmem:[%s4323 + $0x370] sm:%s4315] %v4434
              $region133: #{depthwise_conv_bn.1} parent=127 // loop_footer
                %s4321 = sadd.s32 1, %s4317
              $region134: #{depthwise_conv_bn.1} parent=127 // loop_footer_branch
                %4316 = sbr.rel target = $region130
              $region135: #{depthwise_conv_bn.1} parent=127 // loop_exit
                _
            $region128: #{depthwise_conv_bn.1} parent=119 // pred_fallthru
              _
          $region120: #{depthwise_conv_bn.1} parent=115 // pred_fallthru
            _
          %4560 = vnop
        $region116: #{depthwise_conv_bn.1} parent=103 // pred_fallthru
          _
      $region104: #{depthwise_conv_bn.1} parent=5 // pred_fallthru
        _
      %p4561 = scmp.le.s32.totalorder 2, %s10
      // Predicated region
      $region151: #{depthwise_conv_bn.1} parent=5 // pred_check
        %p4562 = pneg %p4561
      $region152: #{depthwise_conv_bn.1} parent=5 // pred_check_branch
        %4564 = sbr.rel (%p4562) target = $region154
      $region153: #{depthwise_conv_bn.1} parent=5 // pred_region
        %s4565 = ssub.s32 %s10, 2
        // Predicated region
        $region155: #{depthwise_conv_bn.1} parent=153 // pred_check
          %p4566 = pneg %p143
        $region156: #{depthwise_conv_bn.1} parent=153 // pred_check_branch
          %4568 = sbr.rel (%p4566) target = $region158
        $region157: #{depthwise_conv_bn.1} parent=153 // pred_region
          %s4569 = sand.u32 %s128, 1
          %s4570 = sand.u32 %s128, 1
          %s4571 = smul.addr %s4570, 448
          %s4572 = scalar_lea.vmem [#allocation5], %s4571
        $region158: #{depthwise_conv_bn.1} parent=153 // pred_fallthru
          _
      $region154: #{depthwise_conv_bn.1} parent=5 // pred_fallthru
        _
    $region6: #{depthwise_conv_bn.1} parent=1 // loop_footer
      %s14 = sadd.s32 1, %s10
    $region7: #{depthwise_conv_bn.1} parent=1 // loop_footer_branch
      %9 = sbr.rel target = $region3
    $region8: #{depthwise_conv_bn.1} parent=1 // loop_exit
      _

</llo_original>
